<compile_context>
chip_gen: v6e
topology: v6e:2x2x1
jax: 0.10.0
libtpu: 0.0.40
codegen_flags: <defaults>
</compile_context>

<pallas_src>
import functools

import jax
import jax.numpy as jnp
import numpy as np
from jax.experimental import pallas as pl
from jax.experimental.pallas import tpu as pltpu


class MBConvArgs:
    def __init__(self, in_channels, out_channels, kernel_size, stride,
                 in_channel_expand_ratio, se_ratio=0.25, id_skip=True,
                 drop_connect_rate=None):
        self.in_channels = in_channels
        self.out_channels = out_channels
        self.kernel_size = kernel_size
        self.stride = stride
        self.in_channel_expand_ratio = in_channel_expand_ratio
        self.se_ratio = se_ratio
        self.id_skip = id_skip
        self.drop_connect_rate = drop_connect_rate


def _silu(x):
    return x * jax.nn.sigmoid(x)


def _row_chunks(total, rows_per_chunk):
    """Static (start, size) row chunks covering [0, total)."""
    rows_per_chunk = max(1, min(total, rows_per_chunk))
    out, r = [], 0
    while r < total:
        out.append((r, min(rows_per_chunk, total - r)))
        r += rows_per_chunk
    return out


# ----------------------------- fused MBConv kernel -----------------------------
def _mbconv_kernel(*refs, H, W, Cin, Cexp, Cout, k, stride, pad, Ho, Wo,
                   has_expand, has_se, use_skip, exp_rows, dw_rows, mxu_dtype):
    it = iter(refs)
    xpad_ref = next(it)                        # (Hp, Wp, Cin) zero-padded input
    if has_expand:
        w_exp_ref = next(it)                   # (Cin, Cexp) mxu dtype, BN-scale folded
        exp_shift_ref = next(it)               # (1, Cexp)   f32 BN shift
    w_dw_ref = next(it)                        # (k*k, Cexp) f32, BN-scale folded
    dw_shift_ref = next(it)                    # (1, Cexp)
    if has_se:
        w_sq_ref = next(it)                    # (Cexp, Csq)
        b_sq_ref = next(it)                    # (1, Csq)
        w_ex_ref = next(it)                    # (Csq, Cexp)
        b_ex_ref = next(it)                    # (1, Cexp)
    w_out_ref = next(it)                       # (Cexp, Cout) f32, BN-scale folded
    out_shift_ref = next(it)                   # (1, Cout)
    o_ref = next(it)                           # (Ho, Wo, Cout)
    # Scratch is only allocated when actually needed:
    xe_ref = next(it) if has_expand else xpad_ref   # expanded activations
    ydw_ref = next(it) if has_se else None          # depthwise output (pre-SE)

    Hp = H + 2 * pad
    Wp = W + 2 * pad

    # ---- Stage 1: 1x1 expand + BN + SiLU into VMEM scratch (only if expanding) ----
    if has_expand:
        if pad > 0:
            # Zero top/bottom "same"-padding rows once.
            xe_ref[0:pad, :, :] = jnp.zeros((pad, Wp, Cexp), jnp.float32)
            xe_ref[Hp - pad:Hp, :, :] = jnp.zeros((pad, Wp, Cexp), jnp.float32)
            # Hoisted padding-column handling: input pad columns are exactly 0,
            # so the matmul result is 0 there; masking the BN *shift* makes the
            # pad columns compute SiLU(0+0)==0 with no per-chunk iota/select.
            col = jax.lax.broadcasted_iota(jnp.int32, (1, Wp, 1), 1)
            interior = (col >= pad) & (col < pad + W)
            shift_row = jnp.where(interior,
                                  exp_shift_ref[...].reshape(1, 1, Cexp), 0.0)
        else:
            shift_row = exp_shift_ref[...].reshape(1, 1, Cexp)
        w_exp = w_exp_ref[...]
        for r0, rows in _row_chunks(H, exp_rows):
            xin = xpad_ref[pad + r0: pad + r0 + rows, :, :]
            xin = xin.reshape(rows * Wp, Cin).astype(mxu_dtype)
            y = jnp.dot(xin, w_exp, preferred_element_type=jnp.float32)
            y = y.reshape(rows, Wp, Cexp) + shift_row
            xe_ref[pad + r0: pad + r0 + rows, :, :] = _silu(y)

    # ---- Stage 2 (+4 fused when no SE): depthwise kxk + BN + SiLU [+ project] ----
    w_dw = w_dw_ref[...]                       # (k*k, Cexp) BN-scale already folded
    dw_shift = dw_shift_ref[...]
    out_shift = out_shift_ref[...]

    def dw_chunk(o0, orows):
        # Accumulator stays register-resident; each tap is a fresh VMEM read.
        acc = jnp.zeros((orows, Wo, Cexp), jnp.float32)
        for ki in range(k):
            for kj in range(k):
                if stride == 1:
                    win = xe_ref[o0 + ki: o0 + ki + orows, kj: kj + Wo, :]
                else:
                    # TODO(synk): stride>1 via strided value slices only;
                    # de-interleave columns once per chunk before using stride-2.
                    band = xe_ref[stride * o0 + ki:
                                  stride * o0 + ki + stride * (orows - 1) + 1, :, :]
                    win = band[::stride, kj: kj + stride * (Wo - 1) + 1: stride, :]
                acc = acc + win.astype(jnp.float32) * w_dw[ki * k + kj: ki * k + kj + 1, :]
        return _silu(acc + dw_shift)

    def project_store(yc, o0, orows, w_out_eff):
        out = jnp.dot(yc, w_out_eff, preferred_element_type=jnp.float32) + out_shift
        if use_skip:
            xb = xpad_ref[pad + o0: pad + o0 + orows, :, :]
            xb = xb[:, pad: pad + W, :]
            out = out + xb.reshape(orows * Wo, Cin).astype(jnp.float32)
        o_ref[o0: o0 + orows, :, :] = out.reshape(orows, Wo, Cout).astype(o_ref.dtype)

    if has_se:
        pool_sum = jnp.zeros((1, Cexp), jnp.float32)
        for o0, orows in _row_chunks(Ho, dw_rows):
            ydw = dw_chunk(o0, orows)
            ydw_ref[o0: o0 + orows, :, :] = ydw
            pool_sum = pool_sum + jnp.sum(ydw.reshape(orows * Wo, Cexp),
                                          axis=0, keepdims=True)
        # ---- Stage 3: squeeze / excite gate (tiny, f32) ----
        pooled = pool_sum * (1.0 / float(Ho * Wo))
        z = jnp.dot(pooled, w_sq_ref[...], preferred_element_type=jnp.float32)
        z = _silu(z + b_sq_ref[...])
        g = jax.nn.sigmoid(jnp.dot(z, w_ex_ref[...],
                                   preferred_element_type=jnp.float32) + b_ex_ref[...])
        w_out_eff = w_out_ref[...].astype(mxu_dtype)
        # ---- Stage 4: SE scale + 1x1 project + BN + skip ----
        # NOTE: g is applied to yc (one VPU mul/elem); folding g into w_out
        # would need a lane->sublane relayout of g, not worth the lowering risk.
        for o0, orows in _row_chunks(Ho, dw_rows):
            yc = ydw_ref[o0: o0 + orows, :, :].reshape(orows * Wo, Cexp)
            yc = (yc * g).astype(mxu_dtype)
            project_store(yc, o0, orows, w_out_eff)
    else:
        w_out_eff = w_out_ref[...].astype(mxu_dtype)
        for o0, orows in _row_chunks(Ho, dw_rows):
            ydw = dw_chunk(o0, orows)
            yc = ydw.reshape(orows * Wo, Cexp).astype(mxu_dtype)
            project_store(yc, o0, orows, w_out_eff)


# ------------------------------ parameter setup ------------------------------
def init_params(key, args):
    Cin, Cout = args.in_channels, args.out_channels
    Cexp = Cin * args.in_channel_expand_ratio
    k = args.kernel_size
    eps = 1e-5
    keys = iter(jax.random.split(key, 32))

    def w(shape, fan_in):
        return jax.random.normal(next(keys), shape, jnp.float32) / np.sqrt(fan_in)

    def bn(c):
        gamma = 1.0 + 0.1 * jax.random.normal(next(keys), (c,), jnp.float32)
        beta = 0.05 * jax.random.normal(next(keys), (c,), jnp.float32)
        mean = 0.1 * jax.random.normal(next(keys), (c,), jnp.float32)
        var = 1.0 + 0.1 * jax.random.uniform(next(keys), (c,), jnp.float32)
        scale = gamma / jnp.sqrt(var + eps)
        shift = beta - mean * scale
        return scale.reshape(1, c), shift.reshape(1, c)

    params = {}
    if args.in_channel_expand_ratio != 1:
        params['w_exp'] = w((Cin, Cexp), Cin)
        params['exp_scale'], params['exp_shift'] = bn(Cexp)
    params['w_dw'] = w((k * k, Cexp), k * k)   # depthwise: one kxk filter per channel
    params['dw_scale'], params['dw_shift'] = bn(Cexp)
    has_se = args.se_ratio is not None and 0 < args.se_ratio <= 1
    if has_se:
        Csq = max(1, int(Cin * args.se_ratio))
        params['w_sq'] = w((Cexp, Csq), Cexp)
        params['b_sq'] = 0.05 * jax.random.normal(next(keys), (1, Csq), jnp.float32)
        params['w_ex'] = w((Csq, Cexp), Csq)
        params['b_ex'] = 0.05 * jax.random.normal(next(keys), (1, Cexp), jnp.float32)
    params['w_out'] = w((Cexp, Cout), Cexp)
    params['out_scale'], params['out_shift'] = bn(Cout)
    return params


# ------------------------------ Pallas forward ------------------------------
def mbconv_forward(params, x, args, data_format="NCHW", mxu_dtype=jnp.bfloat16):
    # mxu_dtype=jnp.bfloat16 feeds the v6e/v7x MXU at full rate (f32 accumulate);
    # pass jnp.float32 on v5e where the extra convert VALU ops do not pay off.
    if data_format == "NCHW":
        x_nhwc = jnp.transpose(x, (0, 2, 3, 1))
    elif data_format == "NHWC":
        x_nhwc = x
    else:
        raise ValueError(f"unknown data_format {data_format}")

    N, H, W, Cin = x_nhwc.shape
    assert Cin == args.in_channels
    dtype = x_nhwc.dtype
    Cexp = Cin * args.in_channel_expand_ratio
    Cout = args.out_channels
    k, s = args.kernel_size, args.stride
    p = (k - 1) // 2
    Hp, Wp = H + 2 * p, W + 2 * p
    Ho = (H + 2 * p - k) // s + 1
    Wo = (W + 2 * p - k) // s + 1
    has_expand = args.in_channel_expand_ratio != 1
    has_se = args.se_ratio is not None and 0 < args.se_ratio <= 1
    use_skip = bool(args.id_skip) and s == 1 and Cin == Cout

    # Pad only the cheap Cin-wide input in HBM; the expanded intermediates stay
    # in VMEM with their "same" padding produced in place.
    x_pad = jnp.pad(x_nhwc, ((0, 0), (p, p), (p, p), (0, 0))) if p > 0 else x_nhwc

    # Fold eval-mode BN scales into the conv weights (free, O(weights) work);
    # the BN shifts stay as in-kernel adds.
    w_dw_f = params['w_dw'] * params['dw_scale']
    w_out_f = params['w_out'] * params['out_scale']

    # Row-chunk sizing: keep the depthwise accumulator tile well under the
    # 256 KiB vreg file so it stays register-resident (no per-tap spill).
    acc_budget = 96 * 1024
    dw_rows = max(1, min(Ho, acc_budget // max(1, Wo * Cexp * 4)))
    exp_budget = 128 * 1024
    exp_rows = max(1, min(H, exp_budget // max(1, Wp * Cexp * 4)))

    def rep(shape):  # replicated (weight) spec
        nd = len(shape)
        return pl.BlockSpec(shape, lambda n, _nd=nd: (0,) * _nd)

    operands = [x_pad]
    in_specs = [pl.BlockSpec((None, Hp, Wp, Cin), lambda n: (n, 0, 0, 0))]
    if has_expand:
        w_exp_f = (params['w_exp'] * params['exp_scale']).astype(mxu_dtype)
        operands += [w_exp_f, params['exp_shift']]
        in_specs += [rep((Cin, Cexp)), rep((1, Cexp))]
    operands += [w_dw_f, params['dw_shift']]
    in_specs += [rep((k * k, Cexp)), rep((1, Cexp))]
    if has_se:
        Csq = params['w_sq'].shape[1]
        operands += [params['w_sq'], params['b_sq'], params['w_ex'], params['b_ex']]
        in_specs += [rep((Cexp, Csq)), rep((1, Csq)), rep((Csq, Cexp)), rep((1, Cexp))]
    operands += [w_out_f, params['out_shift']]
    in_specs += [rep((Cexp, Cout)), rep((1, Cout))]

    scratch_shapes = []
    if has_expand:
        scratch_shapes.append(pltpu.VMEM((Hp, Wp, Cexp), jnp.float32))
    if has_se:
        scratch_shapes.append(pltpu.VMEM((Ho, Wo, Cexp), jnp.float32))

    # VMEM budget: scratch + double-buffered in/out blocks + (double-buffered)
    # weights + compiler-internal headroom, clamped by the chip's capacity.
    def tile_bytes(shape, dt):
        dims = [int(d) for d in shape]
        dims[-1] = -(-dims[-1] // 128) * 128
        if len(dims) >= 2:
            dims[-2] = -(-dims[-2] // 8) * 8
        n = 1
        for d in dims:
            n *= d
        return n * jnp.dtype(dt).itemsize

    need = 0
    if has_expand:
        need += tile_bytes((Hp, Wp, Cexp), jnp.float32)
    if has_se:
        need += tile_bytes((Ho, Wo, Cexp), jnp.float32)
    need += 2 * tile_bytes((Hp, Wp, Cin), dtype)       # input block, double-buffered
    need += 2 * tile_bytes((Ho, Wo, Cout), dtype)      # output block, double-buffered
    for op in operands[1:]:
        need += 2 * tile_bytes(op.shape, op.dtype)     # weights (default 2 buffers)
    need += 4 * 2 ** 20                                # compiler-internal headroom
    try:
        vmem_cap = int(pltpu.get_tpu_info().vmem_capacity_bytes)
    except Exception:
        vmem_cap = 64 * 2 ** 20
    vmem_limit = max(16 * 2 ** 20, min(int(0.85 * vmem_cap), int(need)))

    kern = functools.partial(
        _mbconv_kernel, H=H, W=W, Cin=Cin, Cexp=Cexp, Cout=Cout, k=k, stride=s,
        pad=p, Ho=Ho, Wo=Wo, has_expand=has_expand, has_se=has_se,
        use_skip=use_skip, exp_rows=exp_rows, dw_rows=dw_rows, mxu_dtype=mxu_dtype)

    out_nhwc = pl.pallas_call(
        kern,
        out_shape=jax.ShapeDtypeStruct((N, Ho, Wo, Cout), dtype),
        grid=(N,),
        in_specs=in_specs,
        out_specs=pl.BlockSpec((None, Ho, Wo, Cout), lambda n: (n, 0, 0, 0)),
        scratch_shapes=scratch_shapes,
        compiler_params=pltpu.CompilerParams(
            dimension_semantics=("parallel",),
            vmem_limit_bytes=int(vmem_limit)),
    )(*operands)

    if data_format == "NCHW":
        return jnp.transpose(out_nhwc, (0, 3, 1, 2))
    return out_nhwc


# ----------------------- pure-JAX reference (for checking) -----------------------
def ref_forward(params, x_nchw, args):
    x = jnp.transpose(x_nchw, (0, 2, 3, 1))
    Cin = args.in_channels
    Cexp = Cin * args.in_channel_expand_ratio
    k, s = args.kernel_size, args.stride
    p = (k - 1) // 2
    dn = ('NHWC', 'HWIO', 'NHWC')
    if args.in_channel_expand_ratio != 1:
        w = params['w_exp'].reshape(1, 1, Cin, Cexp)
        y = jax.lax.conv_general_dilated(x, w, (1, 1), 'VALID', dimension_numbers=dn)
        y = y * params['exp_scale'].reshape(1, 1, 1, -1) + params['exp_shift'].reshape(1, 1, 1, -1)
        y = y * jax.nn.sigmoid(y)
    else:
        y = x
    w_dw = params['w_dw'].reshape(k, k, 1, Cexp)
    y = jax.lax.conv_general_dilated(y, w_dw, (s, s), [(p, p), (p, p)],
                                     dimension_numbers=dn, feature_group_count=Cexp)
    y = y * params['dw_scale'].reshape(1, 1, 1, -1) + params['dw_shift'].reshape(1, 1, 1, -1)
    y = y * jax.nn.sigmoid(y)
    has_se = args.se_ratio is not None and 0 < args.se_ratio <= 1
    if has_se:
        z = jnp.mean(y, axis=(1, 2), keepdims=True)
        z = jnp.einsum('nhwc,cs->nhws', z, params['w_sq']) + params['b_sq'].reshape(1, 1, 1, -1)
        z = z * jax.nn.sigmoid(z)
        z = jnp.einsum('nhws,sc->nhwc', z, params['w_ex']) + params['b_ex'].reshape(1, 1, 1, -1)
        z = jax.nn.sigmoid(z)
        y = y * z
    y = jnp.einsum('nhwc,co->nhwo', y, params['w_out'])
    y = y * params['out_scale'].reshape(1, 1, 1, -1) + params['out_shift'].reshape(1, 1, 1, -1)
    if args.id_skip and s == 1 and Cin == args.out_channels:
        y = y + x
    return jnp.transpose(y, (0, 3, 1, 2))


if __name__ == "__main__":
    key = jax.random.PRNGKey(0)
    ka, kb, kx = jax.random.split(key, 3)
    x = jax.random.normal(kx, (2, 8, 16, 16), jnp.float32)   # NCHW, like PyTorch

    # Config A: expand + SE + identity skip (canonical MBConv block).
    args_a = MBConvArgs(in_channels=8, out_channels=8, kernel_size=3, stride=1,
                        in_channel_expand_ratio=4, se_ratio=0.25, id_skip=True,
                        drop_connect_rate=None)
    params_a = init_params(ka, args_a)
    out_a = jax.block_until_ready(mbconv_forward(params_a, x, args_a))
    ref_a = ref_forward(params_a, x, args_a)
    # bf16 MXU operands => relaxed tolerance vs the f32 reference.
    np.testing.assert_allclose(np.asarray(out_a), np.asarray(ref_a),
                               rtol=5e-2, atol=5e-2)

    # Config B: no expansion, no SE, no skip (exercises the fused dw+project path).
    args_b = MBConvArgs(in_channels=8, out_channels=16, kernel_size=3, stride=1,
                        in_channel_expand_ratio=1, se_ratio=None, id_skip=True,
                        drop_connect_rate=None)
    params_b = init_params(kb, args_b)
    out_b = jax.block_until_ready(mbconv_forward(params_b, x, args_b))
    ref_b = ref_forward(params_b, x, args_b)
    np.testing.assert_allclose(np.asarray(out_b), np.asarray(ref_b),
                               rtol=5e-2, atol=5e-2)

    print("KERNEL_OK")
</pallas_src>

<mosaic_0001>
module attributes {stable_mosaic.version = 11 : i64} {
  func.func @_mbconv_kernel(%arg0: i32, %arg1: memref<1x18x18x8xf32, #tpu.memory_space<vmem>>, %arg2: memref<8x32xbf16, #tpu.memory_space<vmem>>, %arg3: memref<1x32xf32, #tpu.memory_space<vmem>>, %arg4: memref<9x32xf32, #tpu.memory_space<vmem>>, %arg5: memref<1x32xf32, #tpu.memory_space<vmem>>, %arg6: memref<32x2xf32, #tpu.memory_space<vmem>>, %arg7: memref<1x2xf32, #tpu.memory_space<vmem>>, %arg8: memref<2x32xf32, #tpu.memory_space<vmem>>, %arg9: memref<1x32xf32, #tpu.memory_space<vmem>>, %arg10: memref<32x8xf32, #tpu.memory_space<vmem>>, %arg11: memref<1x8xf32, #tpu.memory_space<vmem>>, %arg12: memref<1x16x16x8xf32, #tpu.memory_space<vmem>>, %arg13: memref<18x18x32xf32, #tpu.memory_space<vmem>>, %arg14: memref<16x16x32xf32, #tpu.memory_space<vmem>>) attributes {dimension_semantics = [#tpu.dimension_semantics<parallel>], iteration_bounds = array<i64: 2>, scalar_prefetch = 0 : i64, scratch_operands = 2 : i64, tpu.core_type = #tpu.core_type<tc>, window_params = [{transform_indices = @transform_0, window_bounds = array<i64: 1, 18, 18, 8>}, {pipeline_mode = #tpu.pipeline_mode<synchronous>, transform_indices = @transform_1, window_bounds = array<i64: 8, 32>}, {pipeline_mode = #tpu.pipeline_mode<synchronous>, transform_indices = @transform_2, window_bounds = array<i64: 1, 32>}, {pipeline_mode = #tpu.pipeline_mode<synchronous>, transform_indices = @transform_3, window_bounds = array<i64: 9, 32>}, {pipeline_mode = #tpu.pipeline_mode<synchronous>, transform_indices = @transform_4, window_bounds = array<i64: 1, 32>}, {pipeline_mode = #tpu.pipeline_mode<synchronous>, transform_indices = @transform_5, window_bounds = array<i64: 32, 2>}, {pipeline_mode = #tpu.pipeline_mode<synchronous>, transform_indices = @transform_6, window_bounds = array<i64: 1, 2>}, {pipeline_mode = #tpu.pipeline_mode<synchronous>, transform_indices = @transform_7, window_bounds = array<i64: 2, 32>}, {pipeline_mode = #tpu.pipeline_mode<synchronous>, transform_indices = @transform_8, window_bounds = array<i64: 1, 32>}, {pipeline_mode = #tpu.pipeline_mode<synchronous>, transform_indices = @transform_9, window_bounds = array<i64: 32, 8>}, {pipeline_mode = #tpu.pipeline_mode<synchronous>, transform_indices = @transform_10, window_bounds = array<i64: 1, 8>}, {transform_indices = @transform_11, window_bounds = array<i64: 1, 16, 16, 8>}]} {
    %cst = arith.constant 0.000000e+00 : f32
    %0 = vector.broadcast %cst : f32 to vector<1x18x32xf32>
    %c0 = arith.constant 0 : index
    %c0_0 = arith.constant 0 : index
    %c0_1 = arith.constant 0 : index
    %1 = vector.load %arg13[%c0, %c0_0, %c0_1] : memref<18x18x32xf32, #tpu.memory_space<vmem>>, vector<1x18x32xf32>
    tpu.vector_store %arg13[%c0, %c0_0, %c0_1], %0 {strides = array<i32>} : memref<18x18x32xf32, #tpu.memory_space<vmem>>, vector<1x18x32xf32>,
    %cst_2 = arith.constant 0.000000e+00 : f32
    %2 = vector.broadcast %cst_2 : f32 to vector<1x18x32xf32>
    %c17 = arith.constant 17 : index
    %c0_3 = arith.constant 0 : index
    %c0_4 = arith.constant 0 : index
    %3 = vector.load %arg13[%c17, %c0_3, %c0_4] : memref<18x18x32xf32, #tpu.memory_space<vmem>>, vector<1x18x32xf32>
    tpu.vector_store %arg13[%c17, %c0_3, %c0_4], %2 {strides = array<i32>} : memref<18x18x32xf32, #tpu.memory_space<vmem>>, vector<1x18x32xf32>,
    %4 = tpu.iota {dimensions = array<i32: 1>} : vector<1x18x1xi32>
    %c1_i32 = arith.constant 1 : i32
    %5 = vector.broadcast %c1_i32 : i32 to vector<1x18x1xi32>
    %6 = arith.cmpi sge, %4, %5 : vector<1x18x1xi32>
    %c17_i32 = arith.constant 17 : i32
    %7 = vector.broadcast %c17_i32 : i32 to vector<1x18x1xi32>
    %8 = arith.cmpi slt, %4, %7 : vector<1x18x1xi32>
    %9 = arith.andi %6, %8 : vector<1x18x1xi1>
    %c0_5 = arith.constant 0 : index
    %c0_6 = arith.constant 0 : index
    %10 = vector.load %arg3[%c0_5, %c0_6] : memref<1x32xf32, #tpu.memory_space<vmem>>, vector<1x32xf32>
    %11 = vector.shape_cast %10 : vector<1x32xf32> to vector<1x1x32xf32>
    %cst_7 = arith.constant 0.000000e+00 : f32
    %12 = vector.shape_cast %9 : vector<1x18x1xi1> to vector<1x18x1xi1>
    %13 = vector.broadcast %12 : vector<1x18x1xi1> to vector<1x18x32xi1>
    %14 = vector.shape_cast %11 : vector<1x1x32xf32> to vector<1x1x32xf32>
    %15 = vector.broadcast %14 : vector<1x1x32xf32> to vector<1x18x32xf32>
    %16 = vector.broadcast %cst_7 : f32 to vector<1x18x32xf32>
    %17 = arith.select %13, %15, %16 : vector<1x18x32xi1>, vector<1x18x32xf32>
    %c0_8 = arith.constant 0 : index
    %c0_9 = arith.constant 0 : index
    %18 = vector.load %arg2[%c0_8, %c0_9] : memref<8x32xbf16, #tpu.memory_space<vmem>>, vector<8x32xbf16>
    %c0_10 = arith.constant 0 : index
    %c1 = arith.constant 1 : index
    %c0_11 = arith.constant 0 : index
    %c0_12 = arith.constant 0 : index
    %19 = vector.load %arg1[%c0_10, %c1, %c0_11, %c0_12] : memref<1x18x18x8xf32, #tpu.memory_space<vmem>>, vector<1x16x18x8xf32>
    %20 = vector.shape_cast %19 : vector<1x16x18x8xf32> to vector<16x18x8xf32>
    %21 = vector.shape_cast %20 : vector<16x18x8xf32> to vector<288x8xf32>
    %22 = arith.truncf %21 : vector<288x8xf32> to vector<288x8xbf16>
    %cst_13 = arith.constant dense<0.000000e+00> : vector<288x32xf32>
    %23 = tpu.matmul %22, %18, %cst_13 {dimension_numbers = #tpu.dot_dimension_numbers<[1], [0], [0], [1], [0, 0, 1, 1], [], []>} : vector<288x8xbf16>, vector<8x32xbf16>, vector<288x32xf32> -> vector<288x32xf32>
    %24 = vector.shape_cast %23 : vector<288x32xf32> to vector<16x18x32xf32>
    %25 = vector.broadcast %17 : vector<1x18x32xf32> to vector<16x18x32xf32>
    %26 = arith.addf %24, %25 : vector<16x18x32xf32>
    %27 = arith.negf %26 : vector<16x18x32xf32>
    %28 = math.exp %27 : vector<16x18x32xf32>
    %cst_14 = arith.constant 1.000000e+00 : f32
    %29 = vector.broadcast %cst_14 : f32 to vector<16x18x32xf32>
    %30 = arith.addf %29, %28 : vector<16x18x32xf32>
    %31 = arith.divf %29, %30 : vector<16x18x32xf32>
    %32 = arith.mulf %26, %31 : vector<16x18x32xf32>
    %c1_15 = arith.constant 1 : index
    %c0_16 = arith.constant 0 : index
    %c0_17 = arith.constant 0 : index
    %33 = vector.load %arg13[%c1_15, %c0_16, %c0_17] : memref<18x18x32xf32, #tpu.memory_space<vmem>>, vector<16x18x32xf32>
    tpu.vector_store %arg13[%c1_15, %c0_16, %c0_17], %32 {strides = array<i32>} : memref<18x18x32xf32, #tpu.memory_space<vmem>>, vector<16x18x32xf32>,
    %c0_18 = arith.constant 0 : index
    %c0_19 = arith.constant 0 : index
    %34 = vector.load %arg4[%c0_18, %c0_19] : memref<9x32xf32, #tpu.memory_space<vmem>>, vector<9x32xf32>
    %c0_20 = arith.constant 0 : index
    %c0_21 = arith.constant 0 : index
    %35 = vector.load %arg5[%c0_20, %c0_21] : memref<1x32xf32, #tpu.memory_space<vmem>>, vector<1x32xf32>
    %c0_22 = arith.constant 0 : index
    %c0_23 = arith.constant 0 : index
    %36 = vector.load %arg11[%c0_22, %c0_23] : memref<1x8xf32, #tpu.memory_space<vmem>>, vector<1x8xf32>
    %cst_24 = arith.constant 0.000000e+00 : f32
    %37 = vector.broadcast %cst_24 : f32 to vector<1x32xf32>
    %cst_25 = arith.constant 0.000000e+00 : f32
    %38 = vector.broadcast %cst_25 : f32 to vector<16x16x32xf32>
    %c0_26 = arith.constant 0 : index
    %c0_27 = arith.constant 0 : index
    %c0_28 = arith.constant 0 : index
    %39 = vector.load %arg13[%c0_26, %c0_27, %c0_28] : memref<18x18x32xf32, #tpu.memory_space<vmem>>, vector<16x16x32xf32>
    %40 = vector.extract_strided_slice %34 {offsets = [0, 0], sizes = [1, 32], strides = [1, 1]} : vector<9x32xf32> to vector<1x32xf32>
    %41 = vector.shape_cast %40 : vector<1x32xf32> to vector<1x1x32xf32>
    %42 = vector.broadcast %41 : vector<1x1x32xf32> to vector<16x16x32xf32>
    %43 = arith.mulf %39, %42 : vector<16x16x32xf32>
    %44 = arith.addf %38, %43 : vector<16x16x32xf32>
    %c0_29 = arith.constant 0 : index
    %c1_30 = arith.constant 1 : index
    %c0_31 = arith.constant 0 : index
    %45 = vector.load %arg13[%c0_29, %c1_30, %c0_31] : memref<18x18x32xf32, #tpu.memory_space<vmem>>, vector<16x16x32xf32>
    %46 = vector.extract_strided_slice %34 {offsets = [1, 0], sizes = [1, 32], strides = [1, 1]} : vector<9x32xf32> to vector<1x32xf32>
    %47 = vector.shape_cast %46 : vector<1x32xf32> to vector<1x1x32xf32>
    %48 = vector.broadcast %47 : vector<1x1x32xf32> to vector<16x16x32xf32>
    %49 = arith.mulf %45, %48 : vector<16x16x32xf32>
    %50 = arith.addf %44, %49 : vector<16x16x32xf32>
    %c0_32 = arith.constant 0 : index
    %c2 = arith.constant 2 : index
    %c0_33 = arith.constant 0 : index
    %51 = vector.load %arg13[%c0_32, %c2, %c0_33] : memref<18x18x32xf32, #tpu.memory_space<vmem>>, vector<16x16x32xf32>
    %52 = vector.extract_strided_slice %34 {offsets = [2, 0], sizes = [1, 32], strides = [1, 1]} : vector<9x32xf32> to vector<1x32xf32>
    %53 = vector.shape_cast %52 : vector<1x32xf32> to vector<1x1x32xf32>
    %54 = vector.broadcast %53 : vector<1x1x32xf32> to vector<16x16x32xf32>
    %55 = arith.mulf %51, %54 : vector<16x16x32xf32>
    %56 = arith.addf %50, %55 : vector<16x16x32xf32>
    %c1_34 = arith.constant 1 : index
    %c0_35 = arith.constant 0 : index
    %c0_36 = arith.constant 0 : index
    %57 = vector.load %arg13[%c1_34, %c0_35, %c0_36] : memref<18x18x32xf32, #tpu.memory_space<vmem>>, vector<16x16x32xf32>
    %58 = vector.extract_strided_slice %34 {offsets = [3, 0], sizes = [1, 32], strides = [1, 1]} : vector<9x32xf32> to vector<1x32xf32>
    %59 = vector.shape_cast %58 : vector<1x32xf32> to vector<1x1x32xf32>
    %60 = vector.broadcast %59 : vector<1x1x32xf32> to vector<16x16x32xf32>
    %61 = arith.mulf %57, %60 : vector<16x16x32xf32>
    %62 = arith.addf %56, %61 : vector<16x16x32xf32>
    %c1_37 = arith.constant 1 : index
    %c1_38 = arith.constant 1 : index
    %c0_39 = arith.constant 0 : index
    %63 = vector.load %arg13[%c1_37, %c1_38, %c0_39] : memref<18x18x32xf32, #tpu.memory_space<vmem>>, vector<16x16x32xf32>
    %64 = vector.extract_strided_slice %34 {offsets = [4, 0], sizes = [1, 32], strides = [1, 1]} : vector<9x32xf32> to vector<1x32xf32>
    %65 = vector.shape_cast %64 : vector<1x32xf32> to vector<1x1x32xf32>
    %66 = vector.broadcast %65 : vector<1x1x32xf32> to vector<16x16x32xf32>
    %67 = arith.mulf %63, %66 : vector<16x16x32xf32>
    %68 = arith.addf %62, %67 : vector<16x16x32xf32>
    %c1_40 = arith.constant 1 : index
    %c2_41 = arith.constant 2 : index
    %c0_42 = arith.constant 0 : index
    %69 = vector.load %arg13[%c1_40, %c2_41, %c0_42] : memref<18x18x32xf32, #tpu.memory_space<vmem>>, vector<16x16x32xf32>
    %70 = vector.extract_strided_slice %34 {offsets = [5, 0], sizes = [1, 32], strides = [1, 1]} : vector<9x32xf32> to vector<1x32xf32>
    %71 = vector.shape_cast %70 : vector<1x32xf32> to vector<1x1x32xf32>
    %72 = vector.broadcast %71 : vector<1x1x32xf32> to vector<16x16x32xf32>
    %73 = arith.mulf %69, %72 : vector<16x16x32xf32>
    %74 = arith.addf %68, %73 : vector<16x16x32xf32>
    %c2_43 = arith.constant 2 : index
    %c0_44 = arith.constant 0 : index
    %c0_45 = arith.constant 0 : index
    %75 = vector.load %arg13[%c2_43, %c0_44, %c0_45] : memref<18x18x32xf32, #tpu.memory_space<vmem>>, vector<16x16x32xf32>
    %76 = vector.extract_strided_slice %34 {offsets = [6, 0], sizes = [1, 32], strides = [1, 1]} : vector<9x32xf32> to vector<1x32xf32>
    %77 = vector.shape_cast %76 : vector<1x32xf32> to vector<1x1x32xf32>
    %78 = vector.broadcast %77 : vector<1x1x32xf32> to vector<16x16x32xf32>
    %79 = arith.mulf %75, %78 : vector<16x16x32xf32>
    %80 = arith.addf %74, %79 : vector<16x16x32xf32>
    %c2_46 = arith.constant 2 : index
    %c1_47 = arith.constant 1 : index
    %c0_48 = arith.constant 0 : index
    %81 = vector.load %arg13[%c2_46, %c1_47, %c0_48] : memref<18x18x32xf32, #tpu.memory_space<vmem>>, vector<16x16x32xf32>
    %82 = vector.extract_strided_slice %34 {offsets = [7, 0], sizes = [1, 32], strides = [1, 1]} : vector<9x32xf32> to vector<1x32xf32>
    %83 = vector.shape_cast %82 : vector<1x32xf32> to vector<1x1x32xf32>
    %84 = vector.broadcast %83 : vector<1x1x32xf32> to vector<16x16x32xf32>
    %85 = arith.mulf %81, %84 : vector<16x16x32xf32>
    %86 = arith.addf %80, %85 : vector<16x16x32xf32>
    %c2_49 = arith.constant 2 : index
    %c2_50 = arith.constant 2 : index
    %c0_51 = arith.constant 0 : index
    %87 = vector.load %arg13[%c2_49, %c2_50, %c0_51] : memref<18x18x32xf32, #tpu.memory_space<vmem>>, vector<16x16x32xf32>
    %88 = vector.extract_strided_slice %34 {offsets = [8, 0], sizes = [1, 32], strides = [1, 1]} : vector<9x32xf32> to vector<1x32xf32>
    %89 = vector.shape_cast %88 : vector<1x32xf32> to vector<1x1x32xf32>
    %90 = vector.broadcast %89 : vector<1x1x32xf32> to vector<16x16x32xf32>
    %91 = arith.mulf %87, %90 : vector<16x16x32xf32>
    %92 = arith.addf %86, %91 : vector<16x16x32xf32>
    %93 = vector.shape_cast %35 : vector<1x32xf32> to vector<1x1x32xf32>
    %94 = vector.broadcast %93 : vector<1x1x32xf32> to vector<16x16x32xf32>
    %95 = arith.addf %92, %94 : vector<16x16x32xf32>
    %96 = arith.negf %95 : vector<16x16x32xf32>
    %97 = math.exp %96 : vector<16x16x32xf32>
    %cst_52 = arith.constant 1.000000e+00 : f32
    %98 = vector.broadcast %cst_52 : f32 to vector<16x16x32xf32>
    %99 = arith.addf %98, %97 : vector<16x16x32xf32>
    %100 = arith.divf %98, %99 : vector<16x16x32xf32>
    %101 = arith.mulf %95, %100 : vector<16x16x32xf32>
    %c0_53 = arith.constant 0 : index
    %c0_54 = arith.constant 0 : index
    %c0_55 = arith.constant 0 : index
    %102 = vector.load %arg14[%c0_53, %c0_54, %c0_55] : memref<16x16x32xf32, #tpu.memory_space<vmem>>, vector<16x16x32xf32>
    tpu.vector_store %arg14[%c0_53, %c0_54, %c0_55], %101 {strides = array<i32>} : memref<16x16x32xf32, #tpu.memory_space<vmem>>, vector<16x16x32xf32>,
    %103 = vector.shape_cast %101 : vector<16x16x32xf32> to vector<256x32xf32>
    %cst_56 = arith.constant dense<0.000000e+00> : vector<32xf32>
    %104 = vector.multi_reduction <add>, %103, %cst_56 [0] : vector<256x32xf32> to vector<32xf32>
    %105 = vector.shape_cast %104 : vector<32xf32> to vector<1x32xf32>
    %106 = arith.addf %37, %105 : vector<1x32xf32>
    %cst_57 = arith.constant 3.906250e-03 : f32
    %107 = vector.broadcast %cst_57 : f32 to vector<1x32xf32>
    %108 = arith.mulf %106, %107 : vector<1x32xf32>
    %c0_58 = arith.constant 0 : index
    %c0_59 = arith.constant 0 : index
    %109 = vector.load %arg6[%c0_58, %c0_59] : memref<32x2xf32, #tpu.memory_space<vmem>>, vector<32x2xf32>
    %cst_60 = arith.constant dense<0.000000e+00> : vector<1x2xf32>
    %110 = tpu.matmul %108, %109, %cst_60 {dimension_numbers = #tpu.dot_dimension_numbers<[1], [0], [0], [1], [0, 0, 1, 1], [], []>} : vector<1x32xf32>, vector<32x2xf32>, vector<1x2xf32> -> vector<1x2xf32>
    %c0_61 = arith.constant 0 : index
    %c0_62 = arith.constant 0 : index
    %111 = vector.load %arg7[%c0_61, %c0_62] : memref<1x2xf32, #tpu.memory_space<vmem>>, vector<1x2xf32>
    %112 = arith.addf %110, %111 : vector<1x2xf32>
    %113 = arith.negf %112 : vector<1x2xf32>
    %114 = math.exp %113 : vector<1x2xf32>
    %cst_63 = arith.constant 1.000000e+00 : f32
    %115 = vector.broadcast %cst_63 : f32 to vector<1x2xf32>
    %116 = arith.addf %115, %114 : vector<1x2xf32>
    %117 = arith.divf %115, %116 : vector<1x2xf32>
    %118 = arith.mulf %112, %117 : vector<1x2xf32>
    %c0_64 = arith.constant 0 : index
    %c0_65 = arith.constant 0 : index
    %119 = vector.load %arg8[%c0_64, %c0_65] : memref<2x32xf32, #tpu.memory_space<vmem>>, vector<2x32xf32>
    %cst_66 = arith.constant dense<0.000000e+00> : vector<1x32xf32>
    %120 = tpu.matmul %118, %119, %cst_66 {dimension_numbers = #tpu.dot_dimension_numbers<[1], [0], [0], [1], [0, 0, 1, 1], [], []>} : vector<1x2xf32>, vector<2x32xf32>, vector<1x32xf32> -> vector<1x32xf32>
    %c0_67 = arith.constant 0 : index
    %c0_68 = arith.constant 0 : index
    %121 = vector.load %arg9[%c0_67, %c0_68] : memref<1x32xf32, #tpu.memory_space<vmem>>, vector<1x32xf32>
    %122 = arith.addf %120, %121 : vector<1x32xf32>
    %123 = arith.negf %122 : vector<1x32xf32>
    %124 = math.exp %123 : vector<1x32xf32>
    %cst_69 = arith.constant 1.000000e+00 : f32
    %125 = vector.broadcast %cst_69 : f32 to vector<1x32xf32>
    %126 = arith.addf %125, %124 : vector<1x32xf32>
    %127 = arith.divf %125, %126 : vector<1x32xf32>
    %c0_70 = arith.constant 0 : index
    %c0_71 = arith.constant 0 : index
    %128 = vector.load %arg10[%c0_70, %c0_71] : memref<32x8xf32, #tpu.memory_space<vmem>>, vector<32x8xf32>
    %129 = arith.truncf %128 : vector<32x8xf32> to vector<32x8xbf16>
    %c0_72 = arith.constant 0 : index
    %c0_73 = arith.constant 0 : index
    %c0_74 = arith.constant 0 : index
    %130 = vector.load %arg14[%c0_72, %c0_73, %c0_74] : memref<16x16x32xf32, #tpu.memory_space<vmem>>, vector<16x16x32xf32>
    %131 = vector.shape_cast %130 : vector<16x16x32xf32> to vector<256x32xf32>
    %132 = vector.broadcast %127 : vector<1x32xf32> to vector<256x32xf32>
    %133 = arith.mulf %131, %132 : vector<256x32xf32>
    %134 = arith.truncf %133 : vector<256x32xf32> to vector<256x32xbf16>
    %cst_75 = arith.constant dense<0.000000e+00> : vector<256x8xf32>
    %135 = tpu.matmul %134, %129, %cst_75 {dimension_numbers = #tpu.dot_dimension_numbers<[1], [0], [0], [1], [0, 0, 1, 1], [], []>} : vector<256x32xbf16>, vector<32x8xbf16>, vector<256x8xf32> -> vector<256x8xf32>
    %136 = vector.broadcast %36 : vector<1x8xf32> to vector<256x8xf32>
    %137 = arith.addf %135, %136 : vector<256x8xf32>
    %c0_76 = arith.constant 0 : index
    %c1_77 = arith.constant 1 : index
    %c0_78 = arith.constant 0 : index
    %c0_79 = arith.constant 0 : index
    %138 = vector.load %arg1[%c0_76, %c1_77, %c0_78, %c0_79] : memref<1x18x18x8xf32, #tpu.memory_space<vmem>>, vector<1x16x18x8xf32>
    %139 = vector.shape_cast %138 : vector<1x16x18x8xf32> to vector<16x18x8xf32>
    %140 = vector.extract_strided_slice %139 {offsets = [0, 1, 0], sizes = [16, 16, 8], strides = [1, 1, 1]} : vector<16x18x8xf32> to vector<16x16x8xf32>
    %141 = vector.shape_cast %140 : vector<16x16x8xf32> to vector<256x8xf32>
    %142 = arith.addf %137, %141 : vector<256x8xf32>
    %143 = vector.shape_cast %142 : vector<256x8xf32> to vector<16x16x8xf32>
    %c0_80 = arith.constant 0 : index
    %c0_81 = arith.constant 0 : index
    %c0_82 = arith.constant 0 : index
    %c0_83 = arith.constant 0 : index
    %144 = vector.load %arg12[%c0_80, %c0_81, %c0_82, %c0_83] : memref<1x16x16x8xf32, #tpu.memory_space<vmem>>, vector<1x16x16x8xf32>
    %145 = vector.shape_cast %144 : vector<1x16x16x8xf32> to vector<16x16x8xf32>
    %146 = vector.shape_cast %143 : vector<16x16x8xf32> to vector<1x16x16x8xf32>
    tpu.vector_store %arg12[%c0_80, %c0_81, %c0_82, %c0_83], %146 {strides = array<i32>} : memref<1x16x16x8xf32, #tpu.memory_space<vmem>>, vector<1x16x16x8xf32>,
    return
  }
  func.func @transform_0(%arg0: i32) -> (i32, i32, i32, i32) {
    %c0_i32 = arith.constant 0 : i32
    %c0_i32_0 = arith.constant 0 : i32
    %c0_i32_1 = arith.constant 0 : i32
    %c0_i32_2 = arith.constant 0 : i32
    return %arg0, %c0_i32, %c0_i32_0, %c0_i32_1 : i32, i32, i32, i32
  }
  func.func @transform_1(%arg0: i32) -> (i32, i32) {
    %c0_i32 = arith.constant 0 : i32
    %c0_i32_0 = arith.constant 0 : i32
    %c0_i32_1 = arith.constant 0 : i32
    return %c0_i32, %c0_i32_0 : i32, i32
  }
  func.func @transform_2(%arg0: i32) -> (i32, i32) {
    %c0_i32 = arith.constant 0 : i32
    %c0_i32_0 = arith.constant 0 : i32
    %c0_i32_1 = arith.constant 0 : i32
    return %c0_i32, %c0_i32_0 : i32, i32
  }
  func.func @transform_3(%arg0: i32) -> (i32, i32) {
    %c0_i32 = arith.constant 0 : i32
    %c0_i32_0 = arith.constant 0 : i32
    %c0_i32_1 = arith.constant 0 : i32
    return %c0_i32, %c0_i32_0 : i32, i32
  }
  func.func @transform_4(%arg0: i32) -> (i32, i32) {
    %c0_i32 = arith.constant 0 : i32
    %c0_i32_0 = arith.constant 0 : i32
    %c0_i32_1 = arith.constant 0 : i32
    return %c0_i32, %c0_i32_0 : i32, i32
  }
  func.func @transform_5(%arg0: i32) -> (i32, i32) {
    %c0_i32 = arith.constant 0 : i32
    %c0_i32_0 = arith.constant 0 : i32
    %c0_i32_1 = arith.constant 0 : i32
    return %c0_i32, %c0_i32_0 : i32, i32
  }
  func.func @transform_6(%arg0: i32) -> (i32, i32) {
    %c0_i32 = arith.constant 0 : i32
    %c0_i32_0 = arith.constant 0 : i32
    %c0_i32_1 = arith.constant 0 : i32
    return %c0_i32, %c0_i32_0 : i32, i32
  }
  func.func @transform_7(%arg0: i32) -> (i32, i32) {
    %c0_i32 = arith.constant 0 : i32
    %c0_i32_0 = arith.constant 0 : i32
    %c0_i32_1 = arith.constant 0 : i32
    return %c0_i32, %c0_i32_0 : i32, i32
  }
  func.func @transform_8(%arg0: i32) -> (i32, i32) {
    %c0_i32 = arith.constant 0 : i32
    %c0_i32_0 = arith.constant 0 : i32
    %c0_i32_1 = arith.constant 0 : i32
    return %c0_i32, %c0_i32_0 : i32, i32
  }
  func.func @transform_9(%arg0: i32) -> (i32, i32) {
    %c0_i32 = arith.constant 0 : i32
    %c0_i32_0 = arith.constant 0 : i32
    %c0_i32_1 = arith.constant 0 : i32
    return %c0_i32, %c0_i32_0 : i32, i32
  }
  func.func @transform_10(%arg0: i32) -> (i32, i32) {
    %c0_i32 = arith.constant 0 : i32
    %c0_i32_0 = arith.constant 0 : i32
    %c0_i32_1 = arith.constant 0 : i32
    return %c0_i32, %c0_i32_0 : i32, i32
  }
  func.func @transform_11(%arg0: i32) -> (i32, i32, i32, i32) {
    %c0_i32 = arith.constant 0 : i32
    %c0_i32_0 = arith.constant 0 : i32
    %c0_i32_1 = arith.constant 0 : i32
    %c0_i32_2 = arith.constant 0 : i32
    return %arg0, %c0_i32, %c0_i32_0, %c0_i32_1 : i32, i32, i32, i32
  }
}

</mosaic_0001>

<llo_original>
// kernel: tpu_custom_call.1
$region0: #{tpu_custom_call.1}
  #allocation0 [shape = 'u32[]', space=smem, size = 0x4, offset = 0x4, fixed_abs, tag = 'smem constant byte address 0x4 - core index']
  #allocation1 [shape = 'u32[144,128]{1,0:T(1,128)}', space=vmem, size = 0x12000, scoped, tag = 'internal scratch']
  #allocation2 [shape = 'f32[18,18,32]{2,1,0:T(8,128)}', space=vmem, size = 0x36000, scoped, tag = 'scratch operand']
  #allocation3 [shape = 'f32[16,16,32]{2,1,0:T(8,128)}', space=vmem, size = 0x20000, scoped, tag = 'scratch operand']
  %s0 = inlined_call_operand.vmem [shape: f32[2,18,18,8], index: 0, kind: input, shape index: {}]
  %s1 = inlined_call_operand.vmem [shape: bf16[8,32], index: 1, kind: input, shape index: {}]
  %s2 = inlined_call_operand.vmem [shape: f32[1,32], index: 2, kind: input, shape index: {}]
  %s3 = inlined_call_operand.vmem [shape: f32[9,32], index: 3, kind: input, shape index: {}]
  %s4 = inlined_call_operand.vmem [shape: f32[1,32], index: 4, kind: input, shape index: {}]
  %s5 = inlined_call_operand.vmem [shape: f32[32,2], index: 5, kind: input, shape index: {}]
  %s6 = inlined_call_operand.vmem [shape: f32[1,2], index: 6, kind: input, shape index: {}]
  %s7 = inlined_call_operand.vmem [shape: f32[2,32], index: 7, kind: input, shape index: {}]
  %s8 = inlined_call_operand.vmem [shape: f32[1,32], index: 8, kind: input, shape index: {}]
  %s9 = inlined_call_operand.vmem [shape: f32[32,8], index: 9, kind: input, shape index: {}]
  %s10 = inlined_call_operand.vmem [shape: f32[1,8], index: 10, kind: input, shape index: {}]
  %s11 = inlined_call_operand.vmem [shape: f32[2,16,16,8], index: 11, kind: output, shape index: {}]
  %s12 = sld [smem:[#allocation0]]
  $region77: #{tpu_custom_call.1} parent=0
    _
  %s14 = ssub.s32 1, %s12
  %s15 = scalar_select 0, %s14, %s12
  loop: start=0, step=1, limit=4
  $region2: #{tpu_custom_call.1} parent=0 // loop_pre_header
    _
  $region3: #{tpu_custom_call.1} parent=0 // loop_header
    %s17 = sphi 0, %s21
    %p18 = scmp.ge.s32.totalorder %s17, 4
    %s27 = sphi 0, %s29
    %s30 = sphi 0, %s27
    %s31 = sphi 0, %s30
    %s47 = sphi 0, %s31
    %s51 = sphi 0, %s51
    %s53 = sphi 0, %s51
    %s54 = sphi 0, %s53
    %s68 = sphi 0, %s54
    %s72 = sphi 0, %s72
    %s74 = sphi 0, %s72
    %s75 = sphi 0, %s74
    %s89 = sphi 0, %s75
    %s93 = sphi 0, %s93
    %s95 = sphi 0, %s93
    %s96 = sphi 0, %s95
    %s110 = sphi 0, %s96
    %s114 = sphi 0, %s114
    %s116 = sphi 0, %s114
    %s117 = sphi 0, %s116
    %s131 = sphi 0, %s117
    %s135 = sphi 0, %s135
    %s137 = sphi 0, %s135
    %s138 = sphi 0, %s137
    %s152 = sphi 0, %s138
    %s156 = sphi 0, %s156
    %s158 = sphi 0, %s156
    %s159 = sphi 0, %s158
    %s173 = sphi 0, %s159
    %s177 = sphi 0, %s177
    %s179 = sphi 0, %s177
    %s180 = sphi 0, %s179
    %s194 = sphi 0, %s180
    %s198 = sphi 0, %s198
    %s200 = sphi 0, %s198
    %s201 = sphi 0, %s200
    %s215 = sphi 0, %s201
    %s219 = sphi 0, %s219
    %s221 = sphi 0, %s219
    %s222 = sphi 0, %s221
    %s236 = sphi 0, %s222
    %s240 = sphi 0, %s240
    %s242 = sphi 0, %s240
    %s243 = sphi 0, %s242
    %s257 = sphi 0, %s243
    %s263 = sphi 0, %s265
    %s266 = sphi 0, %s263
    %s267 = sphi 0, %s266
    %s283 = sphi 0, %s267
  $region4: #{tpu_custom_call.1} parent=0 // loop_header_branch
    %20 = sbr.rel (%p18) target = $region8
  $region5: #{tpu_custom_call.1} parent=0 // loop_body
    %s22 = ssub.s32 %s17, 1
    %s23 = ssub.s32 %s17, 2
    %s24 = sadd.s32 %s17, 1
    %s25 = ssub.s32 %s17, %s24
    %p26 = scmp.eq.s32.totalorder %s25, 0
    %s28 = sadd.s32 %s27, 1
    %s29 = scalar_select %p26, %s27, %s28
    %p32 = pneg %p26
    %p33 = scmp.eq.s32.totalorder %s17, 1
    %p34 = por %p32, %p33
    %p35 = scmp.ne.s32.totalorder %s27, %s30
    %p36 = scmp.eq.s32.totalorder %s17, 0
    %p37 = por %p35, %p36
    %p38 = scmp.ne.s32.totalorder %s27, %s30
    %p39 = scmp.eq.s32.totalorder %s22, 1
    %p40 = por %p38, %p39
    %p41 = scmp.ne.s32.totalorder %s30, %s31
    %p42 = scmp.eq.s32.totalorder %s22, 0
    %p43 = por %p41, %p42
    %p44 = scmp.ne.s32.totalorder %s30, %s31
    %p45 = scmp.eq.s32.totalorder %s23, 1
    %p46 = por %p44, %p45
    %p48 = scmp.ne.s32.totalorder %s31, %s47
    %p49 = scmp.eq.s32.totalorder %s23, 0
    %p50 = por %p48, %p49
    %s52 = sadd.s32 %s51, 1
    %p55 = scmp.eq.s32.totalorder %s17, 1
    %p56 = scmp.ne.s32.totalorder %s51, %s53
    %p57 = scmp.eq.s32.totalorder %s17, 0
    %p58 = por %p56, %p57
    %p59 = scmp.ne.s32.totalorder %s51, %s53
    %p60 = scmp.eq.s32.totalorder %s22, 1
    %p61 = por %p59, %p60
    %p62 = scmp.ne.s32.totalorder %s53, %s54
    %p63 = scmp.eq.s32.totalorder %s22, 0
    %p64 = por %p62, %p63
    %p65 = scmp.ne.s32.totalorder %s53, %s54
    %p66 = scmp.eq.s32.totalorder %s23, 1
    %p67 = por %p65, %p66
    %p69 = scmp.ne.s32.totalorder %s54, %s68
    %p70 = scmp.eq.s32.totalorder %s23, 0
    %p71 = por %p69, %p70
    %s73 = sadd.s32 %s72, 1
    %p76 = scmp.eq.s32.totalorder %s17, 1
    %p77 = scmp.ne.s32.totalorder %s72, %s74
    %p78 = scmp.eq.s32.totalorder %s17, 0
    %p79 = por %p77, %p78
    %p80 = scmp.ne.s32.totalorder %s72, %s74
    %p81 = scmp.eq.s32.totalorder %s22, 1
    %p82 = por %p80, %p81
    %p83 = scmp.ne.s32.totalorder %s74, %s75
    %p84 = scmp.eq.s32.totalorder %s22, 0
    %p85 = por %p83, %p84
    %p86 = scmp.ne.s32.totalorder %s74, %s75
    %p87 = scmp.eq.s32.totalorder %s23, 1
    %p88 = por %p86, %p87
    %p90 = scmp.ne.s32.totalorder %s75, %s89
    %p91 = scmp.eq.s32.totalorder %s23, 0
    %p92 = por %p90, %p91
    %s94 = sadd.s32 %s93, 1
    %p97 = scmp.eq.s32.totalorder %s17, 1
    %p98 = scmp.ne.s32.totalorder %s93, %s95
    %p99 = scmp.eq.s32.totalorder %s17, 0
    %p100 = por %p98, %p99
    %p101 = scmp.ne.s32.totalorder %s93, %s95
    %p102 = scmp.eq.s32.totalorder %s22, 1
    %p103 = por %p101, %p102
    %p104 = scmp.ne.s32.totalorder %s95, %s96
    %p105 = scmp.eq.s32.totalorder %s22, 0
    %p106 = por %p104, %p105
    %p107 = scmp.ne.s32.totalorder %s95, %s96
    %p108 = scmp.eq.s32.totalorder %s23, 1
    %p109 = por %p107, %p108
    %p111 = scmp.ne.s32.totalorder %s96, %s110
    %p112 = scmp.eq.s32.totalorder %s23, 0
    %p113 = por %p111, %p112
    %s115 = sadd.s32 %s114, 1
    %p118 = scmp.eq.s32.totalorder %s17, 1
    %p119 = scmp.ne.s32.totalorder %s114, %s116
    %p120 = scmp.eq.s32.totalorder %s17, 0
    %p121 = por %p119, %p120
    %p122 = scmp.ne.s32.totalorder %s114, %s116
    %p123 = scmp.eq.s32.totalorder %s22, 1
    %p124 = por %p122, %p123
    %p125 = scmp.ne.s32.totalorder %s116, %s117
    %p126 = scmp.eq.s32.totalorder %s22, 0
    %p127 = por %p125, %p126
    %p128 = scmp.ne.s32.totalorder %s116, %s117
    %p129 = scmp.eq.s32.totalorder %s23, 1
    %p130 = por %p128, %p129
    %p132 = scmp.ne.s32.totalorder %s117, %s131
    %p133 = scmp.eq.s32.totalorder %s23, 0
    %p134 = por %p132, %p133
    %s136 = sadd.s32 %s135, 1
    %p139 = scmp.eq.s32.totalorder %s17, 1
    %p140 = scmp.ne.s32.totalorder %s135, %s137
    %p141 = scmp.eq.s32.totalorder %s17, 0
    %p142 = por %p140, %p141
    %p143 = scmp.ne.s32.totalorder %s135, %s137
    %p144 = scmp.eq.s32.totalorder %s22, 1
    %p145 = por %p143, %p144
    %p146 = scmp.ne.s32.totalorder %s137, %s138
    %p147 = scmp.eq.s32.totalorder %s22, 0
    %p148 = por %p146, %p147
    %p149 = scmp.ne.s32.totalorder %s137, %s138
    %p150 = scmp.eq.s32.totalorder %s23, 1
    %p151 = por %p149, %p150
    %p153 = scmp.ne.s32.totalorder %s138, %s152
    %p154 = scmp.eq.s32.totalorder %s23, 0
    %p155 = por %p153, %p154
    %s157 = sadd.s32 %s156, 1
    %p160 = scmp.eq.s32.totalorder %s17, 1
    %p161 = scmp.ne.s32.totalorder %s156, %s158
    %p162 = scmp.eq.s32.totalorder %s17, 0
    %p163 = por %p161, %p162
    %p164 = scmp.ne.s32.totalorder %s156, %s158
    %p165 = scmp.eq.s32.totalorder %s22, 1
    %p166 = por %p164, %p165
    %p167 = scmp.ne.s32.totalorder %s158, %s159
    %p168 = scmp.eq.s32.totalorder %s22, 0
    %p169 = por %p167, %p168
    %p170 = scmp.ne.s32.totalorder %s158, %s159
    %p171 = scmp.eq.s32.totalorder %s23, 1
    %p172 = por %p170, %p171
    %p174 = scmp.ne.s32.totalorder %s159, %s173
    %p175 = scmp.eq.s32.totalorder %s23, 0
    %p176 = por %p174, %p175
    %s178 = sadd.s32 %s177, 1
    %p181 = scmp.eq.s32.totalorder %s17, 1
    %p182 = scmp.ne.s32.totalorder %s177, %s179
    %p183 = scmp.eq.s32.totalorder %s17, 0
    %p184 = por %p182, %p183
    %p185 = scmp.ne.s32.totalorder %s177, %s179
    %p186 = scmp.eq.s32.totalorder %s22, 1
    %p187 = por %p185, %p186
    %p188 = scmp.ne.s32.totalorder %s179, %s180
    %p189 = scmp.eq.s32.totalorder %s22, 0
    %p190 = por %p188, %p189
    %p191 = scmp.ne.s32.totalorder %s179, %s180
    %p192 = scmp.eq.s32.totalorder %s23, 1
    %p193 = por %p191, %p192
    %p195 = scmp.ne.s32.totalorder %s180, %s194
    %p196 = scmp.eq.s32.totalorder %s23, 0
    %p197 = por %p195, %p196
    %s199 = sadd.s32 %s198, 1
    %p202 = scmp.eq.s32.totalorder %s17, 1
    %p203 = scmp.ne.s32.totalorder %s198, %s200
    %p204 = scmp.eq.s32.totalorder %s17, 0
    %p205 = por %p203, %p204
    %p206 = scmp.ne.s32.totalorder %s198, %s200
    %p207 = scmp.eq.s32.totalorder %s22, 1
    %p208 = por %p206, %p207
    %p209 = scmp.ne.s32.totalorder %s200, %s201
    %p210 = scmp.eq.s32.totalorder %s22, 0
    %p211 = por %p209, %p210
    %p212 = scmp.ne.s32.totalorder %s200, %s201
    %p213 = scmp.eq.s32.totalorder %s23, 1
    %p214 = por %p212, %p213
    %p216 = scmp.ne.s32.totalorder %s201, %s215
    %p217 = scmp.eq.s32.totalorder %s23, 0
    %p218 = por %p216, %p217
    %s220 = sadd.s32 %s219, 1
    %p223 = scmp.eq.s32.totalorder %s17, 1
    %p224 = scmp.ne.s32.totalorder %s219, %s221
    %p225 = scmp.eq.s32.totalorder %s17, 0
    %p226 = por %p224, %p225
    %p227 = scmp.ne.s32.totalorder %s219, %s221
    %p228 = scmp.eq.s32.totalorder %s22, 1
    %p229 = por %p227, %p228
    %p230 = scmp.ne.s32.totalorder %s221, %s222
    %p231 = scmp.eq.s32.totalorder %s22, 0
    %p232 = por %p230, %p231
    %p233 = scmp.ne.s32.totalorder %s221, %s222
    %p234 = scmp.eq.s32.totalorder %s23, 1
    %p235 = por %p233, %p234
    %p237 = scmp.ne.s32.totalorder %s222, %s236
    %p238 = scmp.eq.s32.totalorder %s23, 0
    %p239 = por %p237, %p238
    %s241 = sadd.s32 %s240, 1
    %p244 = scmp.eq.s32.totalorder %s17, 1
    %p245 = scmp.ne.s32.totalorder %s240, %s242
    %p246 = scmp.eq.s32.totalorder %s17, 0
    %p247 = por %p245, %p246
    %p248 = scmp.ne.s32.totalorder %s240, %s242
    %p249 = scmp.eq.s32.totalorder %s22, 1
    %p250 = por %p248, %p249
    %p251 = scmp.ne.s32.totalorder %s242, %s243
    %p252 = scmp.eq.s32.totalorder %s22, 0
    %p253 = por %p251, %p252
    %p254 = scmp.ne.s32.totalorder %s242, %s243
    %p255 = scmp.eq.s32.totalorder %s23, 1
    %p256 = por %p254, %p255
    %p258 = scmp.ne.s32.totalorder %s243, %s257
    %p259 = scmp.eq.s32.totalorder %s23, 0
    %p260 = por %p258, %p259
    %s261 = ssub.s32 %s17, %s24
    %p262 = scmp.eq.s32.totalorder %s261, 0
    %s264 = sadd.s32 %s263, 1
    %s265 = scalar_select %p262, %s263, %s264
    %p268 = pneg %p262
    %p269 = scmp.eq.s32.totalorder %s17, 1
    %p270 = por %p268, %p269
    %p271 = scmp.ne.s32.totalorder %s263, %s266
    %p272 = scmp.eq.s32.totalorder %s17, 0
    %p273 = por %p271, %p272
    %p274 = scmp.ne.s32.totalorder %s263, %s266
    %p275 = scmp.eq.s32.totalorder %s22, 1
    %p276 = por %p274, %p275
    %p277 = scmp.ne.s32.totalorder %s266, %s267
    %p278 = scmp.eq.s32.totalorder %s22, 0
    %p279 = por %p277, %p278
    %p280 = scmp.ne.s32.totalorder %s266, %s267
    %p281 = scmp.eq.s32.totalorder %s23, 1
    %p282 = por %p280, %p281
    %p284 = scmp.ne.s32.totalorder %s267, %s283
    %p285 = scmp.eq.s32.totalorder %s23, 0
    %p286 = por %p284, %p285
    %p287 = scmp.le.s32.totalorder 1, %s17
    %p288 = scmp.lt.s32.totalorder %s17, 3
    %p289 = pnand %p287, %p288
    %p290 = pneg %p289
    // Predicated region
    $region9: #{tpu_custom_call.1} parent=5 // pred_check
      _
    $region10: #{tpu_custom_call.1} parent=5 // pred_check_branch
      %292 = sbr.rel (%p289) target = $region12
    $region11: #{tpu_custom_call.1} parent=5 // pred_region
      %s293 = ssub.s32 %s17, 1
      // Predicated region
      $region13: #{tpu_custom_call.1} parent=11 // pred_check
        %p294 = pneg %p64
      $region14: #{tpu_custom_call.1} parent=11 // pred_check_branch
        %296 = sbr.rel (%p294) target = $region16
      $region15: #{tpu_custom_call.1} parent=11 // pred_region
        _
      $region16: #{tpu_custom_call.1} parent=11 // pred_fallthru
        _
      // Predicated region
      $region17: #{tpu_custom_call.1} parent=11 // pred_check
        %p297 = pneg %p85
      $region18: #{tpu_custom_call.1} parent=11 // pred_check_branch
        %299 = sbr.rel (%p297) target = $region20
      $region19: #{tpu_custom_call.1} parent=11 // pred_region
        _
      $region20: #{tpu_custom_call.1} parent=11 // pred_fallthru
        _
      // Predicated region
      $region21: #{tpu_custom_call.1} parent=11 // pred_check
        %p300 = pneg %p106
      $region22: #{tpu_custom_call.1} parent=11 // pred_check_branch
        %302 = sbr.rel (%p300) target = $region24
      $region23: #{tpu_custom_call.1} parent=11 // pred_region
        _
      $region24: #{tpu_custom_call.1} parent=11 // pred_fallthru
        _
      // Predicated region
      $region25: #{tpu_custom_call.1} parent=11 // pred_check
        %p303 = pneg %p127
      $region26: #{tpu_custom_call.1} parent=11 // pred_check_branch
        %305 = sbr.rel (%p303) target = $region28
      $region27: #{tpu_custom_call.1} parent=11 // pred_region
        _
      $region28: #{tpu_custom_call.1} parent=11 // pred_fallthru
        _
      // Predicated region
      $region29: #{tpu_custom_call.1} parent=11 // pred_check
        %p306 = pneg %p148
      $region30: #{tpu_custom_call.1} parent=11 // pred_check_branch
        %308 = sbr.rel (%p306) target = $region32
      $region31: #{tpu_custom_call.1} parent=11 // pred_region
        _
      $region32: #{tpu_custom_call.1} parent=11 // pred_fallthru
        _
      // Predicated region
      $region33: #{tpu_custom_call.1} parent=11 // pred_check
        %p309 = pneg %p169
      $region34: #{tpu_custom_call.1} parent=11 // pred_check_branch
        %311 = sbr.rel (%p309) target = $region36
      $region35: #{tpu_custom_call.1} parent=11 // pred_region
        _
      $region36: #{tpu_custom_call.1} parent=11 // pred_fallthru
        _
      // Predicated region
      $region37: #{tpu_custom_call.1} parent=11 // pred_check
        %p312 = pneg %p190
      $region38: #{tpu_custom_call.1} parent=11 // pred_check_branch
        %314 = sbr.rel (%p312) target = $region40
      $region39: #{tpu_custom_call.1} parent=11 // pred_region
        _
      $region40: #{tpu_custom_call.1} parent=11 // pred_fallthru
        _
      // Predicated region
      $region41: #{tpu_custom_call.1} parent=11 // pred_check
        %p315 = pneg %p211
      $region42: #{tpu_custom_call.1} parent=11 // pred_check_branch
        %317 = sbr.rel (%p315) target = $region44
      $region43: #{tpu_custom_call.1} parent=11 // pred_region
        _
      $region44: #{tpu_custom_call.1} parent=11 // pred_fallthru
        _
      // Predicated region
      $region45: #{tpu_custom_call.1} parent=11 // pred_check
        %p318 = pneg %p232
      $region46: #{tpu_custom_call.1} parent=11 // pred_check_branch
        %320 = sbr.rel (%p318) target = $region48
      $region47: #{tpu_custom_call.1} parent=11 // pred_region
        _
      $region48: #{tpu_custom_call.1} parent=11 // pred_fallthru
        _
      // Predicated region
      $region49: #{tpu_custom_call.1} parent=11 // pred_check
        %p321 = pneg %p253
      $region50: #{tpu_custom_call.1} parent=11 // pred_check_branch
        %323 = sbr.rel (%p321) target = $region52
      $region51: #{tpu_custom_call.1} parent=11 // pred_region
        _
      $region52: #{tpu_custom_call.1} parent=11 // pred_fallthru
        _
    $region12: #{tpu_custom_call.1} parent=5 // pred_fallthru
      _
    %p324 = scmp.lt.s32.totalorder %s17, 2
    // Predicated region
    $region53: #{tpu_custom_call.1} parent=5 // pred_check
      %p325 = pneg %p324
    $region54: #{tpu_custom_call.1} parent=5 // pred_check_branch
      %327 = sbr.rel (%p325) target = $region56
    $region55: #{tpu_custom_call.1} parent=5 // pred_region
      // Predicated region
      $region57: #{tpu_custom_call.1} parent=55 // pred_check
        %p328 = pneg %p37
      $region58: #{tpu_custom_call.1} parent=55 // pred_check_branch
        %330 = sbr.rel (%p328) target = $region60
      $region59: #{tpu_custom_call.1} parent=55 // pred_region
        %p331 = scmp.lt.s32.totalorder %s17, 1
        %s332 = scalar_select %p331, %s17, 1
        %s333 = smul.addr %s332, 54
        %s334 = smul.addr %s333, 8
        %s335 = scalar_lea.vmem %s0, %s334
      $region60: #{tpu_custom_call.1} parent=55 // pred_fallthru
        _
    $region56: #{tpu_custom_call.1} parent=5 // pred_fallthru
      _
    %p336 = scmp.le.s32.totalorder 1, %s17
    %p337 = scmp.lt.s32.totalorder %s17, 3
    %p338 = pnand %p336, %p337
    %p339 = pneg %p338
    // Predicated region
    $region61: #{tpu_custom_call.1} parent=5 // pred_check
      _
    $region62: #{tpu_custom_call.1} parent=5 // pred_check_branch
      %341 = sbr.rel (%p338) target = $region64
    $region63: #{tpu_custom_call.1} parent=5 // pred_region
      %s342 = ssub.s32 %s17, 1
      %p343 = scmp.lt.s32.totalorder %s22, 1
      %s344 = scalar_select %p343, %s22, 1
      %s345 = smul.addr %s344, 54
      %s346 = smul.addr %s345, 8
      %s347 = scalar_lea.vmem %s0, %s346
      %p348 = pneg %p43
      %p349 = pneg %p40
      %p350 = pneg %p64
      %p351 = pneg %p61
      %p352 = pneg %p85
      %p353 = pneg %p82
      %p354 = pneg %p106
      %p355 = pneg %p103
      %p356 = pneg %p127
      %p357 = pneg %p124
      %p358 = pneg %p148
      %p359 = pneg %p145
      %p360 = pneg %p169
      %p361 = pneg %p166
      %p362 = pneg %p190
      %p363 = pneg %p187
      %p364 = pneg %p211
      %p365 = pneg %p208
      %p366 = pneg %p232
      %p367 = pneg %p229
      %p368 = pneg %p253
      %p369 = pneg %p250
      %p370 = pneg %p279
      %p371 = pneg %p276
      %p372 = scmp.lt.s32.totalorder %s22, 1
      %s373 = scalar_select %p372, %s22, 1
      %s374 = smul.addr %s373, 32
      %s375 = smul.addr %s374, 8
      %s376 = scalar_lea.vmem %s11, %s375
      %p377 = scmp.lt.s32.totalorder %s22, 1
      %s378 = scalar_select %p377, %s22, 1
      %s379 = smul.addr %s378, 54
      %s380 = smul.addr %s379, 8
      %s381 = scalar_lea.vmem %s0, %s380
      %p382 = scmp.lt.s32.totalorder %s22, 1
      %s383 = scalar_select %p382, %s22, 1
      %s384 = smul.addr %s383, 32
      %s385 = smul.addr %s384, 8
      %s386 = scalar_lea.vmem %s11, %s385
      %vm388 = vcmask 261120
      %389 = vst.msk [vmem:[#allocation2] sm:$0xff] %vm388, 0.0
      %390 = vst.msk [vmem:[#allocation2 + $0x8] sm:$0xff] %vm388, 0.0
      %vm391 = vcmask 254976
      %392 = vst.msk [vmem:[#allocation2 + $0x10] sm:$0x3] %vm391, 0.0
      %s393 = scalar_lea.vmem [#allocation2], 408
      %394 = vst.msk [vmem:[%s393] sm:$0xff] %vm388, 0.0
      %395 = vst.msk [vmem:[%s393 + $0x8] sm:$0xff] %vm388, 0.0
      %396 = vst.msk [vmem:[%s393 + $0x10] sm:$0x3] %vm391, 0.0
      %v397 = vlaneseq
      %v398 = vshrl.u32 %v397, 7
      %v399 = vadd.s32 %v398, 8
      %v400 = vadd.s32 %v398, 16
      %vm401 = vcmp.ge.s32.totalorder %v398, 1
      %vm402 = vcmp.ge.s32.totalorder %v399, 1
      %vm403 = vcmp.ge.s32.totalorder %v400, 1
      %vm404 = vcmp.lt.s32.totalorder %v398, 17
      %vm405 = vcmp.lt.s32.totalorder %v399, 17
      %vm406 = vcmp.lt.s32.totalorder %v400, 17
      %vm407 = vmand %vm401, %vm404
      %vm408 = vmand %vm402, %vm405
      %vm409 = vmand %vm403, %vm406
      %v410 = vld [vmem:[%s2] sm:$0x1]
      %v411 = vsel %vm407, 1, 0
      %v412 = vsel %vm408, 1, 0
      %v413 = vsel %vm409, 1, 0
      %vm414 = vcmp.eq.s32.totalorder %v411, 1
      %vm415 = vcmp.eq.s32.totalorder %v412, 1
      %vm416 = vcmp.eq.s32.totalorder %v413, 1
      %v418 = vlaneseq
      %v419 = vshrl.u32 %v418, 7
      %v420 = vsub.s32 0, %v419
      %v421 = vrot.slane %v410, %v420
      %v423 = vsel %vm414, %v421, 0.0
      %v424 = vsel %vm415, %v421, 0.0
      %v425 = vsel %vm416, %v421, 0.0
      %v426 = vld [vmem:[%s1] sm:$0xf]
      %s427 = scalar_lea.vmem %s381, 24
      %v428 = vld [vmem:[%s427] sm:$0xff]
      %v429 = vld [vmem:[%s427 + $0x8] sm:$0xff]
      %v430 = vld [vmem:[%s427 + $0x10] sm:$0x3]
      %v431 = vld [vmem:[%s427 + $0x18] sm:$0xff]
      %v432 = vld [vmem:[%s427 + $0x20] sm:$0xff]
      %v433 = vld [vmem:[%s427 + $0x28] sm:$0x3]
      %v434 = vld [vmem:[%s427 + $0x30] sm:$0xff]
      %v435 = vld [vmem:[%s427 + $0x38] sm:$0xff]
      %v436 = vld [vmem:[%s427 + $0x40] sm:$0x3]
      %v437 = vld [vmem:[%s427 + $0x48] sm:$0xff]
      %v438 = vld [vmem:[%s427 + $0x50] sm:$0xff]
      %v439 = vld [vmem:[%s427 + $0x58] sm:$0x3]
      %v440 = vld [vmem:[%s427 + $0x60] sm:$0xff]
      %v441 = vld [vmem:[%s427 + $0x68] sm:$0xff]
      %v442 = vld [vmem:[%s427 + $0x70] sm:$0x3]
      %v443 = vld [vmem:[%s427 + $0x78] sm:$0xff]
      %v444 = vld [vmem:[%s427 + $0x80] sm:$0xff]
      %v445 = vld [vmem:[%s427 + $0x88] sm:$0x3]
      %v446 = vld [vmem:[%s427 + $0x90] sm:$0xff]
      %v447 = vld [vmem:[%s427 + $0x98] sm:$0xff]
      %v448 = vld [vmem:[%s427 + $0xa0] sm:$0x3]
      %v449 = vld [vmem:[%s427 + $0xa8] sm:$0xff]
      %v450 = vld [vmem:[%s427 + $0xb0] sm:$0xff]
      %v451 = vld [vmem:[%s427 + $0xb8] sm:$0x3]
      %v452 = vld [vmem:[%s427 + $0xc0] sm:$0xff]
      %v453 = vld [vmem:[%s427 + $0xc8] sm:$0xff]
      %v454 = vld [vmem:[%s427 + $0xd0] sm:$0x3]
      %v455 = vld [vmem:[%s427 + $0xd8] sm:$0xff]
      %v456 = vld [vmem:[%s427 + $0xe0] sm:$0xff]
      %v457 = vld [vmem:[%s427 + $0xe8] sm:$0x3]
      %v458 = vld [vmem:[%s427 + $0xf0] sm:$0xff]
      %v459 = vld [vmem:[%s427 + $0xf8] sm:$0xff]
      %v460 = vld [vmem:[%s427 + $0x100] sm:$0x3]
      %v461 = vld [vmem:[%s427 + $0x108] sm:$0xff]
      %v462 = vld [vmem:[%s427 + $0x110] sm:$0xff]
      %v463 = vld [vmem:[%s427 + $0x118] sm:$0x3]
      %v464 = vld [vmem:[%s427 + $0x120] sm:$0xff]
      %v465 = vld [vmem:[%s427 + $0x128] sm:$0xff]
      %v466 = vld [vmem:[%s427 + $0x130] sm:$0x3]
      %v467 = vld [vmem:[%s427 + $0x138] sm:$0xff]
      %v468 = vld [vmem:[%s427 + $0x140] sm:$0xff]
      %v469 = vld [vmem:[%s427 + $0x148] sm:$0x3]
      %v470 = vld [vmem:[%s427 + $0x150] sm:$0xff]
      %v471 = vld [vmem:[%s427 + $0x158] sm:$0xff]
      %v472 = vld [vmem:[%s427 + $0x160] sm:$0x3]
      %v473 = vld [vmem:[%s427 + $0x168] sm:$0xff]
      %v474 = vld [vmem:[%s427 + $0x170] sm:$0xff]
      %v475 = vld [vmem:[%s427 + $0x178] sm:$0x3]
      %v524 = vcombine.high %v428, %v428
      %v526 = vunpack.c.l.s4 1983009808
      %v527 = vunpack.c.0.s8 %v526
      %v528 = vlaneseq
      %v529 = vshrl.u32 %v528, 7
      %v530 = vsub.s32 %v527, %v529
      %v531 = vrot.slane %v428, %v530
      %v533 = vunpack.c.l.s4 1983009808
      %v534 = vunpack.c.0.s8 %v533
      %v535 = vlaneseq
      %v536 = vshrl.u32 %v535, 7
      %v537 = vsub.s32 %v534, %v536
      %v538 = vrot.slane %v524, %v537
      %v539 = vcombine.high %v531, %v531
      %v540 = vcombine.high %v538, %v538
      %v541 = vcombine.high %v429, %v429
      %v543 = vunpack.c.l.s4 1983009808
      %v544 = vunpack.c.0.s8 %v543
      %v545 = vlaneseq
      %v546 = vshrl.u32 %v545, 7
      %v547 = vsub.s32 %v544, %v546
      %v548 = vrot.slane %v429, %v547
      %v550 = vunpack.c.l.s4 1983009808
      %v551 = vunpack.c.0.s8 %v550
      %v552 = vlaneseq
      %v553 = vshrl.u32 %v552, 7
      %v554 = vsub.s32 %v551, %v553
      %v555 = vrot.slane %v541, %v554
      %v556 = vcombine.high %v548, %v548
      %v557 = vcombine.high %v555, %v555
      %v559 = vunpack.c.l.s4 1983009808
      %v560 = vunpack.c.0.s8 %v559
      %v561 = vlaneseq
      %v562 = vshrl.u32 %v561, 7
      %v563 = vsub.s32 %v560, %v562
      %v564 = vrot.slane %v430, %v563
      %v565 = vcombine.high %v431, %v431
      %v567 = vunpack.c.l.s4 1983009808
      %v568 = vunpack.c.0.s8 %v567
      %v569 = vlaneseq
      %v570 = vshrl.u32 %v569, 7
      %v571 = vsub.s32 %v568, %v570
      %v572 = vrot.slane %v431, %v571
      %v574 = vunpack.c.l.s4 1983009808
      %v575 = vunpack.c.0.s8 %v574
      %v576 = vlaneseq
      %v577 = vshrl.u32 %v576, 7
      %v578 = vsub.s32 %v575, %v577
      %v579 = vrot.slane %v565, %v578
      %v580 = vcombine.high %v572, %v572
      %v581 = vcombine.high %v579, %v579
      %v582 = vcombine.high %v432, %v432
      %v584 = vunpack.c.l.s4 1983009808
      %v585 = vunpack.c.0.s8 %v584
      %v586 = vlaneseq
      %v587 = vshrl.u32 %v586, 7
      %v588 = vsub.s32 %v585, %v587
      %v589 = vrot.slane %v432, %v588
      %v591 = vunpack.c.l.s4 1983009808
      %v592 = vunpack.c.0.s8 %v591
      %v593 = vlaneseq
      %v594 = vshrl.u32 %v593, 7
      %v595 = vsub.s32 %v592, %v594
      %v596 = vrot.slane %v582, %v595
      %v597 = vcombine.high %v589, %v589
      %v598 = vcombine.high %v596, %v596
      %v600 = vunpack.c.l.s4 1983009808
      %v601 = vunpack.c.0.s8 %v600
      %v602 = vlaneseq
      %v603 = vshrl.u32 %v602, 7
      %v604 = vsub.s32 %v601, %v603
      %v605 = vrot.slane %v433, %v604
      %v606 = vcombine.high %v434, %v434
      %v608 = vunpack.c.l.s4 1983009808
      %v609 = vunpack.c.0.s8 %v608
      %v610 = vlaneseq
      %v611 = vshrl.u32 %v610, 7
      %v612 = vsub.s32 %v609, %v611
      %v613 = vrot.slane %v434, %v612
      %v615 = vunpack.c.l.s4 1983009808
      %v616 = vunpack.c.0.s8 %v615
      %v617 = vlaneseq
      %v618 = vshrl.u32 %v617, 7
      %v619 = vsub.s32 %v616, %v618
      %v620 = vrot.slane %v606, %v619
      %v621 = vcombine.high %v613, %v613
      %v622 = vcombine.high %v620, %v620
      %v623 = vcombine.high %v435, %v435
      %v625 = vunpack.c.l.s4 1983009808
      %v626 = vunpack.c.0.s8 %v625
      %v627 = vlaneseq
      %v628 = vshrl.u32 %v627, 7
      %v629 = vsub.s32 %v626, %v628
      %v630 = vrot.slane %v435, %v629
      %v632 = vunpack.c.l.s4 1983009808
      %v633 = vunpack.c.0.s8 %v632
      %v634 = vlaneseq
      %v635 = vshrl.u32 %v634, 7
      %v636 = vsub.s32 %v633, %v635
      %v637 = vrot.slane %v623, %v636
      %v638 = vcombine.high %v630, %v630
      %v639 = vcombine.high %v637, %v637
      %v641 = vunpack.c.l.s4 1983009808
      %v642 = vunpack.c.0.s8 %v641
      %v643 = vlaneseq
      %v644 = vshrl.u32 %v643, 7
      %v645 = vsub.s32 %v642, %v644
      %v646 = vrot.slane %v436, %v645
      %v647 = vcombine.high %v437, %v437
      %v649 = vunpack.c.l.s4 1983009808
      %v650 = vunpack.c.0.s8 %v649
      %v651 = vlaneseq
      %v652 = vshrl.u32 %v651, 7
      %v653 = vsub.s32 %v650, %v652
      %v654 = vrot.slane %v437, %v653
      %v656 = vunpack.c.l.s4 1983009808
      %v657 = vunpack.c.0.s8 %v656
      %v658 = vlaneseq
      %v659 = vshrl.u32 %v658, 7
      %v660 = vsub.s32 %v657, %v659
      %v661 = vrot.slane %v647, %v660
      %v662 = vcombine.high %v654, %v654
      %v663 = vcombine.high %v661, %v661
      %v664 = vcombine.high %v438, %v438
      %v666 = vunpack.c.l.s4 1983009808
      %v667 = vunpack.c.0.s8 %v666
      %v668 = vlaneseq
      %v669 = vshrl.u32 %v668, 7
      %v670 = vsub.s32 %v667, %v669
      %v671 = vrot.slane %v438, %v670
      %v673 = vunpack.c.l.s4 1983009808
      %v674 = vunpack.c.0.s8 %v673
      %v675 = vlaneseq
      %v676 = vshrl.u32 %v675, 7
      %v677 = vsub.s32 %v674, %v676
      %v678 = vrot.slane %v664, %v677
      %v679 = vcombine.high %v671, %v671
      %v680 = vcombine.high %v678, %v678
      %v682 = vunpack.c.l.s4 1983009808
      %v683 = vunpack.c.0.s8 %v682
      %v684 = vlaneseq
      %v685 = vshrl.u32 %v684, 7
      %v686 = vsub.s32 %v683, %v685
      %v687 = vrot.slane %v439, %v686
      %v688 = vcombine.high %v440, %v440
      %v690 = vunpack.c.l.s4 1983009808
      %v691 = vunpack.c.0.s8 %v690
      %v692 = vlaneseq
      %v693 = vshrl.u32 %v692, 7
      %v694 = vsub.s32 %v691, %v693
      %v695 = vrot.slane %v440, %v694
      %v697 = vunpack.c.l.s4 1983009808
      %v698 = vunpack.c.0.s8 %v697
      %v699 = vlaneseq
      %v700 = vshrl.u32 %v699, 7
      %v701 = vsub.s32 %v698, %v700
      %v702 = vrot.slane %v688, %v701
      %v703 = vcombine.high %v695, %v695
      %v704 = vcombine.high %v702, %v702
      %v705 = vcombine.high %v441, %v441
      %v707 = vunpack.c.l.s4 1983009808
      %v708 = vunpack.c.0.s8 %v707
      %v709 = vlaneseq
      %v710 = vshrl.u32 %v709, 7
      %v711 = vsub.s32 %v708, %v710
      %v712 = vrot.slane %v441, %v711
      %v714 = vunpack.c.l.s4 1983009808
      %v715 = vunpack.c.0.s8 %v714
      %v716 = vlaneseq
      %v717 = vshrl.u32 %v716, 7
      %v718 = vsub.s32 %v715, %v717
      %v719 = vrot.slane %v705, %v718
      %v720 = vcombine.high %v712, %v712
      %v721 = vcombine.high %v719, %v719
      %v723 = vunpack.c.l.s4 1983009808
      %v724 = vunpack.c.0.s8 %v723
      %v725 = vlaneseq
      %v726 = vshrl.u32 %v725, 7
      %v727 = vsub.s32 %v724, %v726
      %v728 = vrot.slane %v442, %v727
      %v729 = vcombine.high %v443, %v443
      %v731 = vunpack.c.l.s4 1983009808
      %v732 = vunpack.c.0.s8 %v731
      %v733 = vlaneseq
      %v734 = vshrl.u32 %v733, 7
      %v735 = vsub.s32 %v732, %v734
      %v736 = vrot.slane %v443, %v735
      %v738 = vunpack.c.l.s4 1983009808
      %v739 = vunpack.c.0.s8 %v738
      %v740 = vlaneseq
      %v741 = vshrl.u32 %v740, 7
      %v742 = vsub.s32 %v739, %v741
      %v743 = vrot.slane %v729, %v742
      %v744 = vcombine.high %v736, %v736
      %v745 = vcombine.high %v743, %v743
      %v746 = vcombine.high %v444, %v444
      %v748 = vunpack.c.l.s4 1983009808
      %v749 = vunpack.c.0.s8 %v748
      %v750 = vlaneseq
      %v751 = vshrl.u32 %v750, 7
      %v752 = vsub.s32 %v749, %v751
      %v753 = vrot.slane %v444, %v752
      %v755 = vunpack.c.l.s4 1983009808
      %v756 = vunpack.c.0.s8 %v755
      %v757 = vlaneseq
      %v758 = vshrl.u32 %v757, 7
      %v759 = vsub.s32 %v756, %v758
      %v760 = vrot.slane %v746, %v759
      %v761 = vcombine.high %v753, %v753
      %v762 = vcombine.high %v760, %v760
      %v764 = vunpack.c.l.s4 1983009808
      %v765 = vunpack.c.0.s8 %v764
      %v766 = vlaneseq
      %v767 = vshrl.u32 %v766, 7
      %v768 = vsub.s32 %v765, %v767
      %v769 = vrot.slane %v445, %v768
      %v770 = vcombine.high %v446, %v446
      %v772 = vunpack.c.l.s4 1983009808
      %v773 = vunpack.c.0.s8 %v772
      %v774 = vlaneseq
      %v775 = vshrl.u32 %v774, 7
      %v776 = vsub.s32 %v773, %v775
      %v777 = vrot.slane %v446, %v776
      %v779 = vunpack.c.l.s4 1983009808
      %v780 = vunpack.c.0.s8 %v779
      %v781 = vlaneseq
      %v782 = vshrl.u32 %v781, 7
      %v783 = vsub.s32 %v780, %v782
      %v784 = vrot.slane %v770, %v783
      %v785 = vcombine.high %v777, %v777
      %v786 = vcombine.high %v784, %v784
      %v787 = vcombine.high %v447, %v447
      %v789 = vunpack.c.l.s4 1983009808
      %v790 = vunpack.c.0.s8 %v789
      %v791 = vlaneseq
      %v792 = vshrl.u32 %v791, 7
      %v793 = vsub.s32 %v790, %v792
      %v794 = vrot.slane %v447, %v793
      %v796 = vunpack.c.l.s4 1983009808
      %v797 = vunpack.c.0.s8 %v796
      %v798 = vlaneseq
      %v799 = vshrl.u32 %v798, 7
      %v800 = vsub.s32 %v797, %v799
      %v801 = vrot.slane %v787, %v800
      %v802 = vcombine.high %v794, %v794
      %v803 = vcombine.high %v801, %v801
      %v805 = vunpack.c.l.s4 1983009808
      %v806 = vunpack.c.0.s8 %v805
      %v807 = vlaneseq
      %v808 = vshrl.u32 %v807, 7
      %v809 = vsub.s32 %v806, %v808
      %v810 = vrot.slane %v448, %v809
      %v811 = vcombine.high %v449, %v449
      %v813 = vunpack.c.l.s4 1983009808
      %v814 = vunpack.c.0.s8 %v813
      %v815 = vlaneseq
      %v816 = vshrl.u32 %v815, 7
      %v817 = vsub.s32 %v814, %v816
      %v818 = vrot.slane %v449, %v817
      %v820 = vunpack.c.l.s4 1983009808
      %v821 = vunpack.c.0.s8 %v820
      %v822 = vlaneseq
      %v823 = vshrl.u32 %v822, 7
      %v824 = vsub.s32 %v821, %v823
      %v825 = vrot.slane %v811, %v824
      %v826 = vcombine.high %v818, %v818
      %v827 = vcombine.high %v825, %v825
      %v828 = vcombine.high %v450, %v450
      %v830 = vunpack.c.l.s4 1983009808
      %v831 = vunpack.c.0.s8 %v830
      %v832 = vlaneseq
      %v833 = vshrl.u32 %v832, 7
      %v834 = vsub.s32 %v831, %v833
      %v835 = vrot.slane %v450, %v834
      %v837 = vunpack.c.l.s4 1983009808
      %v838 = vunpack.c.0.s8 %v837
      %v839 = vlaneseq
      %v840 = vshrl.u32 %v839, 7
      %v841 = vsub.s32 %v838, %v840
      %v842 = vrot.slane %v828, %v841
      %v843 = vcombine.high %v835, %v835
      %v844 = vcombine.high %v842, %v842
      %v846 = vunpack.c.l.s4 1983009808
      %v847 = vunpack.c.0.s8 %v846
      %v848 = vlaneseq
      %v849 = vshrl.u32 %v848, 7
      %v850 = vsub.s32 %v847, %v849
      %v851 = vrot.slane %v451, %v850
      %v852 = vcombine.high %v452, %v452
      %v854 = vunpack.c.l.s4 1983009808
      %v855 = vunpack.c.0.s8 %v854
      %v856 = vlaneseq
      %v857 = vshrl.u32 %v856, 7
      %v858 = vsub.s32 %v855, %v857
      %v859 = vrot.slane %v452, %v858
      %v861 = vunpack.c.l.s4 1983009808
      %v862 = vunpack.c.0.s8 %v861
      %v863 = vlaneseq
      %v864 = vshrl.u32 %v863, 7
      %v865 = vsub.s32 %v862, %v864
      %v866 = vrot.slane %v852, %v865
      %v867 = vcombine.high %v859, %v859
      %v868 = vcombine.high %v866, %v866
      %v869 = vcombine.high %v453, %v453
      %v871 = vunpack.c.l.s4 1983009808
      %v872 = vunpack.c.0.s8 %v871
      %v873 = vlaneseq
      %v874 = vshrl.u32 %v873, 7
      %v875 = vsub.s32 %v872, %v874
      %v876 = vrot.slane %v453, %v875
      %v878 = vunpack.c.l.s4 1983009808
      %v879 = vunpack.c.0.s8 %v878
      %v880 = vlaneseq
      %v881 = vshrl.u32 %v880, 7
      %v882 = vsub.s32 %v879, %v881
      %v883 = vrot.slane %v869, %v882
      %v884 = vcombine.high %v876, %v876
      %v885 = vcombine.high %v883, %v883
      %v887 = vunpack.c.l.s4 1983009808
      %v888 = vunpack.c.0.s8 %v887
      %v889 = vlaneseq
      %v890 = vshrl.u32 %v889, 7
      %v891 = vsub.s32 %v888, %v890
      %v892 = vrot.slane %v454, %v891
      %v893 = vcombine.high %v455, %v455
      %v895 = vunpack.c.l.s4 1983009808
      %v896 = vunpack.c.0.s8 %v895
      %v897 = vlaneseq
      %v898 = vshrl.u32 %v897, 7
      %v899 = vsub.s32 %v896, %v898
      %v900 = vrot.slane %v455, %v899
      %v902 = vunpack.c.l.s4 1983009808
      %v903 = vunpack.c.0.s8 %v902
      %v904 = vlaneseq
      %v905 = vshrl.u32 %v904, 7
      %v906 = vsub.s32 %v903, %v905
      %v907 = vrot.slane %v893, %v906
      %v908 = vcombine.high %v900, %v900
      %v909 = vcombine.high %v907, %v907
      %v910 = vcombine.high %v456, %v456
      %v912 = vunpack.c.l.s4 1983009808
      %v913 = vunpack.c.0.s8 %v912
      %v914 = vlaneseq
      %v915 = vshrl.u32 %v914, 7
      %v916 = vsub.s32 %v913, %v915
      %v917 = vrot.slane %v456, %v916
      %v919 = vunpack.c.l.s4 1983009808
      %v920 = vunpack.c.0.s8 %v919
      %v921 = vlaneseq
      %v922 = vshrl.u32 %v921, 7
      %v923 = vsub.s32 %v920, %v922
      %v924 = vrot.slane %v910, %v923
      %v925 = vcombine.high %v917, %v917
      %v926 = vcombine.high %v924, %v924
      %v928 = vunpack.c.l.s4 1983009808
      %v929 = vunpack.c.0.s8 %v928
      %v930 = vlaneseq
      %v931 = vshrl.u32 %v930, 7
      %v932 = vsub.s32 %v929, %v931
      %v933 = vrot.slane %v457, %v932
      %v934 = vcombine.high %v458, %v458
      %v936 = vunpack.c.l.s4 1983009808
      %v937 = vunpack.c.0.s8 %v936
      %v938 = vlaneseq
      %v939 = vshrl.u32 %v938, 7
      %v940 = vsub.s32 %v937, %v939
      %v941 = vrot.slane %v458, %v940
      %v943 = vunpack.c.l.s4 1983009808
      %v944 = vunpack.c.0.s8 %v943
      %v945 = vlaneseq
      %v946 = vshrl.u32 %v945, 7
      %v947 = vsub.s32 %v944, %v946
      %v948 = vrot.slane %v934, %v947
      %v949 = vcombine.high %v941, %v941
      %v950 = vcombine.high %v948, %v948
      %v951 = vcombine.high %v459, %v459
      %v953 = vunpack.c.l.s4 1983009808
      %v954 = vunpack.c.0.s8 %v953
      %v955 = vlaneseq
      %v956 = vshrl.u32 %v955, 7
      %v957 = vsub.s32 %v954, %v956
      %v958 = vrot.slane %v459, %v957
      %v960 = vunpack.c.l.s4 1983009808
      %v961 = vunpack.c.0.s8 %v960
      %v962 = vlaneseq
      %v963 = vshrl.u32 %v962, 7
      %v964 = vsub.s32 %v961, %v963
      %v965 = vrot.slane %v951, %v964
      %v966 = vcombine.high %v958, %v958
      %v967 = vcombine.high %v965, %v965
      %v969 = vunpack.c.l.s4 1983009808
      %v970 = vunpack.c.0.s8 %v969
      %v971 = vlaneseq
      %v972 = vshrl.u32 %v971, 7
      %v973 = vsub.s32 %v970, %v972
      %v974 = vrot.slane %v460, %v973
      %v975 = vcombine.high %v461, %v461
      %v977 = vunpack.c.l.s4 1983009808
      %v978 = vunpack.c.0.s8 %v977
      %v979 = vlaneseq
      %v980 = vshrl.u32 %v979, 7
      %v981 = vsub.s32 %v978, %v980
      %v982 = vrot.slane %v461, %v981
      %v984 = vunpack.c.l.s4 1983009808
      %v985 = vunpack.c.0.s8 %v984
      %v986 = vlaneseq
      %v987 = vshrl.u32 %v986, 7
      %v988 = vsub.s32 %v985, %v987
      %v989 = vrot.slane %v975, %v988
      %v990 = vcombine.high %v982, %v982
      %v991 = vcombine.high %v989, %v989
      %v992 = vcombine.high %v462, %v462
      %v994 = vunpack.c.l.s4 1983009808
      %v995 = vunpack.c.0.s8 %v994
      %v996 = vlaneseq
      %v997 = vshrl.u32 %v996, 7
      %v998 = vsub.s32 %v995, %v997
      %v999 = vrot.slane %v462, %v998
      %v1001 = vunpack.c.l.s4 1983009808
      %v1002 = vunpack.c.0.s8 %v1001
      %v1003 = vlaneseq
      %v1004 = vshrl.u32 %v1003, 7
      %v1005 = vsub.s32 %v1002, %v1004
      %v1006 = vrot.slane %v992, %v1005
      %v1007 = vcombine.high %v999, %v999
      %v1008 = vcombine.high %v1006, %v1006
      %v1010 = vunpack.c.l.s4 1983009808
      %v1011 = vunpack.c.0.s8 %v1010
      %v1012 = vlaneseq
      %v1013 = vshrl.u32 %v1012, 7
      %v1014 = vsub.s32 %v1011, %v1013
      %v1015 = vrot.slane %v463, %v1014
      %v1016 = vcombine.high %v464, %v464
      %v1018 = vunpack.c.l.s4 1983009808
      %v1019 = vunpack.c.0.s8 %v1018
      %v1020 = vlaneseq
      %v1021 = vshrl.u32 %v1020, 7
      %v1022 = vsub.s32 %v1019, %v1021
      %v1023 = vrot.slane %v464, %v1022
      %v1025 = vunpack.c.l.s4 1983009808
      %v1026 = vunpack.c.0.s8 %v1025
      %v1027 = vlaneseq
      %v1028 = vshrl.u32 %v1027, 7
      %v1029 = vsub.s32 %v1026, %v1028
      %v1030 = vrot.slane %v1016, %v1029
      %v1031 = vcombine.high %v1023, %v1023
      %v1032 = vcombine.high %v1030, %v1030
      %v1033 = vcombine.high %v465, %v465
      %v1035 = vunpack.c.l.s4 1983009808
      %v1036 = vunpack.c.0.s8 %v1035
      %v1037 = vlaneseq
      %v1038 = vshrl.u32 %v1037, 7
      %v1039 = vsub.s32 %v1036, %v1038
      %v1040 = vrot.slane %v465, %v1039
      %v1042 = vunpack.c.l.s4 1983009808
      %v1043 = vunpack.c.0.s8 %v1042
      %v1044 = vlaneseq
      %v1045 = vshrl.u32 %v1044, 7
      %v1046 = vsub.s32 %v1043, %v1045
      %v1047 = vrot.slane %v1033, %v1046
      %v1048 = vcombine.high %v1040, %v1040
      %v1049 = vcombine.high %v1047, %v1047
      %v1051 = vunpack.c.l.s4 1983009808
      %v1052 = vunpack.c.0.s8 %v1051
      %v1053 = vlaneseq
      %v1054 = vshrl.u32 %v1053, 7
      %v1055 = vsub.s32 %v1052, %v1054
      %v1056 = vrot.slane %v466, %v1055
      %v1057 = vcombine.high %v467, %v467
      %v1059 = vunpack.c.l.s4 1983009808
      %v1060 = vunpack.c.0.s8 %v1059
      %v1061 = vlaneseq
      %v1062 = vshrl.u32 %v1061, 7
      %v1063 = vsub.s32 %v1060, %v1062
      %v1064 = vrot.slane %v467, %v1063
      %v1066 = vunpack.c.l.s4 1983009808
      %v1067 = vunpack.c.0.s8 %v1066
      %v1068 = vlaneseq
      %v1069 = vshrl.u32 %v1068, 7
      %v1070 = vsub.s32 %v1067, %v1069
      %v1071 = vrot.slane %v1057, %v1070
      %v1072 = vcombine.high %v1064, %v1064
      %v1073 = vcombine.high %v1071, %v1071
      %v1074 = vcombine.high %v468, %v468
      %v1076 = vunpack.c.l.s4 1983009808
      %v1077 = vunpack.c.0.s8 %v1076
      %v1078 = vlaneseq
      %v1079 = vshrl.u32 %v1078, 7
      %v1080 = vsub.s32 %v1077, %v1079
      %v1081 = vrot.slane %v468, %v1080
      %v1083 = vunpack.c.l.s4 1983009808
      %v1084 = vunpack.c.0.s8 %v1083
      %v1085 = vlaneseq
      %v1086 = vshrl.u32 %v1085, 7
      %v1087 = vsub.s32 %v1084, %v1086
      %v1088 = vrot.slane %v1074, %v1087
      %v1089 = vcombine.high %v1081, %v1081
      %v1090 = vcombine.high %v1088, %v1088
      %v1092 = vunpack.c.l.s4 1983009808
      %v1093 = vunpack.c.0.s8 %v1092
      %v1094 = vlaneseq
      %v1095 = vshrl.u32 %v1094, 7
      %v1096 = vsub.s32 %v1093, %v1095
      %v1097 = vrot.slane %v469, %v1096
      %v1098 = vcombine.high %v470, %v470
      %v1100 = vunpack.c.l.s4 1983009808
      %v1101 = vunpack.c.0.s8 %v1100
      %v1102 = vlaneseq
      %v1103 = vshrl.u32 %v1102, 7
      %v1104 = vsub.s32 %v1101, %v1103
      %v1105 = vrot.slane %v470, %v1104
      %v1107 = vunpack.c.l.s4 1983009808
      %v1108 = vunpack.c.0.s8 %v1107
      %v1109 = vlaneseq
      %v1110 = vshrl.u32 %v1109, 7
      %v1111 = vsub.s32 %v1108, %v1110
      %v1112 = vrot.slane %v1098, %v1111
      %v1113 = vcombine.high %v1105, %v1105
      %v1114 = vcombine.high %v1112, %v1112
      %v1115 = vcombine.high %v471, %v471
      %v1117 = vunpack.c.l.s4 1983009808
      %v1118 = vunpack.c.0.s8 %v1117
      %v1119 = vlaneseq
      %v1120 = vshrl.u32 %v1119, 7
      %v1121 = vsub.s32 %v1118, %v1120
      %v1122 = vrot.slane %v471, %v1121
      %v1124 = vunpack.c.l.s4 1983009808
      %v1125 = vunpack.c.0.s8 %v1124
      %v1126 = vlaneseq
      %v1127 = vshrl.u32 %v1126, 7
      %v1128 = vsub.s32 %v1125, %v1127
      %v1129 = vrot.slane %v1115, %v1128
      %v1130 = vcombine.high %v1122, %v1122
      %v1131 = vcombine.high %v1129, %v1129
      %v1133 = vunpack.c.l.s4 1983009808
      %v1134 = vunpack.c.0.s8 %v1133
      %v1135 = vlaneseq
      %v1136 = vshrl.u32 %v1135, 7
      %v1137 = vsub.s32 %v1134, %v1136
      %v1138 = vrot.slane %v472, %v1137
      %v1139 = vcombine.high %v473, %v473
      %v1141 = vunpack.c.l.s4 1983009808
      %v1142 = vunpack.c.0.s8 %v1141
      %v1143 = vlaneseq
      %v1144 = vshrl.u32 %v1143, 7
      %v1145 = vsub.s32 %v1142, %v1144
      %v1146 = vrot.slane %v473, %v1145
      %v1148 = vunpack.c.l.s4 1983009808
      %v1149 = vunpack.c.0.s8 %v1148
      %v1150 = vlaneseq
      %v1151 = vshrl.u32 %v1150, 7
      %v1152 = vsub.s32 %v1149, %v1151
      %v1153 = vrot.slane %v1139, %v1152
      %v1154 = vcombine.high %v1146, %v1146
      %v1155 = vcombine.high %v1153, %v1153
      %v1156 = vcombine.high %v474, %v474
      %v1158 = vunpack.c.l.s4 1983009808
      %v1159 = vunpack.c.0.s8 %v1158
      %v1160 = vlaneseq
      %v1161 = vshrl.u32 %v1160, 7
      %v1162 = vsub.s32 %v1159, %v1161
      %v1163 = vrot.slane %v474, %v1162
      %v1165 = vunpack.c.l.s4 1983009808
      %v1166 = vunpack.c.0.s8 %v1165
      %v1167 = vlaneseq
      %v1168 = vshrl.u32 %v1167, 7
      %v1169 = vsub.s32 %v1166, %v1168
      %v1170 = vrot.slane %v1156, %v1169
      %v1171 = vcombine.high %v1163, %v1163
      %v1172 = vcombine.high %v1170, %v1170
      %v1174 = vunpack.c.l.s4 1983009808
      %v1175 = vunpack.c.0.s8 %v1174
      %v1176 = vlaneseq
      %v1177 = vshrl.u32 %v1176, 7
      %v1178 = vsub.s32 %v1175, %v1177
      %v1179 = vrot.slane %v475, %v1178
      %v1180 = vcombine.low %v531, %v539
      %v1181 = vcombine.low %v538, %v540
      %v1183 = vunpack.c.l.s4 1983009808
      %v1184 = vunpack.c.0.s8 %v1183
      %v1185 = vlaneseq
      %v1186 = vshrl.u32 %v1185, 7
      %v1187 = vsub.s32 %v1184, %v1186
      %v1188 = vrot.slane %v1180, %v1187
      %v1190 = vunpack.c.l.s4 1983009808
      %v1191 = vunpack.c.0.s8 %v1190
      %v1192 = vlaneseq
      %v1193 = vshrl.u32 %v1192, 7
      %v1194 = vsub.s32 %v1191, %v1193
      %v1195 = vrot.slane %v1181, %v1194
      %v1196 = vcombine.low %v1188, %v1195
      %v1197 = vcombine.low %v548, %v556
      %v1198 = vcombine.low %v555, %v557
      %v1200 = vunpack.c.l.s4 1983009808
      %v1201 = vunpack.c.0.s8 %v1200
      %v1202 = vlaneseq
      %v1203 = vshrl.u32 %v1202, 7
      %v1204 = vsub.s32 %v1201, %v1203
      %v1205 = vrot.slane %v1197, %v1204
      %v1207 = vunpack.c.l.s4 1983009808
      %v1208 = vunpack.c.0.s8 %v1207
      %v1209 = vlaneseq
      %v1210 = vshrl.u32 %v1209, 7
      %v1211 = vsub.s32 %v1208, %v1210
      %v1212 = vrot.slane %v1198, %v1211
      %v1213 = vcombine.low %v1205, %v1212
      %v1214 = vcombine.low %v564, %v572
      %v1215 = vcombine.low %v580, %v579
      %v1217 = vunpack.c.l.s4 1983009808
      %v1218 = vunpack.c.0.s8 %v1217
      %v1219 = vlaneseq
      %v1220 = vshrl.u32 %v1219, 7
      %v1221 = vsub.s32 %v1218, %v1220
      %v1222 = vrot.slane %v1214, %v1221
      %v1224 = vunpack.c.l.s4 1983009808
      %v1225 = vunpack.c.0.s8 %v1224
      %v1226 = vlaneseq
      %v1227 = vshrl.u32 %v1226, 7
      %v1228 = vsub.s32 %v1225, %v1227
      %v1229 = vrot.slane %v1215, %v1228
      %v1230 = vcombine.low %v1222, %v1229
      %v1231 = vcombine.low %v581, %v589
      %v1232 = vcombine.low %v597, %v596
      %v1234 = vunpack.c.l.s4 1983009808
      %v1235 = vunpack.c.0.s8 %v1234
      %v1236 = vlaneseq
      %v1237 = vshrl.u32 %v1236, 7
      %v1238 = vsub.s32 %v1235, %v1237
      %v1239 = vrot.slane %v1231, %v1238
      %v1241 = vunpack.c.l.s4 1983009808
      %v1242 = vunpack.c.0.s8 %v1241
      %v1243 = vlaneseq
      %v1244 = vshrl.u32 %v1243, 7
      %v1245 = vsub.s32 %v1242, %v1244
      %v1246 = vrot.slane %v1232, %v1245
      %v1247 = vcombine.low %v1239, %v1246
      %v1248 = vcombine.low %v598, %v605
      %v1249 = vcombine.low %v613, %v621
      %v1251 = vunpack.c.l.s4 1983009808
      %v1252 = vunpack.c.0.s8 %v1251
      %v1253 = vlaneseq
      %v1254 = vshrl.u32 %v1253, 7
      %v1255 = vsub.s32 %v1252, %v1254
      %v1256 = vrot.slane %v1248, %v1255
      %v1258 = vunpack.c.l.s4 1983009808
      %v1259 = vunpack.c.0.s8 %v1258
      %v1260 = vlaneseq
      %v1261 = vshrl.u32 %v1260, 7
      %v1262 = vsub.s32 %v1259, %v1261
      %v1263 = vrot.slane %v1249, %v1262
      %v1264 = vcombine.low %v1256, %v1263
      %v1265 = vcombine.low %v620, %v622
      %v1266 = vcombine.low %v630, %v638
      %v1268 = vunpack.c.l.s4 1983009808
      %v1269 = vunpack.c.0.s8 %v1268
      %v1270 = vlaneseq
      %v1271 = vshrl.u32 %v1270, 7
      %v1272 = vsub.s32 %v1269, %v1271
      %v1273 = vrot.slane %v1265, %v1272
      %v1275 = vunpack.c.l.s4 1983009808
      %v1276 = vunpack.c.0.s8 %v1275
      %v1277 = vlaneseq
      %v1278 = vshrl.u32 %v1277, 7
      %v1279 = vsub.s32 %v1276, %v1278
      %v1280 = vrot.slane %v1266, %v1279
      %v1281 = vcombine.low %v1273, %v1280
      %v1282 = vcombine.low %v637, %v639
      %v1283 = vcombine.low %v646, %v654
      %v1285 = vunpack.c.l.s4 1983009808
      %v1286 = vunpack.c.0.s8 %v1285
      %v1287 = vlaneseq
      %v1288 = vshrl.u32 %v1287, 7
      %v1289 = vsub.s32 %v1286, %v1288
      %v1290 = vrot.slane %v1282, %v1289
      %v1292 = vunpack.c.l.s4 1983009808
      %v1293 = vunpack.c.0.s8 %v1292
      %v1294 = vlaneseq
      %v1295 = vshrl.u32 %v1294, 7
      %v1296 = vsub.s32 %v1293, %v1295
      %v1297 = vrot.slane %v1283, %v1296
      %v1298 = vcombine.low %v1290, %v1297
      %v1299 = vcombine.low %v662, %v661
      %v1300 = vcombine.low %v663, %v671
      %v1302 = vunpack.c.l.s4 1983009808
      %v1303 = vunpack.c.0.s8 %v1302
      %v1304 = vlaneseq
      %v1305 = vshrl.u32 %v1304, 7
      %v1306 = vsub.s32 %v1303, %v1305
      %v1307 = vrot.slane %v1299, %v1306
      %v1309 = vunpack.c.l.s4 1983009808
      %v1310 = vunpack.c.0.s8 %v1309
      %v1311 = vlaneseq
      %v1312 = vshrl.u32 %v1311, 7
      %v1313 = vsub.s32 %v1310, %v1312
      %v1314 = vrot.slane %v1300, %v1313
      %v1315 = vcombine.low %v1307, %v1314
      %v1316 = vcombine.low %v679, %v678
      %v1317 = vcombine.low %v680, %v687
      %v1319 = vunpack.c.l.s4 1983009808
      %v1320 = vunpack.c.0.s8 %v1319
      %v1321 = vlaneseq
      %v1322 = vshrl.u32 %v1321, 7
      %v1323 = vsub.s32 %v1320, %v1322
      %v1324 = vrot.slane %v1316, %v1323
      %v1326 = vunpack.c.l.s4 1983009808
      %v1327 = vunpack.c.0.s8 %v1326
      %v1328 = vlaneseq
      %v1329 = vshrl.u32 %v1328, 7
      %v1330 = vsub.s32 %v1327, %v1329
      %v1331 = vrot.slane %v1317, %v1330
      %v1332 = vcombine.low %v1324, %v1331
      %v1333 = vcombine.low %v695, %v703
      %v1334 = vcombine.low %v702, %v704
      %v1336 = vunpack.c.l.s4 1983009808
      %v1337 = vunpack.c.0.s8 %v1336
      %v1338 = vlaneseq
      %v1339 = vshrl.u32 %v1338, 7
      %v1340 = vsub.s32 %v1337, %v1339
      %v1341 = vrot.slane %v1333, %v1340
      %v1343 = vunpack.c.l.s4 1983009808
      %v1344 = vunpack.c.0.s8 %v1343
      %v1345 = vlaneseq
      %v1346 = vshrl.u32 %v1345, 7
      %v1347 = vsub.s32 %v1344, %v1346
      %v1348 = vrot.slane %v1334, %v1347
      %v1349 = vcombine.low %v1341, %v1348
      %v1350 = vcombine.low %v712, %v720
      %v1351 = vcombine.low %v719, %v721
      %v1353 = vunpack.c.l.s4 1983009808
      %v1354 = vunpack.c.0.s8 %v1353
      %v1355 = vlaneseq
      %v1356 = vshrl.u32 %v1355, 7
      %v1357 = vsub.s32 %v1354, %v1356
      %v1358 = vrot.slane %v1350, %v1357
      %v1360 = vunpack.c.l.s4 1983009808
      %v1361 = vunpack.c.0.s8 %v1360
      %v1362 = vlaneseq
      %v1363 = vshrl.u32 %v1362, 7
      %v1364 = vsub.s32 %v1361, %v1363
      %v1365 = vrot.slane %v1351, %v1364
      %v1366 = vcombine.low %v1358, %v1365
      %v1367 = vcombine.low %v728, %v736
      %v1368 = vcombine.low %v744, %v743
      %v1370 = vunpack.c.l.s4 1983009808
      %v1371 = vunpack.c.0.s8 %v1370
      %v1372 = vlaneseq
      %v1373 = vshrl.u32 %v1372, 7
      %v1374 = vsub.s32 %v1371, %v1373
      %v1375 = vrot.slane %v1367, %v1374
      %v1377 = vunpack.c.l.s4 1983009808
      %v1378 = vunpack.c.0.s8 %v1377
      %v1379 = vlaneseq
      %v1380 = vshrl.u32 %v1379, 7
      %v1381 = vsub.s32 %v1378, %v1380
      %v1382 = vrot.slane %v1368, %v1381
      %v1383 = vcombine.low %v1375, %v1382
      %v1384 = vcombine.low %v745, %v753
      %v1385 = vcombine.low %v761, %v760
      %v1387 = vunpack.c.l.s4 1983009808
      %v1388 = vunpack.c.0.s8 %v1387
      %v1389 = vlaneseq
      %v1390 = vshrl.u32 %v1389, 7
      %v1391 = vsub.s32 %v1388, %v1390
      %v1392 = vrot.slane %v1384, %v1391
      %v1394 = vunpack.c.l.s4 1983009808
      %v1395 = vunpack.c.0.s8 %v1394
      %v1396 = vlaneseq
      %v1397 = vshrl.u32 %v1396, 7
      %v1398 = vsub.s32 %v1395, %v1397
      %v1399 = vrot.slane %v1385, %v1398
      %v1400 = vcombine.low %v1392, %v1399
      %v1401 = vcombine.low %v762, %v769
      %v1402 = vcombine.low %v777, %v785
      %v1404 = vunpack.c.l.s4 1983009808
      %v1405 = vunpack.c.0.s8 %v1404
      %v1406 = vlaneseq
      %v1407 = vshrl.u32 %v1406, 7
      %v1408 = vsub.s32 %v1405, %v1407
      %v1409 = vrot.slane %v1401, %v1408
      %v1411 = vunpack.c.l.s4 1983009808
      %v1412 = vunpack.c.0.s8 %v1411
      %v1413 = vlaneseq
      %v1414 = vshrl.u32 %v1413, 7
      %v1415 = vsub.s32 %v1412, %v1414
      %v1416 = vrot.slane %v1402, %v1415
      %v1417 = vcombine.low %v1409, %v1416
      %v1418 = vcombine.low %v784, %v786
      %v1419 = vcombine.low %v794, %v802
      %v1421 = vunpack.c.l.s4 1983009808
      %v1422 = vunpack.c.0.s8 %v1421
      %v1423 = vlaneseq
      %v1424 = vshrl.u32 %v1423, 7
      %v1425 = vsub.s32 %v1422, %v1424
      %v1426 = vrot.slane %v1418, %v1425
      %v1428 = vunpack.c.l.s4 1983009808
      %v1429 = vunpack.c.0.s8 %v1428
      %v1430 = vlaneseq
      %v1431 = vshrl.u32 %v1430, 7
      %v1432 = vsub.s32 %v1429, %v1431
      %v1433 = vrot.slane %v1419, %v1432
      %v1434 = vcombine.low %v1426, %v1433
      %v1435 = vcombine.low %v801, %v803
      %v1436 = vcombine.low %v810, %v818
      %v1438 = vunpack.c.l.s4 1983009808
      %v1439 = vunpack.c.0.s8 %v1438
      %v1440 = vlaneseq
      %v1441 = vshrl.u32 %v1440, 7
      %v1442 = vsub.s32 %v1439, %v1441
      %v1443 = vrot.slane %v1435, %v1442
      %v1445 = vunpack.c.l.s4 1983009808
      %v1446 = vunpack.c.0.s8 %v1445
      %v1447 = vlaneseq
      %v1448 = vshrl.u32 %v1447, 7
      %v1449 = vsub.s32 %v1446, %v1448
      %v1450 = vrot.slane %v1436, %v1449
      %v1451 = vcombine.low %v1443, %v1450
      %v1452 = vcombine.low %v826, %v825
      %v1453 = vcombine.low %v827, %v835
      %v1455 = vunpack.c.l.s4 1983009808
      %v1456 = vunpack.c.0.s8 %v1455
      %v1457 = vlaneseq
      %v1458 = vshrl.u32 %v1457, 7
      %v1459 = vsub.s32 %v1456, %v1458
      %v1460 = vrot.slane %v1452, %v1459
      %v1462 = vunpack.c.l.s4 1983009808
      %v1463 = vunpack.c.0.s8 %v1462
      %v1464 = vlaneseq
      %v1465 = vshrl.u32 %v1464, 7
      %v1466 = vsub.s32 %v1463, %v1465
      %v1467 = vrot.slane %v1453, %v1466
      %v1468 = vcombine.low %v1460, %v1467
      %v1469 = vcombine.low %v843, %v842
      %v1470 = vcombine.low %v844, %v851
      %v1472 = vunpack.c.l.s4 1983009808
      %v1473 = vunpack.c.0.s8 %v1472
      %v1474 = vlaneseq
      %v1475 = vshrl.u32 %v1474, 7
      %v1476 = vsub.s32 %v1473, %v1475
      %v1477 = vrot.slane %v1469, %v1476
      %v1479 = vunpack.c.l.s4 1983009808
      %v1480 = vunpack.c.0.s8 %v1479
      %v1481 = vlaneseq
      %v1482 = vshrl.u32 %v1481, 7
      %v1483 = vsub.s32 %v1480, %v1482
      %v1484 = vrot.slane %v1470, %v1483
      %v1485 = vcombine.low %v1477, %v1484
      %v1486 = vcombine.low %v859, %v867
      %v1487 = vcombine.low %v866, %v868
      %v1489 = vunpack.c.l.s4 1983009808
      %v1490 = vunpack.c.0.s8 %v1489
      %v1491 = vlaneseq
      %v1492 = vshrl.u32 %v1491, 7
      %v1493 = vsub.s32 %v1490, %v1492
      %v1494 = vrot.slane %v1486, %v1493
      %v1496 = vunpack.c.l.s4 1983009808
      %v1497 = vunpack.c.0.s8 %v1496
      %v1498 = vlaneseq
      %v1499 = vshrl.u32 %v1498, 7
      %v1500 = vsub.s32 %v1497, %v1499
      %v1501 = vrot.slane %v1487, %v1500
      %v1502 = vcombine.low %v1494, %v1501
      %v1503 = vcombine.low %v876, %v884
      %v1504 = vcombine.low %v883, %v885
      %v1506 = vunpack.c.l.s4 1983009808
      %v1507 = vunpack.c.0.s8 %v1506
      %v1508 = vlaneseq
      %v1509 = vshrl.u32 %v1508, 7
      %v1510 = vsub.s32 %v1507, %v1509
      %v1511 = vrot.slane %v1503, %v1510
      %v1513 = vunpack.c.l.s4 1983009808
      %v1514 = vunpack.c.0.s8 %v1513
      %v1515 = vlaneseq
      %v1516 = vshrl.u32 %v1515, 7
      %v1517 = vsub.s32 %v1514, %v1516
      %v1518 = vrot.slane %v1504, %v1517
      %v1519 = vcombine.low %v1511, %v1518
      %v1520 = vcombine.low %v892, %v900
      %v1521 = vcombine.low %v908, %v907
      %v1523 = vunpack.c.l.s4 1983009808
      %v1524 = vunpack.c.0.s8 %v1523
      %v1525 = vlaneseq
      %v1526 = vshrl.u32 %v1525, 7
      %v1527 = vsub.s32 %v1524, %v1526
      %v1528 = vrot.slane %v1520, %v1527
      %v1530 = vunpack.c.l.s4 1983009808
      %v1531 = vunpack.c.0.s8 %v1530
      %v1532 = vlaneseq
      %v1533 = vshrl.u32 %v1532, 7
      %v1534 = vsub.s32 %v1531, %v1533
      %v1535 = vrot.slane %v1521, %v1534
      %v1536 = vcombine.low %v1528, %v1535
      %v1537 = vcombine.low %v909, %v917
      %v1538 = vcombine.low %v925, %v924
      %v1540 = vunpack.c.l.s4 1983009808
      %v1541 = vunpack.c.0.s8 %v1540
      %v1542 = vlaneseq
      %v1543 = vshrl.u32 %v1542, 7
      %v1544 = vsub.s32 %v1541, %v1543
      %v1545 = vrot.slane %v1537, %v1544
      %v1547 = vunpack.c.l.s4 1983009808
      %v1548 = vunpack.c.0.s8 %v1547
      %v1549 = vlaneseq
      %v1550 = vshrl.u32 %v1549, 7
      %v1551 = vsub.s32 %v1548, %v1550
      %v1552 = vrot.slane %v1538, %v1551
      %v1553 = vcombine.low %v1545, %v1552
      %v1554 = vcombine.low %v926, %v933
      %v1555 = vcombine.low %v941, %v949
      %v1557 = vunpack.c.l.s4 1983009808
      %v1558 = vunpack.c.0.s8 %v1557
      %v1559 = vlaneseq
      %v1560 = vshrl.u32 %v1559, 7
      %v1561 = vsub.s32 %v1558, %v1560
      %v1562 = vrot.slane %v1554, %v1561
      %v1564 = vunpack.c.l.s4 1983009808
      %v1565 = vunpack.c.0.s8 %v1564
      %v1566 = vlaneseq
      %v1567 = vshrl.u32 %v1566, 7
      %v1568 = vsub.s32 %v1565, %v1567
      %v1569 = vrot.slane %v1555, %v1568
      %v1570 = vcombine.low %v1562, %v1569
      %v1571 = vcombine.low %v948, %v950
      %v1572 = vcombine.low %v958, %v966
      %v1574 = vunpack.c.l.s4 1983009808
      %v1575 = vunpack.c.0.s8 %v1574
      %v1576 = vlaneseq
      %v1577 = vshrl.u32 %v1576, 7
      %v1578 = vsub.s32 %v1575, %v1577
      %v1579 = vrot.slane %v1571, %v1578
      %v1581 = vunpack.c.l.s4 1983009808
      %v1582 = vunpack.c.0.s8 %v1581
      %v1583 = vlaneseq
      %v1584 = vshrl.u32 %v1583, 7
      %v1585 = vsub.s32 %v1582, %v1584
      %v1586 = vrot.slane %v1572, %v1585
      %v1587 = vcombine.low %v1579, %v1586
      %v1588 = vcombine.low %v965, %v967
      %v1589 = vcombine.low %v974, %v982
      %v1591 = vunpack.c.l.s4 1983009808
      %v1592 = vunpack.c.0.s8 %v1591
      %v1593 = vlaneseq
      %v1594 = vshrl.u32 %v1593, 7
      %v1595 = vsub.s32 %v1592, %v1594
      %v1596 = vrot.slane %v1588, %v1595
      %v1598 = vunpack.c.l.s4 1983009808
      %v1599 = vunpack.c.0.s8 %v1598
      %v1600 = vlaneseq
      %v1601 = vshrl.u32 %v1600, 7
      %v1602 = vsub.s32 %v1599, %v1601
      %v1603 = vrot.slane %v1589, %v1602
      %v1604 = vcombine.low %v1596, %v1603
      %v1605 = vcombine.low %v990, %v989
      %v1606 = vcombine.low %v991, %v999
      %v1608 = vunpack.c.l.s4 1983009808
      %v1609 = vunpack.c.0.s8 %v1608
      %v1610 = vlaneseq
      %v1611 = vshrl.u32 %v1610, 7
      %v1612 = vsub.s32 %v1609, %v1611
      %v1613 = vrot.slane %v1605, %v1612
      %v1615 = vunpack.c.l.s4 1983009808
      %v1616 = vunpack.c.0.s8 %v1615
      %v1617 = vlaneseq
      %v1618 = vshrl.u32 %v1617, 7
      %v1619 = vsub.s32 %v1616, %v1618
      %v1620 = vrot.slane %v1606, %v1619
      %v1621 = vcombine.low %v1613, %v1620
      %v1622 = vcombine.low %v1007, %v1006
      %v1623 = vcombine.low %v1008, %v1015
      %v1625 = vunpack.c.l.s4 1983009808
      %v1626 = vunpack.c.0.s8 %v1625
      %v1627 = vlaneseq
      %v1628 = vshrl.u32 %v1627, 7
      %v1629 = vsub.s32 %v1626, %v1628
      %v1630 = vrot.slane %v1622, %v1629
      %v1632 = vunpack.c.l.s4 1983009808
      %v1633 = vunpack.c.0.s8 %v1632
      %v1634 = vlaneseq
      %v1635 = vshrl.u32 %v1634, 7
      %v1636 = vsub.s32 %v1633, %v1635
      %v1637 = vrot.slane %v1623, %v1636
      %v1638 = vcombine.low %v1630, %v1637
      %v1639 = vcombine.low %v1023, %v1031
      %v1640 = vcombine.low %v1030, %v1032
      %v1642 = vunpack.c.l.s4 1983009808
      %v1643 = vunpack.c.0.s8 %v1642
      %v1644 = vlaneseq
      %v1645 = vshrl.u32 %v1644, 7
      %v1646 = vsub.s32 %v1643, %v1645
      %v1647 = vrot.slane %v1639, %v1646
      %v1649 = vunpack.c.l.s4 1983009808
      %v1650 = vunpack.c.0.s8 %v1649
      %v1651 = vlaneseq
      %v1652 = vshrl.u32 %v1651, 7
      %v1653 = vsub.s32 %v1650, %v1652
      %v1654 = vrot.slane %v1640, %v1653
      %v1655 = vcombine.low %v1647, %v1654
      %v1656 = vcombine.low %v1040, %v1048
      %v1657 = vcombine.low %v1047, %v1049
      %v1659 = vunpack.c.l.s4 1983009808
      %v1660 = vunpack.c.0.s8 %v1659
      %v1661 = vlaneseq
      %v1662 = vshrl.u32 %v1661, 7
      %v1663 = vsub.s32 %v1660, %v1662
      %v1664 = vrot.slane %v1656, %v1663
      %v1666 = vunpack.c.l.s4 1983009808
      %v1667 = vunpack.c.0.s8 %v1666
      %v1668 = vlaneseq
      %v1669 = vshrl.u32 %v1668, 7
      %v1670 = vsub.s32 %v1667, %v1669
      %v1671 = vrot.slane %v1657, %v1670
      %v1672 = vcombine.low %v1664, %v1671
      %v1673 = vcombine.low %v1056, %v1064
      %v1674 = vcombine.low %v1072, %v1071
      %v1676 = vunpack.c.l.s4 1983009808
      %v1677 = vunpack.c.0.s8 %v1676
      %v1678 = vlaneseq
      %v1679 = vshrl.u32 %v1678, 7
      %v1680 = vsub.s32 %v1677, %v1679
      %v1681 = vrot.slane %v1673, %v1680
      %v1683 = vunpack.c.l.s4 1983009808
      %v1684 = vunpack.c.0.s8 %v1683
      %v1685 = vlaneseq
      %v1686 = vshrl.u32 %v1685, 7
      %v1687 = vsub.s32 %v1684, %v1686
      %v1688 = vrot.slane %v1674, %v1687
      %v1689 = vcombine.low %v1681, %v1688
      %v1690 = vcombine.low %v1073, %v1081
      %v1691 = vcombine.low %v1089, %v1088
      %v1693 = vunpack.c.l.s4 1983009808
      %v1694 = vunpack.c.0.s8 %v1693
      %v1695 = vlaneseq
      %v1696 = vshrl.u32 %v1695, 7
      %v1697 = vsub.s32 %v1694, %v1696
      %v1698 = vrot.slane %v1690, %v1697
      %v1700 = vunpack.c.l.s4 1983009808
      %v1701 = vunpack.c.0.s8 %v1700
      %v1702 = vlaneseq
      %v1703 = vshrl.u32 %v1702, 7
      %v1704 = vsub.s32 %v1701, %v1703
      %v1705 = vrot.slane %v1691, %v1704
      %v1706 = vcombine.low %v1698, %v1705
      %v1707 = vcombine.low %v1090, %v1097
      %v1708 = vcombine.low %v1105, %v1113
      %v1710 = vunpack.c.l.s4 1983009808
      %v1711 = vunpack.c.0.s8 %v1710
      %v1712 = vlaneseq
      %v1713 = vshrl.u32 %v1712, 7
      %v1714 = vsub.s32 %v1711, %v1713
      %v1715 = vrot.slane %v1707, %v1714
      %v1717 = vunpack.c.l.s4 1983009808
      %v1718 = vunpack.c.0.s8 %v1717
      %v1719 = vlaneseq
      %v1720 = vshrl.u32 %v1719, 7
      %v1721 = vsub.s32 %v1718, %v1720
      %v1722 = vrot.slane %v1708, %v1721
      %v1723 = vcombine.low %v1715, %v1722
      %v1724 = vcombine.low %v1112, %v1114
      %v1725 = vcombine.low %v1122, %v1130
      %v1727 = vunpack.c.l.s4 1983009808
      %v1728 = vunpack.c.0.s8 %v1727
      %v1729 = vlaneseq
      %v1730 = vshrl.u32 %v1729, 7
      %v1731 = vsub.s32 %v1728, %v1730
      %v1732 = vrot.slane %v1724, %v1731
      %v1734 = vunpack.c.l.s4 1983009808
      %v1735 = vunpack.c.0.s8 %v1734
      %v1736 = vlaneseq
      %v1737 = vshrl.u32 %v1736, 7
      %v1738 = vsub.s32 %v1735, %v1737
      %v1739 = vrot.slane %v1725, %v1738
      %v1740 = vcombine.low %v1732, %v1739
      %v1741 = vcombine.low %v1129, %v1131
      %v1742 = vcombine.low %v1138, %v1146
      %v1744 = vunpack.c.l.s4 1983009808
      %v1745 = vunpack.c.0.s8 %v1744
      %v1746 = vlaneseq
      %v1747 = vshrl.u32 %v1746, 7
      %v1748 = vsub.s32 %v1745, %v1747
      %v1749 = vrot.slane %v1741, %v1748
      %v1751 = vunpack.c.l.s4 1983009808
      %v1752 = vunpack.c.0.s8 %v1751
      %v1753 = vlaneseq
      %v1754 = vshrl.u32 %v1753, 7
      %v1755 = vsub.s32 %v1752, %v1754
      %v1756 = vrot.slane %v1742, %v1755
      %v1757 = vcombine.low %v1749, %v1756
      %v1758 = vcombine.low %v1154, %v1153
      %v1759 = vcombine.low %v1155, %v1163
      %v1761 = vunpack.c.l.s4 1983009808
      %v1762 = vunpack.c.0.s8 %v1761
      %v1763 = vlaneseq
      %v1764 = vshrl.u32 %v1763, 7
      %v1765 = vsub.s32 %v1762, %v1764
      %v1766 = vrot.slane %v1758, %v1765
      %v1768 = vunpack.c.l.s4 1983009808
      %v1769 = vunpack.c.0.s8 %v1768
      %v1770 = vlaneseq
      %v1771 = vshrl.u32 %v1770, 7
      %v1772 = vsub.s32 %v1769, %v1771
      %v1773 = vrot.slane %v1759, %v1772
      %v1774 = vcombine.low %v1766, %v1773
      %v1775 = vcombine.low %v1171, %v1170
      %v1776 = vcombine.low %v1172, %v1179
      %v1778 = vunpack.c.l.s4 1983009808
      %v1779 = vunpack.c.0.s8 %v1778
      %v1780 = vlaneseq
      %v1781 = vshrl.u32 %v1780, 7
      %v1782 = vsub.s32 %v1779, %v1781
      %v1783 = vrot.slane %v1775, %v1782
      %v1785 = vunpack.c.l.s4 1983009808
      %v1786 = vunpack.c.0.s8 %v1785
      %v1787 = vlaneseq
      %v1788 = vshrl.u32 %v1787, 7
      %v1789 = vsub.s32 %v1786, %v1788
      %v1790 = vrot.slane %v1776, %v1789
      %v1791 = vcombine.low %v1783, %v1790
      %v1828 = vpack.c.bf16 %v1213, %v1196
      %v1829 = vpack.c.bf16 %v1247, %v1230
      %v1830 = vpack.c.bf16 %v1281, %v1264
      %v1831 = vpack.c.bf16 %v1315, %v1298
      %v1832 = vpack.c.bf16 %v1349, %v1332
      %v1833 = vpack.c.bf16 %v1383, %v1366
      %v1834 = vpack.c.bf16 %v1417, %v1400
      %v1835 = vpack.c.bf16 %v1451, %v1434
      %v1836 = vpack.c.bf16 %v1485, %v1468
      %v1837 = vpack.c.bf16 %v1519, %v1502
      %v1838 = vpack.c.bf16 %v1553, %v1536
      %v1839 = vpack.c.bf16 %v1587, %v1570
      %v1840 = vpack.c.bf16 %v1621, %v1604
      %v1841 = vpack.c.bf16 %v1655, %v1638
      %v1842 = vpack.c.bf16 %v1689, %v1672
      %v1843 = vpack.c.bf16 %v1723, %v1706
      %v1844 = vpack.c.bf16 %v1757, %v1740
      %v1845 = vpack.c.bf16 %v1791, %v1774
      %vm1846 = vcmask 64512
      %v1848 = vsel %vm1846, %v1828, 0
      %v1851 = vsel %vm1846, %v1829, 0
      %v1854 = vsel %vm1846, %v1830, 0
      %v1857 = vsel %vm1846, %v1831, 0
      %v1860 = vsel %vm1846, %v1832, 0
      %v1863 = vsel %vm1846, %v1833, 0
      %v1866 = vsel %vm1846, %v1834, 0
      %v1869 = vsel %vm1846, %v1835, 0
      %v1872 = vsel %vm1846, %v1836, 0
      %v1875 = vsel %vm1846, %v1837, 0
      %v1878 = vsel %vm1846, %v1838, 0
      %v1881 = vsel %vm1846, %v1839, 0
      %v1884 = vsel %vm1846, %v1840, 0
      %v1887 = vsel %vm1846, %v1841, 0
      %v1890 = vsel %vm1846, %v1842, 0
      %v1893 = vsel %vm1846, %v1843, 0
      %v1896 = vsel %vm1846, %v1844, 0
      %v1899 = vsel %vm1846, %v1845, 0
      %vm1901 = vcmask 1043456
      %v1903 = vsel %vm1901, %v426, 0
      %1905 = vmatprep.subr.bf16.mxu0 0
      %1906 = vmatpush1.bf16.msra.mxu0 0
      %1907 = vmatprep.subr.bf16.mxu0 0
      %1908 = vmatpush1.bf16.msra.mxu0 0
      %1909 = vmatprep.subr.bf16.mxu0 0
      %1910 = vmatpush1.bf16.msra.mxu0 0
      %1911 = vmatprep.subr.bf16.mxu0 0
      %1912 = vmatpush1.bf16.msra.mxu0 0
      %1913 = vmatprep.subr.bf16.mxu0 0
      %1914 = vmatpush1.bf16.msra.mxu0 0
      %1915 = vmatprep.subr.bf16.mxu0 0
      %1916 = vmatpush1.bf16.msra.mxu0 0
      %1917 = vmatprep.subr.bf16.mxu0 0
      %1918 = vmatpush1.bf16.msra.mxu0 0
      %1919 = vmatprep.subr.bf16.mxu0 0
      %1920 = vmatpush1.bf16.msra.mxu0 %v1903
      %1921 = vmatprep.subr.bf16.mxu0 0
      %1922 = vmatpush2.bf16.msra.mxu0 0
      %1923 = vmatprep.subr.bf16.mxu0 0
      %1924 = vmatpush2.bf16.msra.mxu0 0
      %1925 = vmatprep.subr.bf16.mxu0 0
      %1926 = vmatpush2.bf16.msra.mxu0 0
      %1927 = vmatprep.subr.bf16.mxu0 0
      %1928 = vmatpush2.bf16.msra.mxu0 0
      %1929 = vmatprep.subr.bf16.mxu0 0
      %1930 = vmatpush2.bf16.msra.mxu0 0
      %1931 = vmatprep.subr.bf16.mxu0 0
      %1932 = vmatpush2.bf16.msra.mxu0 0
      %1933 = vmatprep.subr.bf16.mxu0 0
      %1934 = vmatpush2.bf16.msra.mxu0 0
      %1935 = vmatprep.subr.bf16.mxu0 0
      %1936 = vmatpush2.bf16.msra.mxu0 0
      %1937 = vmatprep.mubr.bf16.mxu0 0
      %1938 = vmatmul.mubr.bf16.gmra.mxu0 %v1848
      %v1939 = vpop.f32.mrf.mxu0
      %v1940 = vadd.f32 0.0, %v1939
      %v1941 = vpop.f32.mrf.mxu0
      %v1942 = vpop.f32.mrf.mxu0
      %v1943 = vadd.f32 0.0, %v1942
      %v1944 = vpop.f32.mrf.mxu0
      %1945 = vmatprep.mubr.bf16.mxu0 0
      %1946 = vmatmul.mubr.bf16.gmra.mxu0 %v1851
      %v1947 = vpop.f32.mrf.mxu0
      %v1948 = vadd.f32 0.0, %v1947
      %v1949 = vpop.f32.mrf.mxu0
      %v1950 = vpop.f32.mrf.mxu0
      %v1951 = vadd.f32 0.0, %v1950
      %v1952 = vpop.f32.mrf.mxu0
      %1953 = vmatprep.mubr.bf16.mxu0 0
      %1954 = vmatmul.mubr.bf16.gmra.mxu0 %v1854
      %v1955 = vpop.f32.mrf.mxu0
      %v1956 = vadd.f32 0.0, %v1955
      %v1957 = vpop.f32.mrf.mxu0
      %v1958 = vpop.f32.mrf.mxu0
      %v1959 = vadd.f32 0.0, %v1958
      %v1960 = vpop.f32.mrf.mxu0
      %1961 = vmatprep.mubr.bf16.mxu0 0
      %1962 = vmatmul.mubr.bf16.gmra.mxu0 %v1857
      %v1963 = vpop.f32.mrf.mxu0
      %v1964 = vadd.f32 0.0, %v1963
      %v1965 = vpop.f32.mrf.mxu0
      %v1966 = vpop.f32.mrf.mxu0
      %v1967 = vadd.f32 0.0, %v1966
      %v1968 = vpop.f32.mrf.mxu0
      %1969 = vmatprep.mubr.bf16.mxu0 0
      %1970 = vmatmul.mubr.bf16.gmra.mxu0 %v1860
      %v1971 = vpop.f32.mrf.mxu0
      %v1972 = vadd.f32 0.0, %v1971
      %v1973 = vpop.f32.mrf.mxu0
      %v1974 = vpop.f32.mrf.mxu0
      %v1975 = vadd.f32 0.0, %v1974
      %v1976 = vpop.f32.mrf.mxu0
      %1977 = vmatprep.mubr.bf16.mxu0 0
      %1978 = vmatmul.mubr.bf16.gmra.mxu0 %v1863
      %v1979 = vpop.f32.mrf.mxu0
      %v1980 = vadd.f32 0.0, %v1979
      %v1981 = vpop.f32.mrf.mxu0
      %v1982 = vpop.f32.mrf.mxu0
      %v1983 = vadd.f32 0.0, %v1982
      %v1984 = vpop.f32.mrf.mxu0
      %1985 = vmatprep.mubr.bf16.mxu0 0
      %1986 = vmatmul.mubr.bf16.gmra.mxu0 %v1866
      %v1987 = vpop.f32.mrf.mxu0
      %v1988 = vadd.f32 0.0, %v1987
      %v1989 = vpop.f32.mrf.mxu0
      %v1990 = vpop.f32.mrf.mxu0
      %v1991 = vadd.f32 0.0, %v1990
      %v1992 = vpop.f32.mrf.mxu0
      %1993 = vmatprep.mubr.bf16.mxu0 0
      %1994 = vmatmul.mubr.bf16.gmra.mxu0 %v1869
      %v1995 = vpop.f32.mrf.mxu0
      %v1996 = vadd.f32 0.0, %v1995
      %v1997 = vpop.f32.mrf.mxu0
      %v1998 = vpop.f32.mrf.mxu0
      %v1999 = vadd.f32 0.0, %v1998
      %v2000 = vpop.f32.mrf.mxu0
      %2001 = vmatprep.mubr.bf16.mxu0 0
      %2002 = vmatmul.mubr.bf16.gmra.mxu0 %v1872
      %v2003 = vpop.f32.mrf.mxu0
      %v2004 = vadd.f32 0.0, %v2003
      %v2005 = vpop.f32.mrf.mxu0
      %v2006 = vpop.f32.mrf.mxu0
      %v2007 = vadd.f32 0.0, %v2006
      %v2008 = vpop.f32.mrf.mxu0
      %2009 = vmatprep.mubr.bf16.mxu0 0
      %2010 = vmatmul.mubr.bf16.gmra.mxu0 %v1875
      %v2011 = vpop.f32.mrf.mxu0
      %v2012 = vadd.f32 0.0, %v2011
      %v2013 = vpop.f32.mrf.mxu0
      %v2014 = vpop.f32.mrf.mxu0
      %v2015 = vadd.f32 0.0, %v2014
      %v2016 = vpop.f32.mrf.mxu0
      %2017 = vmatprep.mubr.bf16.mxu0 0
      %2018 = vmatmul.mubr.bf16.gmra.mxu0 %v1878
      %v2019 = vpop.f32.mrf.mxu0
      %v2020 = vadd.f32 0.0, %v2019
      %v2021 = vpop.f32.mrf.mxu0
      %v2022 = vpop.f32.mrf.mxu0
      %v2023 = vadd.f32 0.0, %v2022
      %v2024 = vpop.f32.mrf.mxu0
      %2025 = vmatprep.mubr.bf16.mxu0 0
      %2026 = vmatmul.mubr.bf16.gmra.mxu0 %v1881
      %v2027 = vpop.f32.mrf.mxu0
      %v2028 = vadd.f32 0.0, %v2027
      %v2029 = vpop.f32.mrf.mxu0
      %v2030 = vpop.f32.mrf.mxu0
      %v2031 = vadd.f32 0.0, %v2030
      %v2032 = vpop.f32.mrf.mxu0
      %2033 = vmatprep.mubr.bf16.mxu0 0
      %2034 = vmatmul.mubr.bf16.gmra.mxu0 %v1884
      %v2035 = vpop.f32.mrf.mxu0
      %v2036 = vadd.f32 0.0, %v2035
      %v2037 = vpop.f32.mrf.mxu0
      %v2038 = vpop.f32.mrf.mxu0
      %v2039 = vadd.f32 0.0, %v2038
      %v2040 = vpop.f32.mrf.mxu0
      %2041 = vmatprep.mubr.bf16.mxu0 0
      %2042 = vmatmul.mubr.bf16.gmra.mxu0 %v1887
      %v2043 = vpop.f32.mrf.mxu0
      %v2044 = vadd.f32 0.0, %v2043
      %v2045 = vpop.f32.mrf.mxu0
      %v2046 = vpop.f32.mrf.mxu0
      %v2047 = vadd.f32 0.0, %v2046
      %v2048 = vpop.f32.mrf.mxu0
      %2049 = vmatprep.mubr.bf16.mxu0 0
      %2050 = vmatmul.mubr.bf16.gmra.mxu0 %v1890
      %v2051 = vpop.f32.mrf.mxu0
      %v2052 = vadd.f32 0.0, %v2051
      %v2053 = vpop.f32.mrf.mxu0
      %v2054 = vpop.f32.mrf.mxu0
      %v2055 = vadd.f32 0.0, %v2054
      %v2056 = vpop.f32.mrf.mxu0
      %2057 = vmatprep.mubr.bf16.mxu0 0
      %2058 = vmatmul.mubr.bf16.gmra.mxu0 %v1893
      %v2059 = vpop.f32.mrf.mxu0
      %v2060 = vadd.f32 0.0, %v2059
      %v2061 = vpop.f32.mrf.mxu0
      %v2062 = vpop.f32.mrf.mxu0
      %v2063 = vadd.f32 0.0, %v2062
      %v2064 = vpop.f32.mrf.mxu0
      %2065 = vmatprep.mubr.bf16.mxu0 0
      %2066 = vmatmul.mubr.bf16.gmra.mxu0 %v1896
      %v2067 = vpop.f32.mrf.mxu0
      %v2068 = vadd.f32 0.0, %v2067
      %v2069 = vpop.f32.mrf.mxu0
      %v2070 = vpop.f32.mrf.mxu0
      %v2071 = vadd.f32 0.0, %v2070
      %v2072 = vpop.f32.mrf.mxu0
      %2073 = vmatprep.mubr.bf16.mxu0 0
      %2074 = vmatmul.mubr.bf16.gmra.mxu0 %v1899
      %v2075 = vpop.f32.mrf.mxu0
      %v2076 = vadd.f32 0.0, %v2075
      %v2077 = vpop.f32.mrf.mxu0
      %v2078 = vpop.f32.mrf.mxu0
      %v2079 = vadd.f32 0.0, %v2078
      %v2080 = vpop.f32.mrf.mxu0
      %2081 = vdwg.mxu0
      %v2118 = vcombine.high %v1940, %v1940
      %v2120 = vunpack.c.l.s4 1983009808
      %v2121 = vunpack.c.0.s8 %v2120
      %v2122 = vlaneseq
      %v2123 = vshrl.u32 %v2122, 7
      %v2124 = vsub.s32 %v2121, %v2123
      %v2125 = vrot.slane %v1940, %v2124
      %v2127 = vunpack.c.l.s4 1983009808
      %v2128 = vunpack.c.0.s8 %v2127
      %v2129 = vlaneseq
      %v2130 = vshrl.u32 %v2129, 7
      %v2131 = vsub.s32 %v2128, %v2130
      %v2132 = vrot.slane %v2118, %v2131
      %v2133 = vcombine.high %v2125, %v2125
      %v2134 = vcombine.high %v2132, %v2132
      %v2135 = vcombine.high %v1943, %v1943
      %v2137 = vunpack.c.l.s4 1983009808
      %v2138 = vunpack.c.0.s8 %v2137
      %v2139 = vlaneseq
      %v2140 = vshrl.u32 %v2139, 7
      %v2141 = vsub.s32 %v2138, %v2140
      %v2142 = vrot.slane %v1943, %v2141
      %v2144 = vunpack.c.l.s4 1983009808
      %v2145 = vunpack.c.0.s8 %v2144
      %v2146 = vlaneseq
      %v2147 = vshrl.u32 %v2146, 7
      %v2148 = vsub.s32 %v2145, %v2147
      %v2149 = vrot.slane %v2135, %v2148
      %v2150 = vcombine.high %v2142, %v2142
      %v2151 = vcombine.high %v2149, %v2149
      %v2152 = vcombine.high %v1948, %v1948
      %v2154 = vunpack.c.l.s4 1983009808
      %v2155 = vunpack.c.0.s8 %v2154
      %v2156 = vlaneseq
      %v2157 = vshrl.u32 %v2156, 7
      %v2158 = vsub.s32 %v2155, %v2157
      %v2159 = vrot.slane %v1948, %v2158
      %v2161 = vunpack.c.l.s4 1983009808
      %v2162 = vunpack.c.0.s8 %v2161
      %v2163 = vlaneseq
      %v2164 = vshrl.u32 %v2163, 7
      %v2165 = vsub.s32 %v2162, %v2164
      %v2166 = vrot.slane %v2152, %v2165
      %v2167 = vcombine.high %v2159, %v2159
      %v2168 = vcombine.high %v2166, %v2166
      %v2169 = vcombine.high %v1951, %v1951
      %v2171 = vunpack.c.l.s4 1983009808
      %v2172 = vunpack.c.0.s8 %v2171
      %v2173 = vlaneseq
      %v2174 = vshrl.u32 %v2173, 7
      %v2175 = vsub.s32 %v2172, %v2174
      %v2176 = vrot.slane %v1951, %v2175
      %v2178 = vunpack.c.l.s4 1983009808
      %v2179 = vunpack.c.0.s8 %v2178
      %v2180 = vlaneseq
      %v2181 = vshrl.u32 %v2180, 7
      %v2182 = vsub.s32 %v2179, %v2181
      %v2183 = vrot.slane %v2169, %v2182
      %v2184 = vcombine.high %v2176, %v2176
      %v2185 = vcombine.high %v2183, %v2183
      %v2186 = vcombine.high %v1956, %v1956
      %v2188 = vunpack.c.l.s4 1983009808
      %v2189 = vunpack.c.0.s8 %v2188
      %v2190 = vlaneseq
      %v2191 = vshrl.u32 %v2190, 7
      %v2192 = vsub.s32 %v2189, %v2191
      %v2193 = vrot.slane %v1956, %v2192
      %v2195 = vunpack.c.l.s4 1983009808
      %v2196 = vunpack.c.0.s8 %v2195
      %v2197 = vlaneseq
      %v2198 = vshrl.u32 %v2197, 7
      %v2199 = vsub.s32 %v2196, %v2198
      %v2200 = vrot.slane %v2186, %v2199
      %v2201 = vcombine.high %v2193, %v2193
      %v2202 = vcombine.high %v2200, %v2200
      %v2203 = vcombine.high %v1959, %v1959
      %v2205 = vunpack.c.l.s4 1983009808
      %v2206 = vunpack.c.0.s8 %v2205
      %v2207 = vlaneseq
      %v2208 = vshrl.u32 %v2207, 7
      %v2209 = vsub.s32 %v2206, %v2208
      %v2210 = vrot.slane %v1959, %v2209
      %v2212 = vunpack.c.l.s4 1983009808
      %v2213 = vunpack.c.0.s8 %v2212
      %v2214 = vlaneseq
      %v2215 = vshrl.u32 %v2214, 7
      %v2216 = vsub.s32 %v2213, %v2215
      %v2217 = vrot.slane %v2203, %v2216
      %v2218 = vcombine.high %v2210, %v2210
      %v2219 = vcombine.high %v2217, %v2217
      %v2220 = vcombine.high %v1964, %v1964
      %v2222 = vunpack.c.l.s4 1983009808
      %v2223 = vunpack.c.0.s8 %v2222
      %v2224 = vlaneseq
      %v2225 = vshrl.u32 %v2224, 7
      %v2226 = vsub.s32 %v2223, %v2225
      %v2227 = vrot.slane %v1964, %v2226
      %v2229 = vunpack.c.l.s4 1983009808
      %v2230 = vunpack.c.0.s8 %v2229
      %v2231 = vlaneseq
      %v2232 = vshrl.u32 %v2231, 7
      %v2233 = vsub.s32 %v2230, %v2232
      %v2234 = vrot.slane %v2220, %v2233
      %v2235 = vcombine.high %v2227, %v2227
      %v2236 = vcombine.high %v2234, %v2234
      %v2237 = vcombine.high %v1967, %v1967
      %v2239 = vunpack.c.l.s4 1983009808
      %v2240 = vunpack.c.0.s8 %v2239
      %v2241 = vlaneseq
      %v2242 = vshrl.u32 %v2241, 7
      %v2243 = vsub.s32 %v2240, %v2242
      %v2244 = vrot.slane %v1967, %v2243
      %v2246 = vunpack.c.l.s4 1983009808
      %v2247 = vunpack.c.0.s8 %v2246
      %v2248 = vlaneseq
      %v2249 = vshrl.u32 %v2248, 7
      %v2250 = vsub.s32 %v2247, %v2249
      %v2251 = vrot.slane %v2237, %v2250
      %v2252 = vcombine.high %v2244, %v2244
      %v2253 = vcombine.high %v2251, %v2251
      %v2254 = vcombine.high %v1972, %v1972
      %v2256 = vunpack.c.l.s4 1983009808
      %v2257 = vunpack.c.0.s8 %v2256
      %v2258 = vlaneseq
      %v2259 = vshrl.u32 %v2258, 7
      %v2260 = vsub.s32 %v2257, %v2259
      %v2261 = vrot.slane %v1972, %v2260
      %v2263 = vunpack.c.l.s4 1983009808
      %v2264 = vunpack.c.0.s8 %v2263
      %v2265 = vlaneseq
      %v2266 = vshrl.u32 %v2265, 7
      %v2267 = vsub.s32 %v2264, %v2266
      %v2268 = vrot.slane %v2254, %v2267
      %v2269 = vcombine.high %v2261, %v2261
      %v2270 = vcombine.high %v2268, %v2268
      %v2271 = vcombine.high %v1975, %v1975
      %v2273 = vunpack.c.l.s4 1983009808
      %v2274 = vunpack.c.0.s8 %v2273
      %v2275 = vlaneseq
      %v2276 = vshrl.u32 %v2275, 7
      %v2277 = vsub.s32 %v2274, %v2276
      %v2278 = vrot.slane %v1975, %v2277
      %v2280 = vunpack.c.l.s4 1983009808
      %v2281 = vunpack.c.0.s8 %v2280
      %v2282 = vlaneseq
      %v2283 = vshrl.u32 %v2282, 7
      %v2284 = vsub.s32 %v2281, %v2283
      %v2285 = vrot.slane %v2271, %v2284
      %v2286 = vcombine.high %v2278, %v2278
      %v2287 = vcombine.high %v2285, %v2285
      %v2288 = vcombine.high %v1980, %v1980
      %v2290 = vunpack.c.l.s4 1983009808
      %v2291 = vunpack.c.0.s8 %v2290
      %v2292 = vlaneseq
      %v2293 = vshrl.u32 %v2292, 7
      %v2294 = vsub.s32 %v2291, %v2293
      %v2295 = vrot.slane %v1980, %v2294
      %v2297 = vunpack.c.l.s4 1983009808
      %v2298 = vunpack.c.0.s8 %v2297
      %v2299 = vlaneseq
      %v2300 = vshrl.u32 %v2299, 7
      %v2301 = vsub.s32 %v2298, %v2300
      %v2302 = vrot.slane %v2288, %v2301
      %v2303 = vcombine.high %v2295, %v2295
      %v2304 = vcombine.high %v2302, %v2302
      %v2305 = vcombine.high %v1983, %v1983
      %v2307 = vunpack.c.l.s4 1983009808
      %v2308 = vunpack.c.0.s8 %v2307
      %v2309 = vlaneseq
      %v2310 = vshrl.u32 %v2309, 7
      %v2311 = vsub.s32 %v2308, %v2310
      %v2312 = vrot.slane %v1983, %v2311
      %v2314 = vunpack.c.l.s4 1983009808
      %v2315 = vunpack.c.0.s8 %v2314
      %v2316 = vlaneseq
      %v2317 = vshrl.u32 %v2316, 7
      %v2318 = vsub.s32 %v2315, %v2317
      %v2319 = vrot.slane %v2305, %v2318
      %v2320 = vcombine.high %v2312, %v2312
      %v2321 = vcombine.high %v2319, %v2319
      %v2322 = vcombine.high %v1988, %v1988
      %v2324 = vunpack.c.l.s4 1983009808
      %v2325 = vunpack.c.0.s8 %v2324
      %v2326 = vlaneseq
      %v2327 = vshrl.u32 %v2326, 7
      %v2328 = vsub.s32 %v2325, %v2327
      %v2329 = vrot.slane %v1988, %v2328
      %v2331 = vunpack.c.l.s4 1983009808
      %v2332 = vunpack.c.0.s8 %v2331
      %v2333 = vlaneseq
      %v2334 = vshrl.u32 %v2333, 7
      %v2335 = vsub.s32 %v2332, %v2334
      %v2336 = vrot.slane %v2322, %v2335
      %v2337 = vcombine.high %v2329, %v2329
      %v2338 = vcombine.high %v2336, %v2336
      %v2339 = vcombine.high %v1991, %v1991
      %v2341 = vunpack.c.l.s4 1983009808
      %v2342 = vunpack.c.0.s8 %v2341
      %v2343 = vlaneseq
      %v2344 = vshrl.u32 %v2343, 7
      %v2345 = vsub.s32 %v2342, %v2344
      %v2346 = vrot.slane %v1991, %v2345
      %v2348 = vunpack.c.l.s4 1983009808
      %v2349 = vunpack.c.0.s8 %v2348
      %v2350 = vlaneseq
      %v2351 = vshrl.u32 %v2350, 7
      %v2352 = vsub.s32 %v2349, %v2351
      %v2353 = vrot.slane %v2339, %v2352
      %v2354 = vcombine.high %v2346, %v2346
      %v2355 = vcombine.high %v2353, %v2353
      %v2356 = vcombine.high %v1996, %v1996
      %v2358 = vunpack.c.l.s4 1983009808
      %v2359 = vunpack.c.0.s8 %v2358
      %v2360 = vlaneseq
      %v2361 = vshrl.u32 %v2360, 7
      %v2362 = vsub.s32 %v2359, %v2361
      %v2363 = vrot.slane %v1996, %v2362
      %v2365 = vunpack.c.l.s4 1983009808
      %v2366 = vunpack.c.0.s8 %v2365
      %v2367 = vlaneseq
      %v2368 = vshrl.u32 %v2367, 7
      %v2369 = vsub.s32 %v2366, %v2368
      %v2370 = vrot.slane %v2356, %v2369
      %v2371 = vcombine.high %v2363, %v2363
      %v2372 = vcombine.high %v2370, %v2370
      %v2373 = vcombine.high %v1999, %v1999
      %v2375 = vunpack.c.l.s4 1983009808
      %v2376 = vunpack.c.0.s8 %v2375
      %v2377 = vlaneseq
      %v2378 = vshrl.u32 %v2377, 7
      %v2379 = vsub.s32 %v2376, %v2378
      %v2380 = vrot.slane %v1999, %v2379
      %v2382 = vunpack.c.l.s4 1983009808
      %v2383 = vunpack.c.0.s8 %v2382
      %v2384 = vlaneseq
      %v2385 = vshrl.u32 %v2384, 7
      %v2386 = vsub.s32 %v2383, %v2385
      %v2387 = vrot.slane %v2373, %v2386
      %v2388 = vcombine.high %v2380, %v2380
      %v2389 = vcombine.high %v2387, %v2387
      %v2390 = vcombine.high %v2004, %v2004
      %v2392 = vunpack.c.l.s4 1983009808
      %v2393 = vunpack.c.0.s8 %v2392
      %v2394 = vlaneseq
      %v2395 = vshrl.u32 %v2394, 7
      %v2396 = vsub.s32 %v2393, %v2395
      %v2397 = vrot.slane %v2004, %v2396
      %v2399 = vunpack.c.l.s4 1983009808
      %v2400 = vunpack.c.0.s8 %v2399
      %v2401 = vlaneseq
      %v2402 = vshrl.u32 %v2401, 7
      %v2403 = vsub.s32 %v2400, %v2402
      %v2404 = vrot.slane %v2390, %v2403
      %v2405 = vcombine.high %v2397, %v2397
      %v2406 = vcombine.high %v2404, %v2404
      %v2407 = vcombine.high %v2007, %v2007
      %v2409 = vunpack.c.l.s4 1983009808
      %v2410 = vunpack.c.0.s8 %v2409
      %v2411 = vlaneseq
      %v2412 = vshrl.u32 %v2411, 7
      %v2413 = vsub.s32 %v2410, %v2412
      %v2414 = vrot.slane %v2007, %v2413
      %v2416 = vunpack.c.l.s4 1983009808
      %v2417 = vunpack.c.0.s8 %v2416
      %v2418 = vlaneseq
      %v2419 = vshrl.u32 %v2418, 7
      %v2420 = vsub.s32 %v2417, %v2419
      %v2421 = vrot.slane %v2407, %v2420
      %v2422 = vcombine.high %v2414, %v2414
      %v2423 = vcombine.high %v2421, %v2421
      %v2424 = vcombine.high %v2012, %v2012
      %v2426 = vunpack.c.l.s4 1983009808
      %v2427 = vunpack.c.0.s8 %v2426
      %v2428 = vlaneseq
      %v2429 = vshrl.u32 %v2428, 7
      %v2430 = vsub.s32 %v2427, %v2429
      %v2431 = vrot.slane %v2012, %v2430
      %v2433 = vunpack.c.l.s4 1983009808
      %v2434 = vunpack.c.0.s8 %v2433
      %v2435 = vlaneseq
      %v2436 = vshrl.u32 %v2435, 7
      %v2437 = vsub.s32 %v2434, %v2436
      %v2438 = vrot.slane %v2424, %v2437
      %v2439 = vcombine.high %v2431, %v2431
      %v2440 = vcombine.high %v2438, %v2438
      %v2441 = vcombine.high %v2015, %v2015
      %v2443 = vunpack.c.l.s4 1983009808
      %v2444 = vunpack.c.0.s8 %v2443
      %v2445 = vlaneseq
      %v2446 = vshrl.u32 %v2445, 7
      %v2447 = vsub.s32 %v2444, %v2446
      %v2448 = vrot.slane %v2015, %v2447
      %v2450 = vunpack.c.l.s4 1983009808
      %v2451 = vunpack.c.0.s8 %v2450
      %v2452 = vlaneseq
      %v2453 = vshrl.u32 %v2452, 7
      %v2454 = vsub.s32 %v2451, %v2453
      %v2455 = vrot.slane %v2441, %v2454
      %v2456 = vcombine.high %v2448, %v2448
      %v2457 = vcombine.high %v2455, %v2455
      %v2458 = vcombine.high %v2020, %v2020
      %v2460 = vunpack.c.l.s4 1983009808
      %v2461 = vunpack.c.0.s8 %v2460
      %v2462 = vlaneseq
      %v2463 = vshrl.u32 %v2462, 7
      %v2464 = vsub.s32 %v2461, %v2463
      %v2465 = vrot.slane %v2020, %v2464
      %v2467 = vunpack.c.l.s4 1983009808
      %v2468 = vunpack.c.0.s8 %v2467
      %v2469 = vlaneseq
      %v2470 = vshrl.u32 %v2469, 7
      %v2471 = vsub.s32 %v2468, %v2470
      %v2472 = vrot.slane %v2458, %v2471
      %v2473 = vcombine.high %v2465, %v2465
      %v2474 = vcombine.high %v2472, %v2472
      %v2475 = vcombine.high %v2023, %v2023
      %v2477 = vunpack.c.l.s4 1983009808
      %v2478 = vunpack.c.0.s8 %v2477
      %v2479 = vlaneseq
      %v2480 = vshrl.u32 %v2479, 7
      %v2481 = vsub.s32 %v2478, %v2480
      %v2482 = vrot.slane %v2023, %v2481
      %v2484 = vunpack.c.l.s4 1983009808
      %v2485 = vunpack.c.0.s8 %v2484
      %v2486 = vlaneseq
      %v2487 = vshrl.u32 %v2486, 7
      %v2488 = vsub.s32 %v2485, %v2487
      %v2489 = vrot.slane %v2475, %v2488
      %v2490 = vcombine.high %v2482, %v2482
      %v2491 = vcombine.high %v2489, %v2489
      %v2492 = vcombine.high %v2028, %v2028
      %v2494 = vunpack.c.l.s4 1983009808
      %v2495 = vunpack.c.0.s8 %v2494
      %v2496 = vlaneseq
      %v2497 = vshrl.u32 %v2496, 7
      %v2498 = vsub.s32 %v2495, %v2497
      %v2499 = vrot.slane %v2028, %v2498
      %v2501 = vunpack.c.l.s4 1983009808
      %v2502 = vunpack.c.0.s8 %v2501
      %v2503 = vlaneseq
      %v2504 = vshrl.u32 %v2503, 7
      %v2505 = vsub.s32 %v2502, %v2504
      %v2506 = vrot.slane %v2492, %v2505
      %v2507 = vcombine.high %v2499, %v2499
      %v2508 = vcombine.high %v2506, %v2506
      %v2509 = vcombine.high %v2031, %v2031
      %v2511 = vunpack.c.l.s4 1983009808
      %v2512 = vunpack.c.0.s8 %v2511
      %v2513 = vlaneseq
      %v2514 = vshrl.u32 %v2513, 7
      %v2515 = vsub.s32 %v2512, %v2514
      %v2516 = vrot.slane %v2031, %v2515
      %v2518 = vunpack.c.l.s4 1983009808
      %v2519 = vunpack.c.0.s8 %v2518
      %v2520 = vlaneseq
      %v2521 = vshrl.u32 %v2520, 7
      %v2522 = vsub.s32 %v2519, %v2521
      %v2523 = vrot.slane %v2509, %v2522
      %v2524 = vcombine.high %v2516, %v2516
      %v2525 = vcombine.high %v2523, %v2523
      %v2526 = vcombine.high %v2036, %v2036
      %v2528 = vunpack.c.l.s4 1983009808
      %v2529 = vunpack.c.0.s8 %v2528
      %v2530 = vlaneseq
      %v2531 = vshrl.u32 %v2530, 7
      %v2532 = vsub.s32 %v2529, %v2531
      %v2533 = vrot.slane %v2036, %v2532
      %v2535 = vunpack.c.l.s4 1983009808
      %v2536 = vunpack.c.0.s8 %v2535
      %v2537 = vlaneseq
      %v2538 = vshrl.u32 %v2537, 7
      %v2539 = vsub.s32 %v2536, %v2538
      %v2540 = vrot.slane %v2526, %v2539
      %v2541 = vcombine.high %v2533, %v2533
      %v2542 = vcombine.high %v2540, %v2540
      %v2543 = vcombine.high %v2039, %v2039
      %v2545 = vunpack.c.l.s4 1983009808
      %v2546 = vunpack.c.0.s8 %v2545
      %v2547 = vlaneseq
      %v2548 = vshrl.u32 %v2547, 7
      %v2549 = vsub.s32 %v2546, %v2548
      %v2550 = vrot.slane %v2039, %v2549
      %v2552 = vunpack.c.l.s4 1983009808
      %v2553 = vunpack.c.0.s8 %v2552
      %v2554 = vlaneseq
      %v2555 = vshrl.u32 %v2554, 7
      %v2556 = vsub.s32 %v2553, %v2555
      %v2557 = vrot.slane %v2543, %v2556
      %v2558 = vcombine.high %v2550, %v2550
      %v2559 = vcombine.high %v2557, %v2557
      %v2560 = vcombine.high %v2044, %v2044
      %v2562 = vunpack.c.l.s4 1983009808
      %v2563 = vunpack.c.0.s8 %v2562
      %v2564 = vlaneseq
      %v2565 = vshrl.u32 %v2564, 7
      %v2566 = vsub.s32 %v2563, %v2565
      %v2567 = vrot.slane %v2044, %v2566
      %v2569 = vunpack.c.l.s4 1983009808
      %v2570 = vunpack.c.0.s8 %v2569
      %v2571 = vlaneseq
      %v2572 = vshrl.u32 %v2571, 7
      %v2573 = vsub.s32 %v2570, %v2572
      %v2574 = vrot.slane %v2560, %v2573
      %v2575 = vcombine.high %v2567, %v2567
      %v2576 = vcombine.high %v2574, %v2574
      %v2577 = vcombine.high %v2047, %v2047
      %v2579 = vunpack.c.l.s4 1983009808
      %v2580 = vunpack.c.0.s8 %v2579
      %v2581 = vlaneseq
      %v2582 = vshrl.u32 %v2581, 7
      %v2583 = vsub.s32 %v2580, %v2582
      %v2584 = vrot.slane %v2047, %v2583
      %v2586 = vunpack.c.l.s4 1983009808
      %v2587 = vunpack.c.0.s8 %v2586
      %v2588 = vlaneseq
      %v2589 = vshrl.u32 %v2588, 7
      %v2590 = vsub.s32 %v2587, %v2589
      %v2591 = vrot.slane %v2577, %v2590
      %v2592 = vcombine.high %v2584, %v2584
      %v2593 = vcombine.high %v2591, %v2591
      %v2594 = vcombine.high %v2052, %v2052
      %v2596 = vunpack.c.l.s4 1983009808
      %v2597 = vunpack.c.0.s8 %v2596
      %v2598 = vlaneseq
      %v2599 = vshrl.u32 %v2598, 7
      %v2600 = vsub.s32 %v2597, %v2599
      %v2601 = vrot.slane %v2052, %v2600
      %v2603 = vunpack.c.l.s4 1983009808
      %v2604 = vunpack.c.0.s8 %v2603
      %v2605 = vlaneseq
      %v2606 = vshrl.u32 %v2605, 7
      %v2607 = vsub.s32 %v2604, %v2606
      %v2608 = vrot.slane %v2594, %v2607
      %v2609 = vcombine.high %v2601, %v2601
      %v2610 = vcombine.high %v2608, %v2608
      %v2611 = vcombine.high %v2055, %v2055
      %v2613 = vunpack.c.l.s4 1983009808
      %v2614 = vunpack.c.0.s8 %v2613
      %v2615 = vlaneseq
      %v2616 = vshrl.u32 %v2615, 7
      %v2617 = vsub.s32 %v2614, %v2616
      %v2618 = vrot.slane %v2055, %v2617
      %v2620 = vunpack.c.l.s4 1983009808
      %v2621 = vunpack.c.0.s8 %v2620
      %v2622 = vlaneseq
      %v2623 = vshrl.u32 %v2622, 7
      %v2624 = vsub.s32 %v2621, %v2623
      %v2625 = vrot.slane %v2611, %v2624
      %v2626 = vcombine.high %v2618, %v2618
      %v2627 = vcombine.high %v2625, %v2625
      %v2628 = vcombine.high %v2060, %v2060
      %v2630 = vunpack.c.l.s4 1983009808
      %v2631 = vunpack.c.0.s8 %v2630
      %v2632 = vlaneseq
      %v2633 = vshrl.u32 %v2632, 7
      %v2634 = vsub.s32 %v2631, %v2633
      %v2635 = vrot.slane %v2060, %v2634
      %v2637 = vunpack.c.l.s4 1983009808
      %v2638 = vunpack.c.0.s8 %v2637
      %v2639 = vlaneseq
      %v2640 = vshrl.u32 %v2639, 7
      %v2641 = vsub.s32 %v2638, %v2640
      %v2642 = vrot.slane %v2628, %v2641
      %v2643 = vcombine.high %v2635, %v2635
      %v2644 = vcombine.high %v2642, %v2642
      %v2645 = vcombine.high %v2063, %v2063
      %v2647 = vunpack.c.l.s4 1983009808
      %v2648 = vunpack.c.0.s8 %v2647
      %v2649 = vlaneseq
      %v2650 = vshrl.u32 %v2649, 7
      %v2651 = vsub.s32 %v2648, %v2650
      %v2652 = vrot.slane %v2063, %v2651
      %v2654 = vunpack.c.l.s4 1983009808
      %v2655 = vunpack.c.0.s8 %v2654
      %v2656 = vlaneseq
      %v2657 = vshrl.u32 %v2656, 7
      %v2658 = vsub.s32 %v2655, %v2657
      %v2659 = vrot.slane %v2645, %v2658
      %v2660 = vcombine.high %v2652, %v2652
      %v2661 = vcombine.high %v2659, %v2659
      %v2662 = vcombine.high %v2068, %v2068
      %v2664 = vunpack.c.l.s4 1983009808
      %v2665 = vunpack.c.0.s8 %v2664
      %v2666 = vlaneseq
      %v2667 = vshrl.u32 %v2666, 7
      %v2668 = vsub.s32 %v2665, %v2667
      %v2669 = vrot.slane %v2068, %v2668
      %v2671 = vunpack.c.l.s4 1983009808
      %v2672 = vunpack.c.0.s8 %v2671
      %v2673 = vlaneseq
      %v2674 = vshrl.u32 %v2673, 7
      %v2675 = vsub.s32 %v2672, %v2674
      %v2676 = vrot.slane %v2662, %v2675
      %v2677 = vcombine.high %v2669, %v2669
      %v2678 = vcombine.high %v2676, %v2676
      %v2679 = vcombine.high %v2071, %v2071
      %v2681 = vunpack.c.l.s4 1983009808
      %v2682 = vunpack.c.0.s8 %v2681
      %v2683 = vlaneseq
      %v2684 = vshrl.u32 %v2683, 7
      %v2685 = vsub.s32 %v2682, %v2684
      %v2686 = vrot.slane %v2071, %v2685
      %v2688 = vunpack.c.l.s4 1983009808
      %v2689 = vunpack.c.0.s8 %v2688
      %v2690 = vlaneseq
      %v2691 = vshrl.u32 %v2690, 7
      %v2692 = vsub.s32 %v2689, %v2691
      %v2693 = vrot.slane %v2679, %v2692
      %v2694 = vcombine.high %v2686, %v2686
      %v2695 = vcombine.high %v2693, %v2693
      %v2696 = vcombine.high %v2076, %v2076
      %v2698 = vunpack.c.l.s4 1983009808
      %v2699 = vunpack.c.0.s8 %v2698
      %v2700 = vlaneseq
      %v2701 = vshrl.u32 %v2700, 7
      %v2702 = vsub.s32 %v2699, %v2701
      %v2703 = vrot.slane %v2076, %v2702
      %v2705 = vunpack.c.l.s4 1983009808
      %v2706 = vunpack.c.0.s8 %v2705
      %v2707 = vlaneseq
      %v2708 = vshrl.u32 %v2707, 7
      %v2709 = vsub.s32 %v2706, %v2708
      %v2710 = vrot.slane %v2696, %v2709
      %v2711 = vcombine.high %v2703, %v2703
      %v2712 = vcombine.high %v2710, %v2710
      %v2713 = vcombine.high %v2079, %v2079
      %v2715 = vunpack.c.l.s4 1983009808
      %v2716 = vunpack.c.0.s8 %v2715
      %v2717 = vlaneseq
      %v2718 = vshrl.u32 %v2717, 7
      %v2719 = vsub.s32 %v2716, %v2718
      %v2720 = vrot.slane %v2079, %v2719
      %v2722 = vunpack.c.l.s4 1983009808
      %v2723 = vunpack.c.0.s8 %v2722
      %v2724 = vlaneseq
      %v2725 = vshrl.u32 %v2724, 7
      %v2726 = vsub.s32 %v2723, %v2725
      %v2727 = vrot.slane %v2713, %v2726
      %v2728 = vcombine.high %v2720, %v2720
      %v2729 = vcombine.high %v2727, %v2727
      %v2877 = vcombine.high %v423, %v423
      %v2879 = vunpack.c.l.s4 1983009808
      %v2880 = vunpack.c.0.s8 %v2879
      %v2881 = vlaneseq
      %v2882 = vshrl.u32 %v2881, 7
      %v2883 = vsub.s32 %v2880, %v2882
      %v2884 = vrot.slane %v423, %v2883
      %v2886 = vunpack.c.l.s4 1983009808
      %v2887 = vunpack.c.0.s8 %v2886
      %v2888 = vlaneseq
      %v2889 = vshrl.u32 %v2888, 7
      %v2890 = vsub.s32 %v2887, %v2889
      %v2891 = vrot.slane %v2877, %v2890
      %v2892 = vcombine.high %v2884, %v2884
      %v2893 = vcombine.high %v2891, %v2891
      %v2894 = vcombine.high %v424, %v424
      %v2896 = vunpack.c.l.s4 1983009808
      %v2897 = vunpack.c.0.s8 %v2896
      %v2898 = vlaneseq
      %v2899 = vshrl.u32 %v2898, 7
      %v2900 = vsub.s32 %v2897, %v2899
      %v2901 = vrot.slane %v424, %v2900
      %v2903 = vunpack.c.l.s4 1983009808
      %v2904 = vunpack.c.0.s8 %v2903
      %v2905 = vlaneseq
      %v2906 = vshrl.u32 %v2905, 7
      %v2907 = vsub.s32 %v2904, %v2906
      %v2908 = vrot.slane %v2894, %v2907
      %v2909 = vcombine.high %v2901, %v2901
      %v2910 = vcombine.high %v2908, %v2908
      %v2912 = vunpack.c.l.s4 1983009808
      %v2913 = vunpack.c.0.s8 %v2912
      %v2914 = vlaneseq
      %v2915 = vshrl.u32 %v2914, 7
      %v2916 = vsub.s32 %v2913, %v2915
      %v2917 = vrot.slane %v425, %v2916
      %v2927 = vadd.f32 %v2125, %v2884
      %v2928 = vadd.f32 %v2133, %v2892
      %v2929 = vadd.f32 %v2132, %v2891
      %v2930 = vadd.f32 %v2134, %v2893
      %v2931 = vadd.f32 %v2142, %v2901
      %v2932 = vadd.f32 %v2150, %v2909
      %v2933 = vadd.f32 %v2149, %v2908
      %v2934 = vadd.f32 %v2151, %v2910
      %v2935 = vadd.f32 %v2159, %v2917
      %v2936 = vadd.f32 %v2167, %v2884
      %v2937 = vadd.f32 %v2166, %v2892
      %v2938 = vadd.f32 %v2168, %v2891
      %v2939 = vadd.f32 %v2176, %v2893
      %v2940 = vadd.f32 %v2184, %v2901
      %v2941 = vadd.f32 %v2183, %v2909
      %v2942 = vadd.f32 %v2185, %v2908
      %v2943 = vadd.f32 %v2193, %v2910
      %v2944 = vadd.f32 %v2201, %v2917
      %v2945 = vadd.f32 %v2200, %v2884
      %v2946 = vadd.f32 %v2202, %v2892
      %v2947 = vadd.f32 %v2210, %v2891
      %v2948 = vadd.f32 %v2218, %v2893
      %v2949 = vadd.f32 %v2217, %v2901
      %v2950 = vadd.f32 %v2219, %v2909
      %v2951 = vadd.f32 %v2227, %v2908
      %v2952 = vadd.f32 %v2235, %v2910
      %v2953 = vadd.f32 %v2234, %v2917
      %v2954 = vadd.f32 %v2236, %v2884
      %v2955 = vadd.f32 %v2244, %v2892
      %v2956 = vadd.f32 %v2252, %v2891
      %v2957 = vadd.f32 %v2251, %v2893
      %v2958 = vadd.f32 %v2253, %v2901
      %v2959 = vadd.f32 %v2261, %v2909
      %v2960 = vadd.f32 %v2269, %v2908
      %v2961 = vadd.f32 %v2268, %v2910
      %v2962 = vadd.f32 %v2270, %v2917
      %v2963 = vadd.f32 %v2278, %v2884
      %v2964 = vadd.f32 %v2286, %v2892
      %v2965 = vadd.f32 %v2285, %v2891
      %v2966 = vadd.f32 %v2287, %v2893
      %v2967 = vadd.f32 %v2295, %v2901
      %v2968 = vadd.f32 %v2303, %v2909
      %v2969 = vadd.f32 %v2302, %v2908
      %v2970 = vadd.f32 %v2304, %v2910
      %v2971 = vadd.f32 %v2312, %v2917
      %v2972 = vadd.f32 %v2320, %v2884
      %v2973 = vadd.f32 %v2319, %v2892
      %v2974 = vadd.f32 %v2321, %v2891
      %v2975 = vadd.f32 %v2329, %v2893
      %v2976 = vadd.f32 %v2337, %v2901
      %v2977 = vadd.f32 %v2336, %v2909
      %v2978 = vadd.f32 %v2338, %v2908
      %v2979 = vadd.f32 %v2346, %v2910
      %v2980 = vadd.f32 %v2354, %v2917
      %v2981 = vadd.f32 %v2353, %v2884
      %v2982 = vadd.f32 %v2355, %v2892
      %v2983 = vadd.f32 %v2363, %v2891
      %v2984 = vadd.f32 %v2371, %v2893
      %v2985 = vadd.f32 %v2370, %v2901
      %v2986 = vadd.f32 %v2372, %v2909
      %v2987 = vadd.f32 %v2380, %v2908
      %v2988 = vadd.f32 %v2388, %v2910
      %v2989 = vadd.f32 %v2387, %v2917
      %v2990 = vadd.f32 %v2389, %v2884
      %v2991 = vadd.f32 %v2397, %v2892
      %v2992 = vadd.f32 %v2405, %v2891
      %v2993 = vadd.f32 %v2404, %v2893
      %v2994 = vadd.f32 %v2406, %v2901
      %v2995 = vadd.f32 %v2414, %v2909
      %v2996 = vadd.f32 %v2422, %v2908
      %v2997 = vadd.f32 %v2421, %v2910
      %v2998 = vadd.f32 %v2423, %v2917
      %v2999 = vadd.f32 %v2431, %v2884
      %v3000 = vadd.f32 %v2439, %v2892
      %v3001 = vadd.f32 %v2438, %v2891
      %v3002 = vadd.f32 %v2440, %v2893
      %v3003 = vadd.f32 %v2448, %v2901
      %v3004 = vadd.f32 %v2456, %v2909
      %v3005 = vadd.f32 %v2455, %v2908
      %v3006 = vadd.f32 %v2457, %v2910
      %v3007 = vadd.f32 %v2465, %v2917
      %v3008 = vadd.f32 %v2473, %v2884
      %v3009 = vadd.f32 %v2472, %v2892
      %v3010 = vadd.f32 %v2474, %v2891
      %v3011 = vadd.f32 %v2482, %v2893
      %v3012 = vadd.f32 %v2490, %v2901
      %v3013 = vadd.f32 %v2489, %v2909
      %v3014 = vadd.f32 %v2491, %v2908
      %v3015 = vadd.f32 %v2499, %v2910
      %v3016 = vadd.f32 %v2507, %v2917
      %v3017 = vadd.f32 %v2506, %v2884
      %v3018 = vadd.f32 %v2508, %v2892
      %v3019 = vadd.f32 %v2516, %v2891
      %v3020 = vadd.f32 %v2524, %v2893
      %v3021 = vadd.f32 %v2523, %v2901
      %v3022 = vadd.f32 %v2525, %v2909
      %v3023 = vadd.f32 %v2533, %v2908
      %v3024 = vadd.f32 %v2541, %v2910
      %v3025 = vadd.f32 %v2540, %v2917
      %v3026 = vadd.f32 %v2542, %v2884
      %v3027 = vadd.f32 %v2550, %v2892
      %v3028 = vadd.f32 %v2558, %v2891
      %v3029 = vadd.f32 %v2557, %v2893
      %v3030 = vadd.f32 %v2559, %v2901
      %v3031 = vadd.f32 %v2567, %v2909
      %v3032 = vadd.f32 %v2575, %v2908
      %v3033 = vadd.f32 %v2574, %v2910
      %v3034 = vadd.f32 %v2576, %v2917
      %v3035 = vadd.f32 %v2584, %v2884
      %v3036 = vadd.f32 %v2592, %v2892
      %v3037 = vadd.f32 %v2591, %v2891
      %v3038 = vadd.f32 %v2593, %v2893
      %v3039 = vadd.f32 %v2601, %v2901
      %v3040 = vadd.f32 %v2609, %v2909
      %v3041 = vadd.f32 %v2608, %v2908
      %v3042 = vadd.f32 %v2610, %v2910
      %v3043 = vadd.f32 %v2618, %v2917
      %v3044 = vadd.f32 %v2626, %v2884
      %v3045 = vadd.f32 %v2625, %v2892
      %v3046 = vadd.f32 %v2627, %v2891
      %v3047 = vadd.f32 %v2635, %v2893
      %v3048 = vadd.f32 %v2643, %v2901
      %v3049 = vadd.f32 %v2642, %v2909
      %v3050 = vadd.f32 %v2644, %v2908
      %v3051 = vadd.f32 %v2652, %v2910
      %v3052 = vadd.f32 %v2660, %v2917
      %v3053 = vadd.f32 %v2659, %v2884
      %v3054 = vadd.f32 %v2661, %v2892
      %v3055 = vadd.f32 %v2669, %v2891
      %v3056 = vadd.f32 %v2677, %v2893
      %v3057 = vadd.f32 %v2676, %v2901
      %v3058 = vadd.f32 %v2678, %v2909
      %v3059 = vadd.f32 %v2686, %v2908
      %v3060 = vadd.f32 %v2694, %v2910
      %v3061 = vadd.f32 %v2693, %v2917
      %v3062 = vadd.f32 %v2695, %v2884
      %v3063 = vadd.f32 %v2703, %v2892
      %v3064 = vadd.f32 %v2711, %v2891
      %v3065 = vadd.f32 %v2710, %v2893
      %v3066 = vadd.f32 %v2712, %v2901
      %v3067 = vadd.f32 %v2720, %v2909
      %v3068 = vadd.f32 %v2728, %v2908
      %v3069 = vadd.f32 %v2727, %v2910
      %v3070 = vadd.f32 %v2729, %v2917
      %v3071 = vxor.u32 %v2927, 2147483648
      %v3072 = vxor.u32 %v2928, 2147483648
      %v3073 = vxor.u32 %v2929, 2147483648
      %v3074 = vxor.u32 %v2930, 2147483648
      %v3075 = vxor.u32 %v2931, 2147483648
      %v3076 = vxor.u32 %v2932, 2147483648
      %v3077 = vxor.u32 %v2933, 2147483648
      %v3078 = vxor.u32 %v2934, 2147483648
      %v3079 = vxor.u32 %v2935, 2147483648
      %v3080 = vxor.u32 %v2936, 2147483648
      %v3081 = vxor.u32 %v2937, 2147483648
      %v3082 = vxor.u32 %v2938, 2147483648
      %v3083 = vxor.u32 %v2939, 2147483648
      %v3084 = vxor.u32 %v2940, 2147483648
      %v3085 = vxor.u32 %v2941, 2147483648
      %v3086 = vxor.u32 %v2942, 2147483648
      %v3087 = vxor.u32 %v2943, 2147483648
      %v3088 = vxor.u32 %v2944, 2147483648
      %v3089 = vxor.u32 %v2945, 2147483648
      %v3090 = vxor.u32 %v2946, 2147483648
      %v3091 = vxor.u32 %v2947, 2147483648
      %v3092 = vxor.u32 %v2948, 2147483648
      %v3093 = vxor.u32 %v2949, 2147483648
      %v3094 = vxor.u32 %v2950, 2147483648
      %v3095 = vxor.u32 %v2951, 2147483648
      %v3096 = vxor.u32 %v2952, 2147483648
      %v3097 = vxor.u32 %v2953, 2147483648
      %v3098 = vxor.u32 %v2954, 2147483648
      %v3099 = vxor.u32 %v2955, 2147483648
      %v3100 = vxor.u32 %v2956, 2147483648
      %v3101 = vxor.u32 %v2957, 2147483648
      %v3102 = vxor.u32 %v2958, 2147483648
      %v3103 = vxor.u32 %v2959, 2147483648
      %v3104 = vxor.u32 %v2960, 2147483648
      %v3105 = vxor.u32 %v2961, 2147483648
      %v3106 = vxor.u32 %v2962, 2147483648
      %v3107 = vxor.u32 %v2963, 2147483648
      %v3108 = vxor.u32 %v2964, 2147483648
      %v3109 = vxor.u32 %v2965, 2147483648
      %v3110 = vxor.u32 %v2966, 2147483648
      %v3111 = vxor.u32 %v2967, 2147483648
      %v3112 = vxor.u32 %v2968, 2147483648
      %v3113 = vxor.u32 %v2969, 2147483648
      %v3114 = vxor.u32 %v2970, 2147483648
      %v3115 = vxor.u32 %v2971, 2147483648
      %v3116 = vxor.u32 %v2972, 2147483648
      %v3117 = vxor.u32 %v2973, 2147483648
      %v3118 = vxor.u32 %v2974, 2147483648
      %v3119 = vxor.u32 %v2975, 2147483648
      %v3120 = vxor.u32 %v2976, 2147483648
      %v3121 = vxor.u32 %v2977, 2147483648
      %v3122 = vxor.u32 %v2978, 2147483648
      %v3123 = vxor.u32 %v2979, 2147483648
      %v3124 = vxor.u32 %v2980, 2147483648
      %v3125 = vxor.u32 %v2981, 2147483648
      %v3126 = vxor.u32 %v2982, 2147483648
      %v3127 = vxor.u32 %v2983, 2147483648
      %v3128 = vxor.u32 %v2984, 2147483648
      %v3129 = vxor.u32 %v2985, 2147483648
      %v3130 = vxor.u32 %v2986, 2147483648
      %v3131 = vxor.u32 %v2987, 2147483648
      %v3132 = vxor.u32 %v2988, 2147483648
      %v3133 = vxor.u32 %v2989, 2147483648
      %v3134 = vxor.u32 %v2990, 2147483648
      %v3135 = vxor.u32 %v2991, 2147483648
      %v3136 = vxor.u32 %v2992, 2147483648
      %v3137 = vxor.u32 %v2993, 2147483648
      %v3138 = vxor.u32 %v2994, 2147483648
      %v3139 = vxor.u32 %v2995, 2147483648
      %v3140 = vxor.u32 %v2996, 2147483648
      %v3141 = vxor.u32 %v2997, 2147483648
      %v3142 = vxor.u32 %v2998, 2147483648
      %v3143 = vxor.u32 %v2999, 2147483648
      %v3144 = vxor.u32 %v3000, 2147483648
      %v3145 = vxor.u32 %v3001, 2147483648
      %v3146 = vxor.u32 %v3002, 2147483648
      %v3147 = vxor.u32 %v3003, 2147483648
      %v3148 = vxor.u32 %v3004, 2147483648
      %v3149 = vxor.u32 %v3005, 2147483648
      %v3150 = vxor.u32 %v3006, 2147483648
      %v3151 = vxor.u32 %v3007, 2147483648
      %v3152 = vxor.u32 %v3008, 2147483648
      %v3153 = vxor.u32 %v3009, 2147483648
      %v3154 = vxor.u32 %v3010, 2147483648
      %v3155 = vxor.u32 %v3011, 2147483648
      %v3156 = vxor.u32 %v3012, 2147483648
      %v3157 = vxor.u32 %v3013, 2147483648
      %v3158 = vxor.u32 %v3014, 2147483648
      %v3159 = vxor.u32 %v3015, 2147483648
      %v3160 = vxor.u32 %v3016, 2147483648
      %v3161 = vxor.u32 %v3017, 2147483648
      %v3162 = vxor.u32 %v3018, 2147483648
      %v3163 = vxor.u32 %v3019, 2147483648
      %v3164 = vxor.u32 %v3020, 2147483648
      %v3165 = vxor.u32 %v3021, 2147483648
      %v3166 = vxor.u32 %v3022, 2147483648
      %v3167 = vxor.u32 %v3023, 2147483648
      %v3168 = vxor.u32 %v3024, 2147483648
      %v3169 = vxor.u32 %v3025, 2147483648
      %v3170 = vxor.u32 %v3026, 2147483648
      %v3171 = vxor.u32 %v3027, 2147483648
      %v3172 = vxor.u32 %v3028, 2147483648
      %v3173 = vxor.u32 %v3029, 2147483648
      %v3174 = vxor.u32 %v3030, 2147483648
      %v3175 = vxor.u32 %v3031, 2147483648
      %v3176 = vxor.u32 %v3032, 2147483648
      %v3177 = vxor.u32 %v3033, 2147483648
      %v3178 = vxor.u32 %v3034, 2147483648
      %v3179 = vxor.u32 %v3035, 2147483648
      %v3180 = vxor.u32 %v3036, 2147483648
      %v3181 = vxor.u32 %v3037, 2147483648
      %v3182 = vxor.u32 %v3038, 2147483648
      %v3183 = vxor.u32 %v3039, 2147483648
      %v3184 = vxor.u32 %v3040, 2147483648
      %v3185 = vxor.u32 %v3041, 2147483648
      %v3186 = vxor.u32 %v3042, 2147483648
      %v3187 = vxor.u32 %v3043, 2147483648
      %v3188 = vxor.u32 %v3044, 2147483648
      %v3189 = vxor.u32 %v3045, 2147483648
      %v3190 = vxor.u32 %v3046, 2147483648
      %v3191 = vxor.u32 %v3047, 2147483648
      %v3192 = vxor.u32 %v3048, 2147483648
      %v3193 = vxor.u32 %v3049, 2147483648
      %v3194 = vxor.u32 %v3050, 2147483648
      %v3195 = vxor.u32 %v3051, 2147483648
      %v3196 = vxor.u32 %v3052, 2147483648
      %v3197 = vxor.u32 %v3053, 2147483648
      %v3198 = vxor.u32 %v3054, 2147483648
      %v3199 = vxor.u32 %v3055, 2147483648
      %v3200 = vxor.u32 %v3056, 2147483648
      %v3201 = vxor.u32 %v3057, 2147483648
      %v3202 = vxor.u32 %v3058, 2147483648
      %v3203 = vxor.u32 %v3059, 2147483648
      %v3204 = vxor.u32 %v3060, 2147483648
      %v3205 = vxor.u32 %v3061, 2147483648
      %v3206 = vxor.u32 %v3062, 2147483648
      %v3207 = vxor.u32 %v3063, 2147483648
      %v3208 = vxor.u32 %v3064, 2147483648
      %v3209 = vxor.u32 %v3065, 2147483648
      %v3210 = vxor.u32 %v3066, 2147483648
      %v3211 = vxor.u32 %v3067, 2147483648
      %v3212 = vxor.u32 %v3068, 2147483648
      %v3213 = vxor.u32 %v3069, 2147483648
      %v3214 = vxor.u32 %v3070, 2147483648
      %v3215 = vmul.f32 %v3071, 1.442695
      %v3216 = vpow.pop %v3215
      %v3217 = vmul.f32 %v3072, 1.442695
      %v3218 = vpow.pop %v3217
      %v3219 = vmul.f32 %v3073, 1.442695
      %v3220 = vpow.pop %v3219
      %v3221 = vmul.f32 %v3074, 1.442695
      %v3222 = vpow.pop %v3221
      %v3223 = vmul.f32 %v3075, 1.442695
      %v3224 = vpow.pop %v3223
      %v3225 = vmul.f32 %v3076, 1.442695
      %v3226 = vpow.pop %v3225
      %v3227 = vmul.f32 %v3077, 1.442695
      %v3228 = vpow.pop %v3227
      %v3229 = vmul.f32 %v3078, 1.442695
      %v3230 = vpow.pop %v3229
      %v3231 = vmul.f32 %v3079, 1.442695
      %v3232 = vpow.pop %v3231
      %v3233 = vmul.f32 %v3080, 1.442695
      %v3234 = vpow.pop %v3233
      %v3235 = vmul.f32 %v3081, 1.442695
      %v3236 = vpow.pop %v3235
      %v3237 = vmul.f32 %v3082, 1.442695
      %v3238 = vpow.pop %v3237
      %v3239 = vmul.f32 %v3083, 1.442695
      %v3240 = vpow.pop %v3239
      %v3241 = vmul.f32 %v3084, 1.442695
      %v3242 = vpow.pop %v3241
      %v3243 = vmul.f32 %v3085, 1.442695
      %v3244 = vpow.pop %v3243
      %v3245 = vmul.f32 %v3086, 1.442695
      %v3246 = vpow.pop %v3245
      %v3247 = vmul.f32 %v3087, 1.442695
      %v3248 = vpow.pop %v3247
      %v3249 = vmul.f32 %v3088, 1.442695
      %v3250 = vpow.pop %v3249
      %v3251 = vmul.f32 %v3089, 1.442695
      %v3252 = vpow.pop %v3251
      %v3253 = vmul.f32 %v3090, 1.442695
      %v3254 = vpow.pop %v3253
      %v3255 = vmul.f32 %v3091, 1.442695
      %v3256 = vpow.pop %v3255
      %v3257 = vmul.f32 %v3092, 1.442695
      %v3258 = vpow.pop %v3257
      %v3259 = vmul.f32 %v3093, 1.442695
      %v3260 = vpow.pop %v3259
      %v3261 = vmul.f32 %v3094, 1.442695
      %v3262 = vpow.pop %v3261
      %v3263 = vmul.f32 %v3095, 1.442695
      %v3264 = vpow.pop %v3263
      %v3265 = vmul.f32 %v3096, 1.442695
      %v3266 = vpow.pop %v3265
      %v3267 = vmul.f32 %v3097, 1.442695
      %v3268 = vpow.pop %v3267
      %v3269 = vmul.f32 %v3098, 1.442695
      %v3270 = vpow.pop %v3269
      %v3271 = vmul.f32 %v3099, 1.442695
      %v3272 = vpow.pop %v3271
      %v3273 = vmul.f32 %v3100, 1.442695
      %v3274 = vpow.pop %v3273
      %v3275 = vmul.f32 %v3101, 1.442695
      %v3276 = vpow.pop %v3275
      %v3277 = vmul.f32 %v3102, 1.442695
      %v3278 = vpow.pop %v3277
      %v3279 = vmul.f32 %v3103, 1.442695
      %v3280 = vpow.pop %v3279
      %v3281 = vmul.f32 %v3104, 1.442695
      %v3282 = vpow.pop %v3281
      %v3283 = vmul.f32 %v3105, 1.442695
      %v3284 = vpow.pop %v3283
      %v3285 = vmul.f32 %v3106, 1.442695
      %v3286 = vpow.pop %v3285
      %v3287 = vmul.f32 %v3107, 1.442695
      %v3288 = vpow.pop %v3287
      %v3289 = vmul.f32 %v3108, 1.442695
      %v3290 = vpow.pop %v3289
      %v3291 = vmul.f32 %v3109, 1.442695
      %v3292 = vpow.pop %v3291
      %v3293 = vmul.f32 %v3110, 1.442695
      %v3294 = vpow.pop %v3293
      %v3295 = vmul.f32 %v3111, 1.442695
      %v3296 = vpow.pop %v3295
      %v3297 = vmul.f32 %v3112, 1.442695
      %v3298 = vpow.pop %v3297
      %v3299 = vmul.f32 %v3113, 1.442695
      %v3300 = vpow.pop %v3299
      %v3301 = vmul.f32 %v3114, 1.442695
      %v3302 = vpow.pop %v3301
      %v3303 = vmul.f32 %v3115, 1.442695
      %v3304 = vpow.pop %v3303
      %v3305 = vmul.f32 %v3116, 1.442695
      %v3306 = vpow.pop %v3305
      %v3307 = vmul.f32 %v3117, 1.442695
      %v3308 = vpow.pop %v3307
      %v3309 = vmul.f32 %v3118, 1.442695
      %v3310 = vpow.pop %v3309
      %v3311 = vmul.f32 %v3119, 1.442695
      %v3312 = vpow.pop %v3311
      %v3313 = vmul.f32 %v3120, 1.442695
      %v3314 = vpow.pop %v3313
      %v3315 = vmul.f32 %v3121, 1.442695
      %v3316 = vpow.pop %v3315
      %v3317 = vmul.f32 %v3122, 1.442695
      %v3318 = vpow.pop %v3317
      %v3319 = vmul.f32 %v3123, 1.442695
      %v3320 = vpow.pop %v3319
      %v3321 = vmul.f32 %v3124, 1.442695
      %v3322 = vpow.pop %v3321
      %v3323 = vmul.f32 %v3125, 1.442695
      %v3324 = vpow.pop %v3323
      %v3325 = vmul.f32 %v3126, 1.442695
      %v3326 = vpow.pop %v3325
      %v3327 = vmul.f32 %v3127, 1.442695
      %v3328 = vpow.pop %v3327
      %v3329 = vmul.f32 %v3128, 1.442695
      %v3330 = vpow.pop %v3329
      %v3331 = vmul.f32 %v3129, 1.442695
      %v3332 = vpow.pop %v3331
      %v3333 = vmul.f32 %v3130, 1.442695
      %v3334 = vpow.pop %v3333
      %v3335 = vmul.f32 %v3131, 1.442695
      %v3336 = vpow.pop %v3335
      %v3337 = vmul.f32 %v3132, 1.442695
      %v3338 = vpow.pop %v3337
      %v3339 = vmul.f32 %v3133, 1.442695
      %v3340 = vpow.pop %v3339
      %v3341 = vmul.f32 %v3134, 1.442695
      %v3342 = vpow.pop %v3341
      %v3343 = vmul.f32 %v3135, 1.442695
      %v3344 = vpow.pop %v3343
      %v3345 = vmul.f32 %v3136, 1.442695
      %v3346 = vpow.pop %v3345
      %v3347 = vmul.f32 %v3137, 1.442695
      %v3348 = vpow.pop %v3347
      %v3349 = vmul.f32 %v3138, 1.442695
      %v3350 = vpow.pop %v3349
      %v3351 = vmul.f32 %v3139, 1.442695
      %v3352 = vpow.pop %v3351
      %v3353 = vmul.f32 %v3140, 1.442695
      %v3354 = vpow.pop %v3353
      %v3355 = vmul.f32 %v3141, 1.442695
      %v3356 = vpow.pop %v3355
      %v3357 = vmul.f32 %v3142, 1.442695
      %v3358 = vpow.pop %v3357
      %v3359 = vmul.f32 %v3143, 1.442695
      %v3360 = vpow.pop %v3359
      %v3361 = vmul.f32 %v3144, 1.442695
      %v3362 = vpow.pop %v3361
      %v3363 = vmul.f32 %v3145, 1.442695
      %v3364 = vpow.pop %v3363
      %v3365 = vmul.f32 %v3146, 1.442695
      %v3366 = vpow.pop %v3365
      %v3367 = vmul.f32 %v3147, 1.442695
      %v3368 = vpow.pop %v3367
      %v3369 = vmul.f32 %v3148, 1.442695
      %v3370 = vpow.pop %v3369
      %v3371 = vmul.f32 %v3149, 1.442695
      %v3372 = vpow.pop %v3371
      %v3373 = vmul.f32 %v3150, 1.442695
      %v3374 = vpow.pop %v3373
      %v3375 = vmul.f32 %v3151, 1.442695
      %v3376 = vpow.pop %v3375
      %v3377 = vmul.f32 %v3152, 1.442695
      %v3378 = vpow.pop %v3377
      %v3379 = vmul.f32 %v3153, 1.442695
      %v3380 = vpow.pop %v3379
      %v3381 = vmul.f32 %v3154, 1.442695
      %v3382 = vpow.pop %v3381
      %v3383 = vmul.f32 %v3155, 1.442695
      %v3384 = vpow.pop %v3383
      %v3385 = vmul.f32 %v3156, 1.442695
      %v3386 = vpow.pop %v3385
      %v3387 = vmul.f32 %v3157, 1.442695
      %v3388 = vpow.pop %v3387
      %v3389 = vmul.f32 %v3158, 1.442695
      %v3390 = vpow.pop %v3389
      %v3391 = vmul.f32 %v3159, 1.442695
      %v3392 = vpow.pop %v3391
      %v3393 = vmul.f32 %v3160, 1.442695
      %v3394 = vpow.pop %v3393
      %v3395 = vmul.f32 %v3161, 1.442695
      %v3396 = vpow.pop %v3395
      %v3397 = vmul.f32 %v3162, 1.442695
      %v3398 = vpow.pop %v3397
      %v3399 = vmul.f32 %v3163, 1.442695
      %v3400 = vpow.pop %v3399
      %v3401 = vmul.f32 %v3164, 1.442695
      %v3402 = vpow.pop %v3401
      %v3403 = vmul.f32 %v3165, 1.442695
      %v3404 = vpow.pop %v3403
      %v3405 = vmul.f32 %v3166, 1.442695
      %v3406 = vpow.pop %v3405
      %v3407 = vmul.f32 %v3167, 1.442695
      %v3408 = vpow.pop %v3407
      %v3409 = vmul.f32 %v3168, 1.442695
      %v3410 = vpow.pop %v3409
      %v3411 = vmul.f32 %v3169, 1.442695
      %v3412 = vpow.pop %v3411
      %v3413 = vmul.f32 %v3170, 1.442695
      %v3414 = vpow.pop %v3413
      %v3415 = vmul.f32 %v3171, 1.442695
      %v3416 = vpow.pop %v3415
      %v3417 = vmul.f32 %v3172, 1.442695
      %v3418 = vpow.pop %v3417
      %v3419 = vmul.f32 %v3173, 1.442695
      %v3420 = vpow.pop %v3419
      %v3421 = vmul.f32 %v3174, 1.442695
      %v3422 = vpow.pop %v3421
      %v3423 = vmul.f32 %v3175, 1.442695
      %v3424 = vpow.pop %v3423
      %v3425 = vmul.f32 %v3176, 1.442695
      %v3426 = vpow.pop %v3425
      %v3427 = vmul.f32 %v3177, 1.442695
      %v3428 = vpow.pop %v3427
      %v3429 = vmul.f32 %v3178, 1.442695
      %v3430 = vpow.pop %v3429
      %v3431 = vmul.f32 %v3179, 1.442695
      %v3432 = vpow.pop %v3431
      %v3433 = vmul.f32 %v3180, 1.442695
      %v3434 = vpow.pop %v3433
      %v3435 = vmul.f32 %v3181, 1.442695
      %v3436 = vpow.pop %v3435
      %v3437 = vmul.f32 %v3182, 1.442695
      %v3438 = vpow.pop %v3437
      %v3439 = vmul.f32 %v3183, 1.442695
      %v3440 = vpow.pop %v3439
      %v3441 = vmul.f32 %v3184, 1.442695
      %v3442 = vpow.pop %v3441
      %v3443 = vmul.f32 %v3185, 1.442695
      %v3444 = vpow.pop %v3443
      %v3445 = vmul.f32 %v3186, 1.442695
      %v3446 = vpow.pop %v3445
      %v3447 = vmul.f32 %v3187, 1.442695
      %v3448 = vpow.pop %v3447
      %v3449 = vmul.f32 %v3188, 1.442695
      %v3450 = vpow.pop %v3449
      %v3451 = vmul.f32 %v3189, 1.442695
      %v3452 = vpow.pop %v3451
      %v3453 = vmul.f32 %v3190, 1.442695
      %v3454 = vpow.pop %v3453
      %v3455 = vmul.f32 %v3191, 1.442695
      %v3456 = vpow.pop %v3455
      %v3457 = vmul.f32 %v3192, 1.442695
      %v3458 = vpow.pop %v3457
      %v3459 = vmul.f32 %v3193, 1.442695
      %v3460 = vpow.pop %v3459
      %v3461 = vmul.f32 %v3194, 1.442695
      %v3462 = vpow.pop %v3461
      %v3463 = vmul.f32 %v3195, 1.442695
      %v3464 = vpow.pop %v3463
      %v3465 = vmul.f32 %v3196, 1.442695
      %v3466 = vpow.pop %v3465
      %v3467 = vmul.f32 %v3197, 1.442695
      %v3468 = vpow.pop %v3467
      %v3469 = vmul.f32 %v3198, 1.442695
      %v3470 = vpow.pop %v3469
      %v3471 = vmul.f32 %v3199, 1.442695
      %v3472 = vpow.pop %v3471
      %v3473 = vmul.f32 %v3200, 1.442695
      %v3474 = vpow.pop %v3473
      %v3475 = vmul.f32 %v3201, 1.442695
      %v3476 = vpow.pop %v3475
      %v3477 = vmul.f32 %v3202, 1.442695
      %v3478 = vpow.pop %v3477
      %v3479 = vmul.f32 %v3203, 1.442695
      %v3480 = vpow.pop %v3479
      %v3481 = vmul.f32 %v3204, 1.442695
      %v3482 = vpow.pop %v3481
      %v3483 = vmul.f32 %v3205, 1.442695
      %v3484 = vpow.pop %v3483
      %v3485 = vmul.f32 %v3206, 1.442695
      %v3486 = vpow.pop %v3485
      %v3487 = vmul.f32 %v3207, 1.442695
      %v3488 = vpow.pop %v3487
      %v3489 = vmul.f32 %v3208, 1.442695
      %v3490 = vpow.pop %v3489
      %v3491 = vmul.f32 %v3209, 1.442695
      %v3492 = vpow.pop %v3491
      %v3493 = vmul.f32 %v3210, 1.442695
      %v3494 = vpow.pop %v3493
      %v3495 = vmul.f32 %v3211, 1.442695
      %v3496 = vpow.pop %v3495
      %v3497 = vmul.f32 %v3212, 1.442695
      %v3498 = vpow.pop %v3497
      %v3499 = vmul.f32 %v3213, 1.442695
      %v3500 = vpow.pop %v3499
      %v3501 = vmul.f32 %v3214, 1.442695
      %v3502 = vpow.pop %v3501
      %v3503 = vadd.f32 %v3216, 1.0
      %v3504 = vadd.f32 %v3218, 1.0
      %v3505 = vadd.f32 %v3220, 1.0
      %v3506 = vadd.f32 %v3222, 1.0
      %v3507 = vadd.f32 %v3224, 1.0
      %v3508 = vadd.f32 %v3226, 1.0
      %v3509 = vadd.f32 %v3228, 1.0
      %v3510 = vadd.f32 %v3230, 1.0
      %v3511 = vadd.f32 %v3232, 1.0
      %v3512 = vadd.f32 %v3234, 1.0
      %v3513 = vadd.f32 %v3236, 1.0
      %v3514 = vadd.f32 %v3238, 1.0
      %v3515 = vadd.f32 %v3240, 1.0
      %v3516 = vadd.f32 %v3242, 1.0
      %v3517 = vadd.f32 %v3244, 1.0
      %v3518 = vadd.f32 %v3246, 1.0
      %v3519 = vadd.f32 %v3248, 1.0
      %v3520 = vadd.f32 %v3250, 1.0
      %v3521 = vadd.f32 %v3252, 1.0
      %v3522 = vadd.f32 %v3254, 1.0
      %v3523 = vadd.f32 %v3256, 1.0
      %v3524 = vadd.f32 %v3258, 1.0
      %v3525 = vadd.f32 %v3260, 1.0
      %v3526 = vadd.f32 %v3262, 1.0
      %v3527 = vadd.f32 %v3264, 1.0
      %v3528 = vadd.f32 %v3266, 1.0
      %v3529 = vadd.f32 %v3268, 1.0
      %v3530 = vadd.f32 %v3270, 1.0
      %v3531 = vadd.f32 %v3272, 1.0
      %v3532 = vadd.f32 %v3274, 1.0
      %v3533 = vadd.f32 %v3276, 1.0
      %v3534 = vadd.f32 %v3278, 1.0
      %v3535 = vadd.f32 %v3280, 1.0
      %v3536 = vadd.f32 %v3282, 1.0
      %v3537 = vadd.f32 %v3284, 1.0
      %v3538 = vadd.f32 %v3286, 1.0
      %v3539 = vadd.f32 %v3288, 1.0
      %v3540 = vadd.f32 %v3290, 1.0
      %v3541 = vadd.f32 %v3292, 1.0
      %v3542 = vadd.f32 %v3294, 1.0
      %v3543 = vadd.f32 %v3296, 1.0
      %v3544 = vadd.f32 %v3298, 1.0
      %v3545 = vadd.f32 %v3300, 1.0
      %v3546 = vadd.f32 %v3302, 1.0
      %v3547 = vadd.f32 %v3304, 1.0
      %v3548 = vadd.f32 %v3306, 1.0
      %v3549 = vadd.f32 %v3308, 1.0
      %v3550 = vadd.f32 %v3310, 1.0
      %v3551 = vadd.f32 %v3312, 1.0
      %v3552 = vadd.f32 %v3314, 1.0
      %v3553 = vadd.f32 %v3316, 1.0
      %v3554 = vadd.f32 %v3318, 1.0
      %v3555 = vadd.f32 %v3320, 1.0
      %v3556 = vadd.f32 %v3322, 1.0
      %v3557 = vadd.f32 %v3324, 1.0
      %v3558 = vadd.f32 %v3326, 1.0
      %v3559 = vadd.f32 %v3328, 1.0
      %v3560 = vadd.f32 %v3330, 1.0
      %v3561 = vadd.f32 %v3332, 1.0
      %v3562 = vadd.f32 %v3334, 1.0
      %v3563 = vadd.f32 %v3336, 1.0
      %v3564 = vadd.f32 %v3338, 1.0
      %v3565 = vadd.f32 %v3340, 1.0
      %v3566 = vadd.f32 %v3342, 1.0
      %v3567 = vadd.f32 %v3344, 1.0
      %v3568 = vadd.f32 %v3346, 1.0
      %v3569 = vadd.f32 %v3348, 1.0
      %v3570 = vadd.f32 %v3350, 1.0
      %v3571 = vadd.f32 %v3352, 1.0
      %v3572 = vadd.f32 %v3354, 1.0
      %v3573 = vadd.f32 %v3356, 1.0
      %v3574 = vadd.f32 %v3358, 1.0
      %v3575 = vadd.f32 %v3360, 1.0
      %v3576 = vadd.f32 %v3362, 1.0
      %v3577 = vadd.f32 %v3364, 1.0
      %v3578 = vadd.f32 %v3366, 1.0
      %v3579 = vadd.f32 %v3368, 1.0
      %v3580 = vadd.f32 %v3370, 1.0
      %v3581 = vadd.f32 %v3372, 1.0
      %v3582 = vadd.f32 %v3374, 1.0
      %v3583 = vadd.f32 %v3376, 1.0
      %v3584 = vadd.f32 %v3378, 1.0
      %v3585 = vadd.f32 %v3380, 1.0
      %v3586 = vadd.f32 %v3382, 1.0
      %v3587 = vadd.f32 %v3384, 1.0
      %v3588 = vadd.f32 %v3386, 1.0
      %v3589 = vadd.f32 %v3388, 1.0
      %v3590 = vadd.f32 %v3390, 1.0
      %v3591 = vadd.f32 %v3392, 1.0
      %v3592 = vadd.f32 %v3394, 1.0
      %v3593 = vadd.f32 %v3396, 1.0
      %v3594 = vadd.f32 %v3398, 1.0
      %v3595 = vadd.f32 %v3400, 1.0
      %v3596 = vadd.f32 %v3402, 1.0
      %v3597 = vadd.f32 %v3404, 1.0
      %v3598 = vadd.f32 %v3406, 1.0
      %v3599 = vadd.f32 %v3408, 1.0
      %v3600 = vadd.f32 %v3410, 1.0
      %v3601 = vadd.f32 %v3412, 1.0
      %v3602 = vadd.f32 %v3414, 1.0
      %v3603 = vadd.f32 %v3416, 1.0
      %v3604 = vadd.f32 %v3418, 1.0
      %v3605 = vadd.f32 %v3420, 1.0
      %v3606 = vadd.f32 %v3422, 1.0
      %v3607 = vadd.f32 %v3424, 1.0
      %v3608 = vadd.f32 %v3426, 1.0
      %v3609 = vadd.f32 %v3428, 1.0
      %v3610 = vadd.f32 %v3430, 1.0
      %v3611 = vadd.f32 %v3432, 1.0
      %v3612 = vadd.f32 %v3434, 1.0
      %v3613 = vadd.f32 %v3436, 1.0
      %v3614 = vadd.f32 %v3438, 1.0
      %v3615 = vadd.f32 %v3440, 1.0
      %v3616 = vadd.f32 %v3442, 1.0
      %v3617 = vadd.f32 %v3444, 1.0
      %v3618 = vadd.f32 %v3446, 1.0
      %v3619 = vadd.f32 %v3448, 1.0
      %v3620 = vadd.f32 %v3450, 1.0
      %v3621 = vadd.f32 %v3452, 1.0
      %v3622 = vadd.f32 %v3454, 1.0
      %v3623 = vadd.f32 %v3456, 1.0
      %v3624 = vadd.f32 %v3458, 1.0
      %v3625 = vadd.f32 %v3460, 1.0
      %v3626 = vadd.f32 %v3462, 1.0
      %v3627 = vadd.f32 %v3464, 1.0
      %v3628 = vadd.f32 %v3466, 1.0
      %v3629 = vadd.f32 %v3468, 1.0
      %v3630 = vadd.f32 %v3470, 1.0
      %v3631 = vadd.f32 %v3472, 1.0
      %v3632 = vadd.f32 %v3474, 1.0
      %v3633 = vadd.f32 %v3476, 1.0
      %v3634 = vadd.f32 %v3478, 1.0
      %v3635 = vadd.f32 %v3480, 1.0
      %v3636 = vadd.f32 %v3482, 1.0
      %v3637 = vadd.f32 %v3484, 1.0
      %v3638 = vadd.f32 %v3486, 1.0
      %v3639 = vadd.f32 %v3488, 1.0
      %v3640 = vadd.f32 %v3490, 1.0
      %v3641 = vadd.f32 %v3492, 1.0
      %v3642 = vadd.f32 %v3494, 1.0
      %v3643 = vadd.f32 %v3496, 1.0
      %v3644 = vadd.f32 %v3498, 1.0
      %v3645 = vadd.f32 %v3500, 1.0
      %v3646 = vadd.f32 %v3502, 1.0
      %v3647 = vrcp.pop %v3503
      %v3648 = vmul.f32 1.0, %v3647
      %v3649 = vrcp.pop %v3504
      %v3650 = vmul.f32 1.0, %v3649
      %v3651 = vrcp.pop %v3505
      %v3652 = vmul.f32 1.0, %v3651
      %v3653 = vrcp.pop %v3506
      %v3654 = vmul.f32 1.0, %v3653
      %v3655 = vrcp.pop %v3507
      %v3656 = vmul.f32 1.0, %v3655
      %v3657 = vrcp.pop %v3508
      %v3658 = vmul.f32 1.0, %v3657
      %v3659 = vrcp.pop %v3509
      %v3660 = vmul.f32 1.0, %v3659
      %v3661 = vrcp.pop %v3510
      %v3662 = vmul.f32 1.0, %v3661
      %v3663 = vrcp.pop %v3511
      %v3664 = vmul.f32 1.0, %v3663
      %v3665 = vrcp.pop %v3512
      %v3666 = vmul.f32 1.0, %v3665
      %v3667 = vrcp.pop %v3513
      %v3668 = vmul.f32 1.0, %v3667
      %v3669 = vrcp.pop %v3514
      %v3670 = vmul.f32 1.0, %v3669
      %v3671 = vrcp.pop %v3515
      %v3672 = vmul.f32 1.0, %v3671
      %v3673 = vrcp.pop %v3516
      %v3674 = vmul.f32 1.0, %v3673
      %v3675 = vrcp.pop %v3517
      %v3676 = vmul.f32 1.0, %v3675
      %v3677 = vrcp.pop %v3518
      %v3678 = vmul.f32 1.0, %v3677
      %v3679 = vrcp.pop %v3519
      %v3680 = vmul.f32 1.0, %v3679
      %v3681 = vrcp.pop %v3520
      %v3682 = vmul.f32 1.0, %v3681
      %v3683 = vrcp.pop %v3521
      %v3684 = vmul.f32 1.0, %v3683
      %v3685 = vrcp.pop %v3522
      %v3686 = vmul.f32 1.0, %v3685
      %v3687 = vrcp.pop %v3523
      %v3688 = vmul.f32 1.0, %v3687
      %v3689 = vrcp.pop %v3524
      %v3690 = vmul.f32 1.0, %v3689
      %v3691 = vrcp.pop %v3525
      %v3692 = vmul.f32 1.0, %v3691
      %v3693 = vrcp.pop %v3526
      %v3694 = vmul.f32 1.0, %v3693
      %v3695 = vrcp.pop %v3527
      %v3696 = vmul.f32 1.0, %v3695
      %v3697 = vrcp.pop %v3528
      %v3698 = vmul.f32 1.0, %v3697
      %v3699 = vrcp.pop %v3529
      %v3700 = vmul.f32 1.0, %v3699
      %v3701 = vrcp.pop %v3530
      %v3702 = vmul.f32 1.0, %v3701
      %v3703 = vrcp.pop %v3531
      %v3704 = vmul.f32 1.0, %v3703
      %v3705 = vrcp.pop %v3532
      %v3706 = vmul.f32 1.0, %v3705
      %v3707 = vrcp.pop %v3533
      %v3708 = vmul.f32 1.0, %v3707
      %v3709 = vrcp.pop %v3534
      %v3710 = vmul.f32 1.0, %v3709
      %v3711 = vrcp.pop %v3535
      %v3712 = vmul.f32 1.0, %v3711
      %v3713 = vrcp.pop %v3536
      %v3714 = vmul.f32 1.0, %v3713
      %v3715 = vrcp.pop %v3537
      %v3716 = vmul.f32 1.0, %v3715
      %v3717 = vrcp.pop %v3538
      %v3718 = vmul.f32 1.0, %v3717
      %v3719 = vrcp.pop %v3539
      %v3720 = vmul.f32 1.0, %v3719
      %v3721 = vrcp.pop %v3540
      %v3722 = vmul.f32 1.0, %v3721
      %v3723 = vrcp.pop %v3541
      %v3724 = vmul.f32 1.0, %v3723
      %v3725 = vrcp.pop %v3542
      %v3726 = vmul.f32 1.0, %v3725
      %v3727 = vrcp.pop %v3543
      %v3728 = vmul.f32 1.0, %v3727
      %v3729 = vrcp.pop %v3544
      %v3730 = vmul.f32 1.0, %v3729
      %v3731 = vrcp.pop %v3545
      %v3732 = vmul.f32 1.0, %v3731
      %v3733 = vrcp.pop %v3546
      %v3734 = vmul.f32 1.0, %v3733
      %v3735 = vrcp.pop %v3547
      %v3736 = vmul.f32 1.0, %v3735
      %v3737 = vrcp.pop %v3548
      %v3738 = vmul.f32 1.0, %v3737
      %v3739 = vrcp.pop %v3549
      %v3740 = vmul.f32 1.0, %v3739
      %v3741 = vrcp.pop %v3550
      %v3742 = vmul.f32 1.0, %v3741
      %v3743 = vrcp.pop %v3551
      %v3744 = vmul.f32 1.0, %v3743
      %v3745 = vrcp.pop %v3552
      %v3746 = vmul.f32 1.0, %v3745
      %v3747 = vrcp.pop %v3553
      %v3748 = vmul.f32 1.0, %v3747
      %v3749 = vrcp.pop %v3554
      %v3750 = vmul.f32 1.0, %v3749
      %v3751 = vrcp.pop %v3555
      %v3752 = vmul.f32 1.0, %v3751
      %v3753 = vrcp.pop %v3556
      %v3754 = vmul.f32 1.0, %v3753
      %v3755 = vrcp.pop %v3557
      %v3756 = vmul.f32 1.0, %v3755
      %v3757 = vrcp.pop %v3558
      %v3758 = vmul.f32 1.0, %v3757
      %v3759 = vrcp.pop %v3559
      %v3760 = vmul.f32 1.0, %v3759
      %v3761 = vrcp.pop %v3560
      %v3762 = vmul.f32 1.0, %v3761
      %v3763 = vrcp.pop %v3561
      %v3764 = vmul.f32 1.0, %v3763
      %v3765 = vrcp.pop %v3562
      %v3766 = vmul.f32 1.0, %v3765
      %v3767 = vrcp.pop %v3563
      %v3768 = vmul.f32 1.0, %v3767
      %v3769 = vrcp.pop %v3564
      %v3770 = vmul.f32 1.0, %v3769
      %v3771 = vrcp.pop %v3565
      %v3772 = vmul.f32 1.0, %v3771
      %v3773 = vrcp.pop %v3566
      %v3774 = vmul.f32 1.0, %v3773
      %v3775 = vrcp.pop %v3567
      %v3776 = vmul.f32 1.0, %v3775
      %v3777 = vrcp.pop %v3568
      %v3778 = vmul.f32 1.0, %v3777
      %v3779 = vrcp.pop %v3569
      %v3780 = vmul.f32 1.0, %v3779
      %v3781 = vrcp.pop %v3570
      %v3782 = vmul.f32 1.0, %v3781
      %v3783 = vrcp.pop %v3571
      %v3784 = vmul.f32 1.0, %v3783
      %v3785 = vrcp.pop %v3572
      %v3786 = vmul.f32 1.0, %v3785
      %v3787 = vrcp.pop %v3573
      %v3788 = vmul.f32 1.0, %v3787
      %v3789 = vrcp.pop %v3574
      %v3790 = vmul.f32 1.0, %v3789
      %v3791 = vrcp.pop %v3575
      %v3792 = vmul.f32 1.0, %v3791
      %v3793 = vrcp.pop %v3576
      %v3794 = vmul.f32 1.0, %v3793
      %v3795 = vrcp.pop %v3577
      %v3796 = vmul.f32 1.0, %v3795
      %v3797 = vrcp.pop %v3578
      %v3798 = vmul.f32 1.0, %v3797
      %v3799 = vrcp.pop %v3579
      %v3800 = vmul.f32 1.0, %v3799
      %v3801 = vrcp.pop %v3580
      %v3802 = vmul.f32 1.0, %v3801
      %v3803 = vrcp.pop %v3581
      %v3804 = vmul.f32 1.0, %v3803
      %v3805 = vrcp.pop %v3582
      %v3806 = vmul.f32 1.0, %v3805
      %v3807 = vrcp.pop %v3583
      %v3808 = vmul.f32 1.0, %v3807
      %v3809 = vrcp.pop %v3584
      %v3810 = vmul.f32 1.0, %v3809
      %v3811 = vrcp.pop %v3585
      %v3812 = vmul.f32 1.0, %v3811
      %v3813 = vrcp.pop %v3586
      %v3814 = vmul.f32 1.0, %v3813
      %v3815 = vrcp.pop %v3587
      %v3816 = vmul.f32 1.0, %v3815
      %v3817 = vrcp.pop %v3588
      %v3818 = vmul.f32 1.0, %v3817
      %v3819 = vrcp.pop %v3589
      %v3820 = vmul.f32 1.0, %v3819
      %v3821 = vrcp.pop %v3590
      %v3822 = vmul.f32 1.0, %v3821
      %v3823 = vrcp.pop %v3591
      %v3824 = vmul.f32 1.0, %v3823
      %v3825 = vrcp.pop %v3592
      %v3826 = vmul.f32 1.0, %v3825
      %v3827 = vrcp.pop %v3593
      %v3828 = vmul.f32 1.0, %v3827
      %v3829 = vrcp.pop %v3594
      %v3830 = vmul.f32 1.0, %v3829
      %v3831 = vrcp.pop %v3595
      %v3832 = vmul.f32 1.0, %v3831
      %v3833 = vrcp.pop %v3596
      %v3834 = vmul.f32 1.0, %v3833
      %v3835 = vrcp.pop %v3597
      %v3836 = vmul.f32 1.0, %v3835
      %v3837 = vrcp.pop %v3598
      %v3838 = vmul.f32 1.0, %v3837
      %v3839 = vrcp.pop %v3599
      %v3840 = vmul.f32 1.0, %v3839
      %v3841 = vrcp.pop %v3600
      %v3842 = vmul.f32 1.0, %v3841
      %v3843 = vrcp.pop %v3601
      %v3844 = vmul.f32 1.0, %v3843
      %v3845 = vrcp.pop %v3602
      %v3846 = vmul.f32 1.0, %v3845
      %v3847 = vrcp.pop %v3603
      %v3848 = vmul.f32 1.0, %v3847
      %v3849 = vrcp.pop %v3604
      %v3850 = vmul.f32 1.0, %v3849
      %v3851 = vrcp.pop %v3605
      %v3852 = vmul.f32 1.0, %v3851
      %v3853 = vrcp.pop %v3606
      %v3854 = vmul.f32 1.0, %v3853
      %v3855 = vrcp.pop %v3607
      %v3856 = vmul.f32 1.0, %v3855
      %v3857 = vrcp.pop %v3608
      %v3858 = vmul.f32 1.0, %v3857
      %v3859 = vrcp.pop %v3609
      %v3860 = vmul.f32 1.0, %v3859
      %v3861 = vrcp.pop %v3610
      %v3862 = vmul.f32 1.0, %v3861
      %v3863 = vrcp.pop %v3611
      %v3864 = vmul.f32 1.0, %v3863
      %v3865 = vrcp.pop %v3612
      %v3866 = vmul.f32 1.0, %v3865
      %v3867 = vrcp.pop %v3613
      %v3868 = vmul.f32 1.0, %v3867
      %v3869 = vrcp.pop %v3614
      %v3870 = vmul.f32 1.0, %v3869
      %v3871 = vrcp.pop %v3615
      %v3872 = vmul.f32 1.0, %v3871
      %v3873 = vrcp.pop %v3616
      %v3874 = vmul.f32 1.0, %v3873
      %v3875 = vrcp.pop %v3617
      %v3876 = vmul.f32 1.0, %v3875
      %v3877 = vrcp.pop %v3618
      %v3878 = vmul.f32 1.0, %v3877
      %v3879 = vrcp.pop %v3619
      %v3880 = vmul.f32 1.0, %v3879
      %v3881 = vrcp.pop %v3620
      %v3882 = vmul.f32 1.0, %v3881
      %v3883 = vrcp.pop %v3621
      %v3884 = vmul.f32 1.0, %v3883
      %v3885 = vrcp.pop %v3622
      %v3886 = vmul.f32 1.0, %v3885
      %v3887 = vrcp.pop %v3623
      %v3888 = vmul.f32 1.0, %v3887
      %v3889 = vrcp.pop %v3624
      %v3890 = vmul.f32 1.0, %v3889
      %v3891 = vrcp.pop %v3625
      %v3892 = vmul.f32 1.0, %v3891
      %v3893 = vrcp.pop %v3626
      %v3894 = vmul.f32 1.0, %v3893
      %v3895 = vrcp.pop %v3627
      %v3896 = vmul.f32 1.0, %v3895
      %v3897 = vrcp.pop %v3628
      %v3898 = vmul.f32 1.0, %v3897
      %v3899 = vrcp.pop %v3629
      %v3900 = vmul.f32 1.0, %v3899
      %v3901 = vrcp.pop %v3630
      %v3902 = vmul.f32 1.0, %v3901
      %v3903 = vrcp.pop %v3631
      %v3904 = vmul.f32 1.0, %v3903
      %v3905 = vrcp.pop %v3632
      %v3906 = vmul.f32 1.0, %v3905
      %v3907 = vrcp.pop %v3633
      %v3908 = vmul.f32 1.0, %v3907
      %v3909 = vrcp.pop %v3634
      %v3910 = vmul.f32 1.0, %v3909
      %v3911 = vrcp.pop %v3635
      %v3912 = vmul.f32 1.0, %v3911
      %v3913 = vrcp.pop %v3636
      %v3914 = vmul.f32 1.0, %v3913
      %v3915 = vrcp.pop %v3637
      %v3916 = vmul.f32 1.0, %v3915
      %v3917 = vrcp.pop %v3638
      %v3918 = vmul.f32 1.0, %v3917
      %v3919 = vrcp.pop %v3639
      %v3920 = vmul.f32 1.0, %v3919
      %v3921 = vrcp.pop %v3640
      %v3922 = vmul.f32 1.0, %v3921
      %v3923 = vrcp.pop %v3641
      %v3924 = vmul.f32 1.0, %v3923
      %v3925 = vrcp.pop %v3642
      %v3926 = vmul.f32 1.0, %v3925
      %v3927 = vrcp.pop %v3643
      %v3928 = vmul.f32 1.0, %v3927
      %v3929 = vrcp.pop %v3644
      %v3930 = vmul.f32 1.0, %v3929
      %v3931 = vrcp.pop %v3645
      %v3932 = vmul.f32 1.0, %v3931
      %v3933 = vrcp.pop %v3646
      %v3934 = vmul.f32 1.0, %v3933
      %v3935 = vmul.f32 %v2927, %v3648
      %v3936 = vmul.f32 %v2928, %v3650
      %v3937 = vmul.f32 %v2929, %v3652
      %v3938 = vmul.f32 %v2930, %v3654
      %v3939 = vmul.f32 %v2931, %v3656
      %v3940 = vmul.f32 %v2932, %v3658
      %v3941 = vmul.f32 %v2933, %v3660
      %v3942 = vmul.f32 %v2934, %v3662
      %v3943 = vmul.f32 %v2935, %v3664
      %v3944 = vmul.f32 %v2936, %v3666
      %v3945 = vmul.f32 %v2937, %v3668
      %v3946 = vmul.f32 %v2938, %v3670
      %v3947 = vmul.f32 %v2939, %v3672
      %v3948 = vmul.f32 %v2940, %v3674
      %v3949 = vmul.f32 %v2941, %v3676
      %v3950 = vmul.f32 %v2942, %v3678
      %v3951 = vmul.f32 %v2943, %v3680
      %v3952 = vmul.f32 %v2944, %v3682
      %v3953 = vmul.f32 %v2945, %v3684
      %v3954 = vmul.f32 %v2946, %v3686
      %v3955 = vmul.f32 %v2947, %v3688
      %v3956 = vmul.f32 %v2948, %v3690
      %v3957 = vmul.f32 %v2949, %v3692
      %v3958 = vmul.f32 %v2950, %v3694
      %v3959 = vmul.f32 %v2951, %v3696
      %v3960 = vmul.f32 %v2952, %v3698
      %v3961 = vmul.f32 %v2953, %v3700
      %v3962 = vmul.f32 %v2954, %v3702
      %v3963 = vmul.f32 %v2955, %v3704
      %v3964 = vmul.f32 %v2956, %v3706
      %v3965 = vmul.f32 %v2957, %v3708
      %v3966 = vmul.f32 %v2958, %v3710
      %v3967 = vmul.f32 %v2959, %v3712
      %v3968 = vmul.f32 %v2960, %v3714
      %v3969 = vmul.f32 %v2961, %v3716
      %v3970 = vmul.f32 %v2962, %v3718
      %v3971 = vmul.f32 %v2963, %v3720
      %v3972 = vmul.f32 %v2964, %v3722
      %v3973 = vmul.f32 %v2965, %v3724
      %v3974 = vmul.f32 %v2966, %v3726
      %v3975 = vmul.f32 %v2967, %v3728
      %v3976 = vmul.f32 %v2968, %v3730
      %v3977 = vmul.f32 %v2969, %v3732
      %v3978 = vmul.f32 %v2970, %v3734
      %v3979 = vmul.f32 %v2971, %v3736
      %v3980 = vmul.f32 %v2972, %v3738
      %v3981 = vmul.f32 %v2973, %v3740
      %v3982 = vmul.f32 %v2974, %v3742
      %v3983 = vmul.f32 %v2975, %v3744
      %v3984 = vmul.f32 %v2976, %v3746
      %v3985 = vmul.f32 %v2977, %v3748
      %v3986 = vmul.f32 %v2978, %v3750
      %v3987 = vmul.f32 %v2979, %v3752
      %v3988 = vmul.f32 %v2980, %v3754
      %v3989 = vmul.f32 %v2981, %v3756
      %v3990 = vmul.f32 %v2982, %v3758
      %v3991 = vmul.f32 %v2983, %v3760
      %v3992 = vmul.f32 %v2984, %v3762
      %v3993 = vmul.f32 %v2985, %v3764
      %v3994 = vmul.f32 %v2986, %v3766
      %v3995 = vmul.f32 %v2987, %v3768
      %v3996 = vmul.f32 %v2988, %v3770
      %v3997 = vmul.f32 %v2989, %v3772
      %v3998 = vmul.f32 %v2990, %v3774
      %v3999 = vmul.f32 %v2991, %v3776
      %v4000 = vmul.f32 %v2992, %v3778
      %v4001 = vmul.f32 %v2993, %v3780
      %v4002 = vmul.f32 %v2994, %v3782
      %v4003 = vmul.f32 %v2995, %v3784
      %v4004 = vmul.f32 %v2996, %v3786
      %v4005 = vmul.f32 %v2997, %v3788
      %v4006 = vmul.f32 %v2998, %v3790
      %v4007 = vmul.f32 %v2999, %v3792
      %v4008 = vmul.f32 %v3000, %v3794
      %v4009 = vmul.f32 %v3001, %v3796
      %v4010 = vmul.f32 %v3002, %v3798
      %v4011 = vmul.f32 %v3003, %v3800
      %v4012 = vmul.f32 %v3004, %v3802
      %v4013 = vmul.f32 %v3005, %v3804
      %v4014 = vmul.f32 %v3006, %v3806
      %v4015 = vmul.f32 %v3007, %v3808
      %v4016 = vmul.f32 %v3008, %v3810
      %v4017 = vmul.f32 %v3009, %v3812
      %v4018 = vmul.f32 %v3010, %v3814
      %v4019 = vmul.f32 %v3011, %v3816
      %v4020 = vmul.f32 %v3012, %v3818
      %v4021 = vmul.f32 %v3013, %v3820
      %v4022 = vmul.f32 %v3014, %v3822
      %v4023 = vmul.f32 %v3015, %v3824
      %v4024 = vmul.f32 %v3016, %v3826
      %v4025 = vmul.f32 %v3017, %v3828
      %v4026 = vmul.f32 %v3018, %v3830
      %v4027 = vmul.f32 %v3019, %v3832
      %v4028 = vmul.f32 %v3020, %v3834
      %v4029 = vmul.f32 %v3021, %v3836
      %v4030 = vmul.f32 %v3022, %v3838
      %v4031 = vmul.f32 %v3023, %v3840
      %v4032 = vmul.f32 %v3024, %v3842
      %v4033 = vmul.f32 %v3025, %v3844
      %v4034 = vmul.f32 %v3026, %v3846
      %v4035 = vmul.f32 %v3027, %v3848
      %v4036 = vmul.f32 %v3028, %v3850
      %v4037 = vmul.f32 %v3029, %v3852
      %v4038 = vmul.f32 %v3030, %v3854
      %v4039 = vmul.f32 %v3031, %v3856
      %v4040 = vmul.f32 %v3032, %v3858
      %v4041 = vmul.f32 %v3033, %v3860
      %v4042 = vmul.f32 %v3034, %v3862
      %v4043 = vmul.f32 %v3035, %v3864
      %v4044 = vmul.f32 %v3036, %v3866
      %v4045 = vmul.f32 %v3037, %v3868
      %v4046 = vmul.f32 %v3038, %v3870
      %v4047 = vmul.f32 %v3039, %v3872
      %v4048 = vmul.f32 %v3040, %v3874
      %v4049 = vmul.f32 %v3041, %v3876
      %v4050 = vmul.f32 %v3042, %v3878
      %v4051 = vmul.f32 %v3043, %v3880
      %v4052 = vmul.f32 %v3044, %v3882
      %v4053 = vmul.f32 %v3045, %v3884
      %v4054 = vmul.f32 %v3046, %v3886
      %v4055 = vmul.f32 %v3047, %v3888
      %v4056 = vmul.f32 %v3048, %v3890
      %v4057 = vmul.f32 %v3049, %v3892
      %v4058 = vmul.f32 %v3050, %v3894
      %v4059 = vmul.f32 %v3051, %v3896
      %v4060 = vmul.f32 %v3052, %v3898
      %v4061 = vmul.f32 %v3053, %v3900
      %v4062 = vmul.f32 %v3054, %v3902
      %v4063 = vmul.f32 %v3055, %v3904
      %v4064 = vmul.f32 %v3056, %v3906
      %v4065 = vmul.f32 %v3057, %v3908
      %v4066 = vmul.f32 %v3058, %v3910
      %v4067 = vmul.f32 %v3059, %v3912
      %v4068 = vmul.f32 %v3060, %v3914
      %v4069 = vmul.f32 %v3061, %v3916
      %v4070 = vmul.f32 %v3062, %v3918
      %v4071 = vmul.f32 %v3063, %v3920
      %v4072 = vmul.f32 %v3064, %v3922
      %v4073 = vmul.f32 %v3065, %v3924
      %v4074 = vmul.f32 %v3066, %v3926
      %v4075 = vmul.f32 %v3067, %v3928
      %v4076 = vmul.f32 %v3068, %v3930
      %v4077 = vmul.f32 %v3069, %v3932
      %v4078 = vmul.f32 %v3070, %v3934
      %v4223 = vcombine.low %v3935, %v3936
      %v4224 = vcombine.low %v3937, %v3938
      %v4226 = vunpack.c.l.s4 1983009808
      %v4227 = vunpack.c.0.s8 %v4226
      %v4228 = vlaneseq
      %v4229 = vshrl.u32 %v4228, 7
      %v4230 = vsub.s32 %v4227, %v4229
      %v4231 = vrot.slane %v4223, %v4230
      %v4233 = vunpack.c.l.s4 1983009808
      %v4234 = vunpack.c.0.s8 %v4233
      %v4235 = vlaneseq
      %v4236 = vshrl.u32 %v4235, 7
      %v4237 = vsub.s32 %v4234, %v4236
      %v4238 = vrot.slane %v4224, %v4237
      %v4239 = vcombine.low %v4231, %v4238
      %v4240 = vcombine.low %v3939, %v3940
      %v4241 = vcombine.low %v3941, %v3942
      %v4243 = vunpack.c.l.s4 1983009808
      %v4244 = vunpack.c.0.s8 %v4243
      %v4245 = vlaneseq
      %v4246 = vshrl.u32 %v4245, 7
      %v4247 = vsub.s32 %v4244, %v4246
      %v4248 = vrot.slane %v4240, %v4247
      %v4250 = vunpack.c.l.s4 1983009808
      %v4251 = vunpack.c.0.s8 %v4250
      %v4252 = vlaneseq
      %v4253 = vshrl.u32 %v4252, 7
      %v4254 = vsub.s32 %v4251, %v4253
      %v4255 = vrot.slane %v4241, %v4254
      %v4256 = vcombine.low %v4248, %v4255
      %v4258 = vunpack.c.l.s4 1983009808
      %v4259 = vunpack.c.0.s8 %v4258
      %v4260 = vlaneseq
      %v4261 = vshrl.u32 %v4260, 7
      %v4262 = vsub.s32 %v4259, %v4261
      %v4263 = vrot.slane %v3943, %v4262
      %v4264 = vcombine.low %v3944, %v3945
      %v4265 = vcombine.low %v3946, %v3947
      %v4267 = vunpack.c.l.s4 1983009808
      %v4268 = vunpack.c.0.s8 %v4267
      %v4269 = vlaneseq
      %v4270 = vshrl.u32 %v4269, 7
      %v4271 = vsub.s32 %v4268, %v4270
      %v4272 = vrot.slane %v4264, %v4271
      %v4274 = vunpack.c.l.s4 1983009808
      %v4275 = vunpack.c.0.s8 %v4274
      %v4276 = vlaneseq
      %v4277 = vshrl.u32 %v4276, 7
      %v4278 = vsub.s32 %v4275, %v4277
      %v4279 = vrot.slane %v4265, %v4278
      %v4280 = vcombine.low %v4272, %v4279
      %v4281 = vcombine.low %v3948, %v3949
      %v4282 = vcombine.low %v3950, %v3951
      %v4284 = vunpack.c.l.s4 1983009808
      %v4285 = vunpack.c.0.s8 %v4284
      %v4286 = vlaneseq
      %v4287 = vshrl.u32 %v4286, 7
      %v4288 = vsub.s32 %v4285, %v4287
      %v4289 = vrot.slane %v4281, %v4288
      %v4291 = vunpack.c.l.s4 1983009808
      %v4292 = vunpack.c.0.s8 %v4291
      %v4293 = vlaneseq
      %v4294 = vshrl.u32 %v4293, 7
      %v4295 = vsub.s32 %v4292, %v4294
      %v4296 = vrot.slane %v4282, %v4295
      %v4297 = vcombine.low %v4289, %v4296
      %v4299 = vunpack.c.l.s4 1983009808
      %v4300 = vunpack.c.0.s8 %v4299
      %v4301 = vlaneseq
      %v4302 = vshrl.u32 %v4301, 7
      %v4303 = vsub.s32 %v4300, %v4302
      %v4304 = vrot.slane %v3952, %v4303
      %v4305 = vcombine.low %v3953, %v3954
      %v4306 = vcombine.low %v3955, %v3956
      %v4308 = vunpack.c.l.s4 1983009808
      %v4309 = vunpack.c.0.s8 %v4308
      %v4310 = vlaneseq
      %v4311 = vshrl.u32 %v4310, 7
      %v4312 = vsub.s32 %v4309, %v4311
      %v4313 = vrot.slane %v4305, %v4312
      %v4315 = vunpack.c.l.s4 1983009808
      %v4316 = vunpack.c.0.s8 %v4315
      %v4317 = vlaneseq
      %v4318 = vshrl.u32 %v4317, 7
      %v4319 = vsub.s32 %v4316, %v4318
      %v4320 = vrot.slane %v4306, %v4319
      %v4321 = vcombine.low %v4313, %v4320
      %v4322 = vcombine.low %v3957, %v3958
      %v4323 = vcombine.low %v3959, %v3960
      %v4325 = vunpack.c.l.s4 1983009808
      %v4326 = vunpack.c.0.s8 %v4325
      %v4327 = vlaneseq
      %v4328 = vshrl.u32 %v4327, 7
      %v4329 = vsub.s32 %v4326, %v4328
      %v4330 = vrot.slane %v4322, %v4329
      %v4332 = vunpack.c.l.s4 1983009808
      %v4333 = vunpack.c.0.s8 %v4332
      %v4334 = vlaneseq
      %v4335 = vshrl.u32 %v4334, 7
      %v4336 = vsub.s32 %v4333, %v4335
      %v4337 = vrot.slane %v4323, %v4336
      %v4338 = vcombine.low %v4330, %v4337
      %v4340 = vunpack.c.l.s4 1983009808
      %v4341 = vunpack.c.0.s8 %v4340
      %v4342 = vlaneseq
      %v4343 = vshrl.u32 %v4342, 7
      %v4344 = vsub.s32 %v4341, %v4343
      %v4345 = vrot.slane %v3961, %v4344
      %v4346 = vcombine.low %v3962, %v3963
      %v4347 = vcombine.low %v3964, %v3965
      %v4349 = vunpack.c.l.s4 1983009808
      %v4350 = vunpack.c.0.s8 %v4349
      %v4351 = vlaneseq
      %v4352 = vshrl.u32 %v4351, 7
      %v4353 = vsub.s32 %v4350, %v4352
      %v4354 = vrot.slane %v4346, %v4353
      %v4356 = vunpack.c.l.s4 1983009808
      %v4357 = vunpack.c.0.s8 %v4356
      %v4358 = vlaneseq
      %v4359 = vshrl.u32 %v4358, 7
      %v4360 = vsub.s32 %v4357, %v4359
      %v4361 = vrot.slane %v4347, %v4360
      %v4362 = vcombine.low %v4354, %v4361
      %v4363 = vcombine.low %v3966, %v3967
      %v4364 = vcombine.low %v3968, %v3969
      %v4366 = vunpack.c.l.s4 1983009808
      %v4367 = vunpack.c.0.s8 %v4366
      %v4368 = vlaneseq
      %v4369 = vshrl.u32 %v4368, 7
      %v4370 = vsub.s32 %v4367, %v4369
      %v4371 = vrot.slane %v4363, %v4370
      %v4373 = vunpack.c.l.s4 1983009808
      %v4374 = vunpack.c.0.s8 %v4373
      %v4375 = vlaneseq
      %v4376 = vshrl.u32 %v4375, 7
      %v4377 = vsub.s32 %v4374, %v4376
      %v4378 = vrot.slane %v4364, %v4377
      %v4379 = vcombine.low %v4371, %v4378
      %v4381 = vunpack.c.l.s4 1983009808
      %v4382 = vunpack.c.0.s8 %v4381
      %v4383 = vlaneseq
      %v4384 = vshrl.u32 %v4383, 7
      %v4385 = vsub.s32 %v4382, %v4384
      %v4386 = vrot.slane %v3970, %v4385
      %v4387 = vcombine.low %v3971, %v3972
      %v4388 = vcombine.low %v3973, %v3974
      %v4390 = vunpack.c.l.s4 1983009808
      %v4391 = vunpack.c.0.s8 %v4390
      %v4392 = vlaneseq
      %v4393 = vshrl.u32 %v4392, 7
      %v4394 = vsub.s32 %v4391, %v4393
      %v4395 = vrot.slane %v4387, %v4394
      %v4397 = vunpack.c.l.s4 1983009808
      %v4398 = vunpack.c.0.s8 %v4397
      %v4399 = vlaneseq
      %v4400 = vshrl.u32 %v4399, 7
      %v4401 = vsub.s32 %v4398, %v4400
      %v4402 = vrot.slane %v4388, %v4401
      %v4403 = vcombine.low %v4395, %v4402
      %v4404 = vcombine.low %v3975, %v3976
      %v4405 = vcombine.low %v3977, %v3978
      %v4407 = vunpack.c.l.s4 1983009808
      %v4408 = vunpack.c.0.s8 %v4407
      %v4409 = vlaneseq
      %v4410 = vshrl.u32 %v4409, 7
      %v4411 = vsub.s32 %v4408, %v4410
      %v4412 = vrot.slane %v4404, %v4411
      %v4414 = vunpack.c.l.s4 1983009808
      %v4415 = vunpack.c.0.s8 %v4414
      %v4416 = vlaneseq
      %v4417 = vshrl.u32 %v4416, 7
      %v4418 = vsub.s32 %v4415, %v4417
      %v4419 = vrot.slane %v4405, %v4418
      %v4420 = vcombine.low %v4412, %v4419
      %v4422 = vunpack.c.l.s4 1983009808
      %v4423 = vunpack.c.0.s8 %v4422
      %v4424 = vlaneseq
      %v4425 = vshrl.u32 %v4424, 7
      %v4426 = vsub.s32 %v4423, %v4425
      %v4427 = vrot.slane %v3979, %v4426
      %v4428 = vcombine.low %v3980, %v3981
      %v4429 = vcombine.low %v3982, %v3983
      %v4431 = vunpack.c.l.s4 1983009808
      %v4432 = vunpack.c.0.s8 %v4431
      %v4433 = vlaneseq
      %v4434 = vshrl.u32 %v4433, 7
      %v4435 = vsub.s32 %v4432, %v4434
      %v4436 = vrot.slane %v4428, %v4435
      %v4438 = vunpack.c.l.s4 1983009808
      %v4439 = vunpack.c.0.s8 %v4438
      %v4440 = vlaneseq
      %v4441 = vshrl.u32 %v4440, 7
      %v4442 = vsub.s32 %v4439, %v4441
      %v4443 = vrot.slane %v4429, %v4442
      %v4444 = vcombine.low %v4436, %v4443
      %v4445 = vcombine.low %v3984, %v3985
      %v4446 = vcombine.low %v3986, %v3987
      %v4448 = vunpack.c.l.s4 1983009808
      %v4449 = vunpack.c.0.s8 %v4448
      %v4450 = vlaneseq
      %v4451 = vshrl.u32 %v4450, 7
      %v4452 = vsub.s32 %v4449, %v4451
      %v4453 = vrot.slane %v4445, %v4452
      %v4455 = vunpack.c.l.s4 1983009808
      %v4456 = vunpack.c.0.s8 %v4455
      %v4457 = vlaneseq
      %v4458 = vshrl.u32 %v4457, 7
      %v4459 = vsub.s32 %v4456, %v4458
      %v4460 = vrot.slane %v4446, %v4459
      %v4461 = vcombine.low %v4453, %v4460
      %v4463 = vunpack.c.l.s4 1983009808
      %v4464 = vunpack.c.0.s8 %v4463
      %v4465 = vlaneseq
      %v4466 = vshrl.u32 %v4465, 7
      %v4467 = vsub.s32 %v4464, %v4466
      %v4468 = vrot.slane %v3988, %v4467
      %v4469 = vcombine.low %v3989, %v3990
      %v4470 = vcombine.low %v3991, %v3992
      %v4472 = vunpack.c.l.s4 1983009808
      %v4473 = vunpack.c.0.s8 %v4472
      %v4474 = vlaneseq
      %v4475 = vshrl.u32 %v4474, 7
      %v4476 = vsub.s32 %v4473, %v4475
      %v4477 = vrot.slane %v4469, %v4476
      %v4479 = vunpack.c.l.s4 1983009808
      %v4480 = vunpack.c.0.s8 %v4479
      %v4481 = vlaneseq
      %v4482 = vshrl.u32 %v4481, 7
      %v4483 = vsub.s32 %v4480, %v4482
      %v4484 = vrot.slane %v4470, %v4483
      %v4485 = vcombine.low %v4477, %v4484
      %v4486 = vcombine.low %v3993, %v3994
      %v4487 = vcombine.low %v3995, %v3996
      %v4489 = vunpack.c.l.s4 1983009808
      %v4490 = vunpack.c.0.s8 %v4489
      %v4491 = vlaneseq
      %v4492 = vshrl.u32 %v4491, 7
      %v4493 = vsub.s32 %v4490, %v4492
      %v4494 = vrot.slane %v4486, %v4493
      %v4496 = vunpack.c.l.s4 1983009808
      %v4497 = vunpack.c.0.s8 %v4496
      %v4498 = vlaneseq
      %v4499 = vshrl.u32 %v4498, 7
      %v4500 = vsub.s32 %v4497, %v4499
      %v4501 = vrot.slane %v4487, %v4500
      %v4502 = vcombine.low %v4494, %v4501
      %v4504 = vunpack.c.l.s4 1983009808
      %v4505 = vunpack.c.0.s8 %v4504
      %v4506 = vlaneseq
      %v4507 = vshrl.u32 %v4506, 7
      %v4508 = vsub.s32 %v4505, %v4507
      %v4509 = vrot.slane %v3997, %v4508
      %v4510 = vcombine.low %v3998, %v3999
      %v4511 = vcombine.low %v4000, %v4001
      %v4513 = vunpack.c.l.s4 1983009808
      %v4514 = vunpack.c.0.s8 %v4513
      %v4515 = vlaneseq
      %v4516 = vshrl.u32 %v4515, 7
      %v4517 = vsub.s32 %v4514, %v4516
      %v4518 = vrot.slane %v4510, %v4517
      %v4520 = vunpack.c.l.s4 1983009808
      %v4521 = vunpack.c.0.s8 %v4520
      %v4522 = vlaneseq
      %v4523 = vshrl.u32 %v4522, 7
      %v4524 = vsub.s32 %v4521, %v4523
      %v4525 = vrot.slane %v4511, %v4524
      %v4526 = vcombine.low %v4518, %v4525
      %v4527 = vcombine.low %v4002, %v4003
      %v4528 = vcombine.low %v4004, %v4005
      %v4530 = vunpack.c.l.s4 1983009808
      %v4531 = vunpack.c.0.s8 %v4530
      %v4532 = vlaneseq
      %v4533 = vshrl.u32 %v4532, 7
      %v4534 = vsub.s32 %v4531, %v4533
      %v4535 = vrot.slane %v4527, %v4534
      %v4537 = vunpack.c.l.s4 1983009808
      %v4538 = vunpack.c.0.s8 %v4537
      %v4539 = vlaneseq
      %v4540 = vshrl.u32 %v4539, 7
      %v4541 = vsub.s32 %v4538, %v4540
      %v4542 = vrot.slane %v4528, %v4541
      %v4543 = vcombine.low %v4535, %v4542
      %v4545 = vunpack.c.l.s4 1983009808
      %v4546 = vunpack.c.0.s8 %v4545
      %v4547 = vlaneseq
      %v4548 = vshrl.u32 %v4547, 7
      %v4549 = vsub.s32 %v4546, %v4548
      %v4550 = vrot.slane %v4006, %v4549
      %v4551 = vcombine.low %v4007, %v4008
      %v4552 = vcombine.low %v4009, %v4010
      %v4554 = vunpack.c.l.s4 1983009808
      %v4555 = vunpack.c.0.s8 %v4554
      %v4556 = vlaneseq
      %v4557 = vshrl.u32 %v4556, 7
      %v4558 = vsub.s32 %v4555, %v4557
      %v4559 = vrot.slane %v4551, %v4558
      %v4561 = vunpack.c.l.s4 1983009808
      %v4562 = vunpack.c.0.s8 %v4561
      %v4563 = vlaneseq
      %v4564 = vshrl.u32 %v4563, 7
      %v4565 = vsub.s32 %v4562, %v4564
      %v4566 = vrot.slane %v4552, %v4565
      %v4567 = vcombine.low %v4559, %v4566
      %v4568 = vcombine.low %v4011, %v4012
      %v4569 = vcombine.low %v4013, %v4014
      %v4571 = vunpack.c.l.s4 1983009808
      %v4572 = vunpack.c.0.s8 %v4571
      %v4573 = vlaneseq
      %v4574 = vshrl.u32 %v4573, 7
      %v4575 = vsub.s32 %v4572, %v4574
      %v4576 = vrot.slane %v4568, %v4575
      %v4578 = vunpack.c.l.s4 1983009808
      %v4579 = vunpack.c.0.s8 %v4578
      %v4580 = vlaneseq
      %v4581 = vshrl.u32 %v4580, 7
      %v4582 = vsub.s32 %v4579, %v4581
      %v4583 = vrot.slane %v4569, %v4582
      %v4584 = vcombine.low %v4576, %v4583
      %v4586 = vunpack.c.l.s4 1983009808
      %v4587 = vunpack.c.0.s8 %v4586
      %v4588 = vlaneseq
      %v4589 = vshrl.u32 %v4588, 7
      %v4590 = vsub.s32 %v4587, %v4589
      %v4591 = vrot.slane %v4015, %v4590
      %v4592 = vcombine.low %v4016, %v4017
      %v4593 = vcombine.low %v4018, %v4019
      %v4595 = vunpack.c.l.s4 1983009808
      %v4596 = vunpack.c.0.s8 %v4595
      %v4597 = vlaneseq
      %v4598 = vshrl.u32 %v4597, 7
      %v4599 = vsub.s32 %v4596, %v4598
      %v4600 = vrot.slane %v4592, %v4599
      %v4602 = vunpack.c.l.s4 1983009808
      %v4603 = vunpack.c.0.s8 %v4602
      %v4604 = vlaneseq
      %v4605 = vshrl.u32 %v4604, 7
      %v4606 = vsub.s32 %v4603, %v4605
      %v4607 = vrot.slane %v4593, %v4606
      %v4608 = vcombine.low %v4600, %v4607
      %v4609 = vcombine.low %v4020, %v4021
      %v4610 = vcombine.low %v4022, %v4023
      %v4612 = vunpack.c.l.s4 1983009808
      %v4613 = vunpack.c.0.s8 %v4612
      %v4614 = vlaneseq
      %v4615 = vshrl.u32 %v4614, 7
      %v4616 = vsub.s32 %v4613, %v4615
      %v4617 = vrot.slane %v4609, %v4616
      %v4619 = vunpack.c.l.s4 1983009808
      %v4620 = vunpack.c.0.s8 %v4619
      %v4621 = vlaneseq
      %v4622 = vshrl.u32 %v4621, 7
      %v4623 = vsub.s32 %v4620, %v4622
      %v4624 = vrot.slane %v4610, %v4623
      %v4625 = vcombine.low %v4617, %v4624
      %v4627 = vunpack.c.l.s4 1983009808
      %v4628 = vunpack.c.0.s8 %v4627
      %v4629 = vlaneseq
      %v4630 = vshrl.u32 %v4629, 7
      %v4631 = vsub.s32 %v4628, %v4630
      %v4632 = vrot.slane %v4024, %v4631
      %v4633 = vcombine.low %v4025, %v4026
      %v4634 = vcombine.low %v4027, %v4028
      %v4636 = vunpack.c.l.s4 1983009808
      %v4637 = vunpack.c.0.s8 %v4636
      %v4638 = vlaneseq
      %v4639 = vshrl.u32 %v4638, 7
      %v4640 = vsub.s32 %v4637, %v4639
      %v4641 = vrot.slane %v4633, %v4640
      %v4643 = vunpack.c.l.s4 1983009808
      %v4644 = vunpack.c.0.s8 %v4643
      %v4645 = vlaneseq
      %v4646 = vshrl.u32 %v4645, 7
      %v4647 = vsub.s32 %v4644, %v4646
      %v4648 = vrot.slane %v4634, %v4647
      %v4649 = vcombine.low %v4641, %v4648
      %v4650 = vcombine.low %v4029, %v4030
      %v4651 = vcombine.low %v4031, %v4032
      %v4653 = vunpack.c.l.s4 1983009808
      %v4654 = vunpack.c.0.s8 %v4653
      %v4655 = vlaneseq
      %v4656 = vshrl.u32 %v4655, 7
      %v4657 = vsub.s32 %v4654, %v4656
      %v4658 = vrot.slane %v4650, %v4657
      %v4660 = vunpack.c.l.s4 1983009808
      %v4661 = vunpack.c.0.s8 %v4660
      %v4662 = vlaneseq
      %v4663 = vshrl.u32 %v4662, 7
      %v4664 = vsub.s32 %v4661, %v4663
      %v4665 = vrot.slane %v4651, %v4664
      %v4666 = vcombine.low %v4658, %v4665
      %v4668 = vunpack.c.l.s4 1983009808
      %v4669 = vunpack.c.0.s8 %v4668
      %v4670 = vlaneseq
      %v4671 = vshrl.u32 %v4670, 7
      %v4672 = vsub.s32 %v4669, %v4671
      %v4673 = vrot.slane %v4033, %v4672
      %v4674 = vcombine.low %v4034, %v4035
      %v4675 = vcombine.low %v4036, %v4037
      %v4677 = vunpack.c.l.s4 1983009808
      %v4678 = vunpack.c.0.s8 %v4677
      %v4679 = vlaneseq
      %v4680 = vshrl.u32 %v4679, 7
      %v4681 = vsub.s32 %v4678, %v4680
      %v4682 = vrot.slane %v4674, %v4681
      %v4684 = vunpack.c.l.s4 1983009808
      %v4685 = vunpack.c.0.s8 %v4684
      %v4686 = vlaneseq
      %v4687 = vshrl.u32 %v4686, 7
      %v4688 = vsub.s32 %v4685, %v4687
      %v4689 = vrot.slane %v4675, %v4688
      %v4690 = vcombine.low %v4682, %v4689
      %v4691 = vcombine.low %v4038, %v4039
      %v4692 = vcombine.low %v4040, %v4041
      %v4694 = vunpack.c.l.s4 1983009808
      %v4695 = vunpack.c.0.s8 %v4694
      %v4696 = vlaneseq
      %v4697 = vshrl.u32 %v4696, 7
      %v4698 = vsub.s32 %v4695, %v4697
      %v4699 = vrot.slane %v4691, %v4698
      %v4701 = vunpack.c.l.s4 1983009808
      %v4702 = vunpack.c.0.s8 %v4701
      %v4703 = vlaneseq
      %v4704 = vshrl.u32 %v4703, 7
      %v4705 = vsub.s32 %v4702, %v4704
      %v4706 = vrot.slane %v4692, %v4705
      %v4707 = vcombine.low %v4699, %v4706
      %v4709 = vunpack.c.l.s4 1983009808
      %v4710 = vunpack.c.0.s8 %v4709
      %v4711 = vlaneseq
      %v4712 = vshrl.u32 %v4711, 7
      %v4713 = vsub.s32 %v4710, %v4712
      %v4714 = vrot.slane %v4042, %v4713
      %v4715 = vcombine.low %v4043, %v4044
      %v4716 = vcombine.low %v4045, %v4046
      %v4718 = vunpack.c.l.s4 1983009808
      %v4719 = vunpack.c.0.s8 %v4718
      %v4720 = vlaneseq
      %v4721 = vshrl.u32 %v4720, 7
      %v4722 = vsub.s32 %v4719, %v4721
      %v4723 = vrot.slane %v4715, %v4722
      %v4725 = vunpack.c.l.s4 1983009808
      %v4726 = vunpack.c.0.s8 %v4725
      %v4727 = vlaneseq
      %v4728 = vshrl.u32 %v4727, 7
      %v4729 = vsub.s32 %v4726, %v4728
      %v4730 = vrot.slane %v4716, %v4729
      %v4731 = vcombine.low %v4723, %v4730
      %v4732 = vcombine.low %v4047, %v4048
      %v4733 = vcombine.low %v4049, %v4050
      %v4735 = vunpack.c.l.s4 1983009808
      %v4736 = vunpack.c.0.s8 %v4735
      %v4737 = vlaneseq
      %v4738 = vshrl.u32 %v4737, 7
      %v4739 = vsub.s32 %v4736, %v4738
      %v4740 = vrot.slane %v4732, %v4739
      %v4742 = vunpack.c.l.s4 1983009808
      %v4743 = vunpack.c.0.s8 %v4742
      %v4744 = vlaneseq
      %v4745 = vshrl.u32 %v4744, 7
      %v4746 = vsub.s32 %v4743, %v4745
      %v4747 = vrot.slane %v4733, %v4746
      %v4748 = vcombine.low %v4740, %v4747
      %v4750 = vunpack.c.l.s4 1983009808
      %v4751 = vunpack.c.0.s8 %v4750
      %v4752 = vlaneseq
      %v4753 = vshrl.u32 %v4752, 7
      %v4754 = vsub.s32 %v4751, %v4753
      %v4755 = vrot.slane %v4051, %v4754
      %v4756 = vcombine.low %v4052, %v4053
      %v4757 = vcombine.low %v4054, %v4055
      %v4759 = vunpack.c.l.s4 1983009808
      %v4760 = vunpack.c.0.s8 %v4759
      %v4761 = vlaneseq
      %v4762 = vshrl.u32 %v4761, 7
      %v4763 = vsub.s32 %v4760, %v4762
      %v4764 = vrot.slane %v4756, %v4763
      %v4766 = vunpack.c.l.s4 1983009808
      %v4767 = vunpack.c.0.s8 %v4766
      %v4768 = vlaneseq
      %v4769 = vshrl.u32 %v4768, 7
      %v4770 = vsub.s32 %v4767, %v4769
      %v4771 = vrot.slane %v4757, %v4770
      %v4772 = vcombine.low %v4764, %v4771
      %v4773 = vcombine.low %v4056, %v4057
      %v4774 = vcombine.low %v4058, %v4059
      %v4776 = vunpack.c.l.s4 1983009808
      %v4777 = vunpack.c.0.s8 %v4776
      %v4778 = vlaneseq
      %v4779 = vshrl.u32 %v4778, 7
      %v4780 = vsub.s32 %v4777, %v4779
      %v4781 = vrot.slane %v4773, %v4780
      %v4783 = vunpack.c.l.s4 1983009808
      %v4784 = vunpack.c.0.s8 %v4783
      %v4785 = vlaneseq
      %v4786 = vshrl.u32 %v4785, 7
      %v4787 = vsub.s32 %v4784, %v4786
      %v4788 = vrot.slane %v4774, %v4787
      %v4789 = vcombine.low %v4781, %v4788
      %v4791 = vunpack.c.l.s4 1983009808
      %v4792 = vunpack.c.0.s8 %v4791
      %v4793 = vlaneseq
      %v4794 = vshrl.u32 %v4793, 7
      %v4795 = vsub.s32 %v4792, %v4794
      %v4796 = vrot.slane %v4060, %v4795
      %v4797 = vcombine.low %v4061, %v4062
      %v4798 = vcombine.low %v4063, %v4064
      %v4800 = vunpack.c.l.s4 1983009808
      %v4801 = vunpack.c.0.s8 %v4800
      %v4802 = vlaneseq
      %v4803 = vshrl.u32 %v4802, 7
      %v4804 = vsub.s32 %v4801, %v4803
      %v4805 = vrot.slane %v4797, %v4804
      %v4807 = vunpack.c.l.s4 1983009808
      %v4808 = vunpack.c.0.s8 %v4807
      %v4809 = vlaneseq
      %v4810 = vshrl.u32 %v4809, 7
      %v4811 = vsub.s32 %v4808, %v4810
      %v4812 = vrot.slane %v4798, %v4811
      %v4813 = vcombine.low %v4805, %v4812
      %v4814 = vcombine.low %v4065, %v4066
      %v4815 = vcombine.low %v4067, %v4068
      %v4817 = vunpack.c.l.s4 1983009808
      %v4818 = vunpack.c.0.s8 %v4817
      %v4819 = vlaneseq
      %v4820 = vshrl.u32 %v4819, 7
      %v4821 = vsub.s32 %v4818, %v4820
      %v4822 = vrot.slane %v4814, %v4821
      %v4824 = vunpack.c.l.s4 1983009808
      %v4825 = vunpack.c.0.s8 %v4824
      %v4826 = vlaneseq
      %v4827 = vshrl.u32 %v4826, 7
      %v4828 = vsub.s32 %v4825, %v4827
      %v4829 = vrot.slane %v4815, %v4828
      %v4830 = vcombine.low %v4822, %v4829
      %v4832 = vunpack.c.l.s4 1983009808
      %v4833 = vunpack.c.0.s8 %v4832
      %v4834 = vlaneseq
      %v4835 = vshrl.u32 %v4834, 7
      %v4836 = vsub.s32 %v4833, %v4835
      %v4837 = vrot.slane %v4069, %v4836
      %v4838 = vcombine.low %v4070, %v4071
      %v4839 = vcombine.low %v4072, %v4073
      %v4841 = vunpack.c.l.s4 1983009808
      %v4842 = vunpack.c.0.s8 %v4841
      %v4843 = vlaneseq
      %v4844 = vshrl.u32 %v4843, 7
      %v4845 = vsub.s32 %v4842, %v4844
      %v4846 = vrot.slane %v4838, %v4845
      %v4848 = vunpack.c.l.s4 1983009808
      %v4849 = vunpack.c.0.s8 %v4848
      %v4850 = vlaneseq
      %v4851 = vshrl.u32 %v4850, 7
      %v4852 = vsub.s32 %v4849, %v4851
      %v4853 = vrot.slane %v4839, %v4852
      %v4854 = vcombine.low %v4846, %v4853
      %v4855 = vcombine.low %v4074, %v4075
      %v4856 = vcombine.low %v4076, %v4077
      %v4858 = vunpack.c.l.s4 1983009808
      %v4859 = vunpack.c.0.s8 %v4858
      %v4860 = vlaneseq
      %v4861 = vshrl.u32 %v4860, 7
      %v4862 = vsub.s32 %v4859, %v4861
      %v4863 = vrot.slane %v4855, %v4862
      %v4865 = vunpack.c.l.s4 1983009808
      %v4866 = vunpack.c.0.s8 %v4865
      %v4867 = vlaneseq
      %v4868 = vshrl.u32 %v4867, 7
      %v4869 = vsub.s32 %v4866, %v4868
      %v4870 = vrot.slane %v4856, %v4869
      %v4871 = vcombine.low %v4863, %v4870
      %v4873 = vunpack.c.l.s4 1983009808
      %v4874 = vunpack.c.0.s8 %v4873
      %v4875 = vlaneseq
      %v4876 = vshrl.u32 %v4875, 7
      %v4877 = vsub.s32 %v4874, %v4876
      %v4878 = vrot.slane %v4078, %v4877
      %s4927 = scalar_lea.vmem [#allocation2], 24
      %4928 = vst.msk [vmem:[%s4927] sm:$0xff] %vm388, %v4239
      %4929 = vst.msk [vmem:[%s4927 + $0x8] sm:$0xff] %vm388, %v4256
      %4930 = vst.msk [vmem:[%s4927 + $0x10] sm:$0x3] %vm391, %v4263
      %4931 = vst.msk [vmem:[%s4927 + $0x18] sm:$0xff] %vm388, %v4280
      %4932 = vst.msk [vmem:[%s4927 + $0x20] sm:$0xff] %vm388, %v4297
      %4933 = vst.msk [vmem:[%s4927 + $0x28] sm:$0x3] %vm391, %v4304
      %4934 = vst.msk [vmem:[%s4927 + $0x30] sm:$0xff] %vm388, %v4321
      %4935 = vst.msk [vmem:[%s4927 + $0x38] sm:$0xff] %vm388, %v4338
      %4936 = vst.msk [vmem:[%s4927 + $0x40] sm:$0x3] %vm391, %v4345
      %4937 = vst.msk [vmem:[%s4927 + $0x48] sm:$0xff] %vm388, %v4362
      %4938 = vst.msk [vmem:[%s4927 + $0x50] sm:$0xff] %vm388, %v4379
      %4939 = vst.msk [vmem:[%s4927 + $0x58] sm:$0x3] %vm391, %v4386
      %4940 = vst.msk [vmem:[%s4927 + $0x60] sm:$0xff] %vm388, %v4403
      %4941 = vst.msk [vmem:[%s4927 + $0x68] sm:$0xff] %vm388, %v4420
      %4942 = vst.msk [vmem:[%s4927 + $0x70] sm:$0x3] %vm391, %v4427
      %4943 = vst.msk [vmem:[%s4927 + $0x78] sm:$0xff] %vm388, %v4444
      %4944 = vst.msk [vmem:[%s4927 + $0x80] sm:$0xff] %vm388, %v4461
      %4945 = vst.msk [vmem:[%s4927 + $0x88] sm:$0x3] %vm391, %v4468
      %4946 = vst.msk [vmem:[%s4927 + $0x90] sm:$0xff] %vm388, %v4485
      %4947 = vst.msk [vmem:[%s4927 + $0x98] sm:$0xff] %vm388, %v4502
      %4948 = vst.msk [vmem:[%s4927 + $0xa0] sm:$0x3] %vm391, %v4509
      %4949 = vst.msk [vmem:[%s4927 + $0xa8] sm:$0xff] %vm388, %v4526
      %4950 = vst.msk [vmem:[%s4927 + $0xb0] sm:$0xff] %vm388, %v4543
      %4951 = vst.msk [vmem:[%s4927 + $0xb8] sm:$0x3] %vm391, %v4550
      %4952 = vst.msk [vmem:[%s4927 + $0xc0] sm:$0xff] %vm388, %v4567
      %4953 = vst.msk [vmem:[%s4927 + $0xc8] sm:$0xff] %vm388, %v4584
      %4954 = vst.msk [vmem:[%s4927 + $0xd0] sm:$0x3] %vm391, %v4591
      %4955 = vst.msk [vmem:[%s4927 + $0xd8] sm:$0xff] %vm388, %v4608
      %4956 = vst.msk [vmem:[%s4927 + $0xe0] sm:$0xff] %vm388, %v4625
      %4957 = vst.msk [vmem:[%s4927 + $0xe8] sm:$0x3] %vm391, %v4632
      %4958 = vst.msk [vmem:[%s4927 + $0xf0] sm:$0xff] %vm388, %v4649
      %4959 = vst.msk [vmem:[%s4927 + $0xf8] sm:$0xff] %vm388, %v4666
      %4960 = vst.msk [vmem:[%s4927 + $0x100] sm:$0x3] %vm391, %v4673
      %4961 = vst.msk [vmem:[%s4927 + $0x108] sm:$0xff] %vm388, %v4690
      %4962 = vst.msk [vmem:[%s4927 + $0x110] sm:$0xff] %vm388, %v4707
      %4963 = vst.msk [vmem:[%s4927 + $0x118] sm:$0x3] %vm391, %v4714
      %4964 = vst.msk [vmem:[%s4927 + $0x120] sm:$0xff] %vm388, %v4731
      %4965 = vst.msk [vmem:[%s4927 + $0x128] sm:$0xff] %vm388, %v4748
      %4966 = vst.msk [vmem:[%s4927 + $0x130] sm:$0x3] %vm391, %v4755
      %4967 = vst.msk [vmem:[%s4927 + $0x138] sm:$0xff] %vm388, %v4772
      %4968 = vst.msk [vmem:[%s4927 + $0x140] sm:$0xff] %vm388, %v4789
      %4969 = vst.msk [vmem:[%s4927 + $0x148] sm:$0x3] %vm391, %v4796
      %4970 = vst.msk [vmem:[%s4927 + $0x150] sm:$0xff] %vm388, %v4813
      %4971 = vst.msk [vmem:[%s4927 + $0x158] sm:$0xff] %vm388, %v4830
      %4972 = vst.msk [vmem:[%s4927 + $0x160] sm:$0x3] %vm391, %v4837
      %4973 = vst.msk [vmem:[%s4927 + $0x168] sm:$0xff] %vm388, %v4854
      %4974 = vst.msk [vmem:[%s4927 + $0x170] sm:$0xff] %vm388, %v4871
      %4975 = vst.msk [vmem:[%s4927 + $0x178] sm:$0x3] %vm391, %v4878
      %v4976 = vld [vmem:[%s3] sm:$0xff]
      %v4977 = vld [vmem:[%s3 + $0x8] sm:$0x1]
      %v4978 = vld [vmem:[%s4] sm:$0x1]
      %v4979 = vld [vmem:[%s10] sm:$0x1]
      %v4980 = vld [vmem:[#allocation2] sm:$0xff]
      %v4981 = vld [vmem:[#allocation2 + $0x8] sm:$0xff]
      %v4982 = vld [vmem:[#allocation2 + $0x18] sm:$0xff]
      %v4983 = vld [vmem:[#allocation2 + $0x20] sm:$0xff]
      %v4984 = vld [vmem:[#allocation2 + $0x30] sm:$0xff]
      %v4985 = vld [vmem:[#allocation2 + $0x38] sm:$0xff]
      %v4986 = vld [vmem:[#allocation2 + $0x48] sm:$0xff]
      %v4987 = vld [vmem:[#allocation2 + $0x50] sm:$0xff]
      %v4988 = vld [vmem:[#allocation2 + $0x60] sm:$0xff]
      %v4989 = vld [vmem:[#allocation2 + $0x68] sm:$0xff]
      %v4990 = vld [vmem:[#allocation2 + $0x78] sm:$0xff]
      %v4991 = vld [vmem:[#allocation2 + $0x80] sm:$0xff]
      %v4992 = vld [vmem:[#allocation2 + $0x90] sm:$0xff]
      %v4993 = vld [vmem:[#allocation2 + $0x98] sm:$0xff]
      %v4994 = vld [vmem:[#allocation2 + $0xa8] sm:$0xff]
      %v4995 = vld [vmem:[#allocation2 + $0xb0] sm:$0xff]
      %v4996 = vld [vmem:[#allocation2 + $0xc0] sm:$0xff]
      %v4997 = vld [vmem:[#allocation2 + $0xc8] sm:$0xff]
      %v4998 = vld [vmem:[#allocation2 + $0xd8] sm:$0xff]
      %v4999 = vld [vmem:[#allocation2 + $0xe0] sm:$0xff]
      %v5000 = vld [vmem:[#allocation2 + $0xf0] sm:$0xff]
      %v5001 = vld [vmem:[#allocation2 + $0xf8] sm:$0xff]
      %v5002 = vld [vmem:[#allocation2 + $0x108] sm:$0xff]
      %v5003 = vld [vmem:[#allocation2 + $0x110] sm:$0xff]
      %v5004 = vld [vmem:[#allocation2 + $0x120] sm:$0xff]
      %v5005 = vld [vmem:[#allocation2 + $0x128] sm:$0xff]
      %v5006 = vld [vmem:[#allocation2 + $0x138] sm:$0xff]
      %v5007 = vld [vmem:[#allocation2 + $0x140] sm:$0xff]
      %v5008 = vld [vmem:[#allocation2 + $0x150] sm:$0xff]
      %v5009 = vld [vmem:[#allocation2 + $0x158] sm:$0xff]
      %v5010 = vld [vmem:[#allocation2 + $0x168] sm:$0xff]
      %v5011 = vld [vmem:[#allocation2 + $0x170] sm:$0xff]
      %v5012 = vlaneseq
      %v5013 = vshrl.u32 %v5012, 7
      %v5014 = vsub.s32 0, %v5013
      %v5015 = vrot.slane %v4976, %v5014
      %v5016 = vmul.f32 %v4980, %v5015
      %v5017 = vmul.f32 %v4981, %v5015
      %v5018 = vmul.f32 %v4982, %v5015
      %v5019 = vmul.f32 %v4983, %v5015
      %v5020 = vmul.f32 %v4984, %v5015
      %v5021 = vmul.f32 %v4985, %v5015
      %v5022 = vmul.f32 %v4986, %v5015
      %v5023 = vmul.f32 %v4987, %v5015
      %v5024 = vmul.f32 %v4988, %v5015
      %v5025 = vmul.f32 %v4989, %v5015
      %v5026 = vmul.f32 %v4990, %v5015
      %v5027 = vmul.f32 %v4991, %v5015
      %v5028 = vmul.f32 %v4992, %v5015
      %v5029 = vmul.f32 %v4993, %v5015
      %v5030 = vmul.f32 %v4994, %v5015
      %v5031 = vmul.f32 %v4995, %v5015
      %v5032 = vmul.f32 %v4996, %v5015
      %v5033 = vmul.f32 %v4997, %v5015
      %v5034 = vmul.f32 %v4998, %v5015
      %v5035 = vmul.f32 %v4999, %v5015
      %v5036 = vmul.f32 %v5000, %v5015
      %v5037 = vmul.f32 %v5001, %v5015
      %v5038 = vmul.f32 %v5002, %v5015
      %v5039 = vmul.f32 %v5003, %v5015
      %v5040 = vmul.f32 %v5004, %v5015
      %v5041 = vmul.f32 %v5005, %v5015
      %v5042 = vmul.f32 %v5006, %v5015
      %v5043 = vmul.f32 %v5007, %v5015
      %v5044 = vmul.f32 %v5008, %v5015
      %v5045 = vmul.f32 %v5009, %v5015
      %v5046 = vmul.f32 %v5010, %v5015
      %v5047 = vmul.f32 %v5011, %v5015
      %v5048 = vadd.f32 %v5016, 0.0
      %v5049 = vadd.f32 %v5017, 0.0
      %v5050 = vadd.f32 %v5018, 0.0
      %v5051 = vadd.f32 %v5019, 0.0
      %v5052 = vadd.f32 %v5020, 0.0
      %v5053 = vadd.f32 %v5021, 0.0
      %v5054 = vadd.f32 %v5022, 0.0
      %v5055 = vadd.f32 %v5023, 0.0
      %v5056 = vadd.f32 %v5024, 0.0
      %v5057 = vadd.f32 %v5025, 0.0
      %v5058 = vadd.f32 %v5026, 0.0
      %v5059 = vadd.f32 %v5027, 0.0
      %v5060 = vadd.f32 %v5028, 0.0
      %v5061 = vadd.f32 %v5029, 0.0
      %v5062 = vadd.f32 %v5030, 0.0
      %v5063 = vadd.f32 %v5031, 0.0
      %v5064 = vadd.f32 %v5032, 0.0
      %v5065 = vadd.f32 %v5033, 0.0
      %v5066 = vadd.f32 %v5034, 0.0
      %v5067 = vadd.f32 %v5035, 0.0
      %v5068 = vadd.f32 %v5036, 0.0
      %v5069 = vadd.f32 %v5037, 0.0
      %v5070 = vadd.f32 %v5038, 0.0
      %v5071 = vadd.f32 %v5039, 0.0
      %v5072 = vadd.f32 %v5040, 0.0
      %v5073 = vadd.f32 %v5041, 0.0
      %v5074 = vadd.f32 %v5042, 0.0
      %v5075 = vadd.f32 %v5043, 0.0
      %v5076 = vadd.f32 %v5044, 0.0
      %v5077 = vadd.f32 %v5045, 0.0
      %v5078 = vadd.f32 %v5046, 0.0
      %v5079 = vadd.f32 %v5047, 0.0
      %v5080 = vld [vmem:[#allocation2 + $0x1] sm:$0xff]
      %v5081 = vld [vmem:[#allocation2 + $0x9] sm:$0xff]
      %v5082 = vld [vmem:[#allocation2 + $0x19] sm:$0xff]
      %v5083 = vld [vmem:[#allocation2 + $0x21] sm:$0xff]
      %v5084 = vld [vmem:[#allocation2 + $0x31] sm:$0xff]
      %v5085 = vld [vmem:[#allocation2 + $0x39] sm:$0xff]
      %v5086 = vld [vmem:[#allocation2 + $0x49] sm:$0xff]
      %v5087 = vld [vmem:[#allocation2 + $0x51] sm:$0xff]
      %v5088 = vld [vmem:[#allocation2 + $0x61] sm:$0xff]
      %v5089 = vld [vmem:[#allocation2 + $0x69] sm:$0xff]
      %v5090 = vld [vmem:[#allocation2 + $0x79] sm:$0xff]
      %v5091 = vld [vmem:[#allocation2 + $0x81] sm:$0xff]
      %v5092 = vld [vmem:[#allocation2 + $0x91] sm:$0xff]
      %v5093 = vld [vmem:[#allocation2 + $0x99] sm:$0xff]
      %v5094 = vld [vmem:[#allocation2 + $0xa9] sm:$0xff]
      %v5095 = vld [vmem:[#allocation2 + $0xb1] sm:$0xff]
      %v5096 = vld [vmem:[#allocation2 + $0xc1] sm:$0xff]
      %v5097 = vld [vmem:[#allocation2 + $0xc9] sm:$0xff]
      %v5098 = vld [vmem:[#allocation2 + $0xd9] sm:$0xff]
      %v5099 = vld [vmem:[#allocation2 + $0xe1] sm:$0xff]
      %v5100 = vld [vmem:[#allocation2 + $0xf1] sm:$0xff]
      %v5101 = vld [vmem:[#allocation2 + $0xf9] sm:$0xff]
      %v5102 = vld [vmem:[#allocation2 + $0x109] sm:$0xff]
      %v5103 = vld [vmem:[#allocation2 + $0x111] sm:$0xff]
      %v5104 = vld [vmem:[#allocation2 + $0x121] sm:$0xff]
      %v5105 = vld [vmem:[#allocation2 + $0x129] sm:$0xff]
      %v5106 = vld [vmem:[#allocation2 + $0x139] sm:$0xff]
      %v5107 = vld [vmem:[#allocation2 + $0x141] sm:$0xff]
      %v5108 = vld [vmem:[#allocation2 + $0x151] sm:$0xff]
      %v5109 = vld [vmem:[#allocation2 + $0x159] sm:$0xff]
      %v5110 = vld [vmem:[#allocation2 + $0x169] sm:$0xff]
      %v5111 = vld [vmem:[#allocation2 + $0x171] sm:$0xff]
      %v5112 = vlaneseq
      %v5113 = vshrl.u32 %v5112, 7
      %v5114 = vsub.s32 1, %v5113
      %v5115 = vrot.slane %v4976, %v5114
      %v5116 = vmul.f32 %v5080, %v5115
      %v5117 = vmul.f32 %v5081, %v5115
      %v5118 = vmul.f32 %v5082, %v5115
      %v5119 = vmul.f32 %v5083, %v5115
      %v5120 = vmul.f32 %v5084, %v5115
      %v5121 = vmul.f32 %v5085, %v5115
      %v5122 = vmul.f32 %v5086, %v5115
      %v5123 = vmul.f32 %v5087, %v5115
      %v5124 = vmul.f32 %v5088, %v5115
      %v5125 = vmul.f32 %v5089, %v5115
      %v5126 = vmul.f32 %v5090, %v5115
      %v5127 = vmul.f32 %v5091, %v5115
      %v5128 = vmul.f32 %v5092, %v5115
      %v5129 = vmul.f32 %v5093, %v5115
      %v5130 = vmul.f32 %v5094, %v5115
      %v5131 = vmul.f32 %v5095, %v5115
      %v5132 = vmul.f32 %v5096, %v5115
      %v5133 = vmul.f32 %v5097, %v5115
      %v5134 = vmul.f32 %v5098, %v5115
      %v5135 = vmul.f32 %v5099, %v5115
      %v5136 = vmul.f32 %v5100, %v5115
      %v5137 = vmul.f32 %v5101, %v5115
      %v5138 = vmul.f32 %v5102, %v5115
      %v5139 = vmul.f32 %v5103, %v5115
      %v5140 = vmul.f32 %v5104, %v5115
      %v5141 = vmul.f32 %v5105, %v5115
      %v5142 = vmul.f32 %v5106, %v5115
      %v5143 = vmul.f32 %v5107, %v5115
      %v5144 = vmul.f32 %v5108, %v5115
      %v5145 = vmul.f32 %v5109, %v5115
      %v5146 = vmul.f32 %v5110, %v5115
      %v5147 = vmul.f32 %v5111, %v5115
      %v5148 = vadd.f32 %v5048, %v5116
      %v5149 = vadd.f32 %v5049, %v5117
      %v5150 = vadd.f32 %v5050, %v5118
      %v5151 = vadd.f32 %v5051, %v5119
      %v5152 = vadd.f32 %v5052, %v5120
      %v5153 = vadd.f32 %v5053, %v5121
      %v5154 = vadd.f32 %v5054, %v5122
      %v5155 = vadd.f32 %v5055, %v5123
      %v5156 = vadd.f32 %v5056, %v5124
      %v5157 = vadd.f32 %v5057, %v5125
      %v5158 = vadd.f32 %v5058, %v5126
      %v5159 = vadd.f32 %v5059, %v5127
      %v5160 = vadd.f32 %v5060, %v5128
      %v5161 = vadd.f32 %v5061, %v5129
      %v5162 = vadd.f32 %v5062, %v5130
      %v5163 = vadd.f32 %v5063, %v5131
      %v5164 = vadd.f32 %v5064, %v5132
      %v5165 = vadd.f32 %v5065, %v5133
      %v5166 = vadd.f32 %v5066, %v5134
      %v5167 = vadd.f32 %v5067, %v5135
      %v5168 = vadd.f32 %v5068, %v5136
      %v5169 = vadd.f32 %v5069, %v5137
      %v5170 = vadd.f32 %v5070, %v5138
      %v5171 = vadd.f32 %v5071, %v5139
      %v5172 = vadd.f32 %v5072, %v5140
      %v5173 = vadd.f32 %v5073, %v5141
      %v5174 = vadd.f32 %v5074, %v5142
      %v5175 = vadd.f32 %v5075, %v5143
      %v5176 = vadd.f32 %v5076, %v5144
      %v5177 = vadd.f32 %v5077, %v5145
      %v5178 = vadd.f32 %v5078, %v5146
      %v5179 = vadd.f32 %v5079, %v5147
      %v5180 = vld [vmem:[#allocation2 + $0x2] sm:$0xff]
      %v5181 = vld [vmem:[#allocation2 + $0xa] sm:$0xff]
      %v5182 = vld [vmem:[#allocation2 + $0x1a] sm:$0xff]
      %v5183 = vld [vmem:[#allocation2 + $0x22] sm:$0xff]
      %v5184 = vld [vmem:[#allocation2 + $0x32] sm:$0xff]
      %v5185 = vld [vmem:[#allocation2 + $0x3a] sm:$0xff]
      %v5186 = vld [vmem:[#allocation2 + $0x4a] sm:$0xff]
      %v5187 = vld [vmem:[#allocation2 + $0x52] sm:$0xff]
      %v5188 = vld [vmem:[#allocation2 + $0x62] sm:$0xff]
      %v5189 = vld [vmem:[#allocation2 + $0x6a] sm:$0xff]
      %v5190 = vld [vmem:[#allocation2 + $0x7a] sm:$0xff]
      %v5191 = vld [vmem:[#allocation2 + $0x82] sm:$0xff]
      %v5192 = vld [vmem:[#allocation2 + $0x92] sm:$0xff]
      %v5193 = vld [vmem:[#allocation2 + $0x9a] sm:$0xff]
      %v5194 = vld [vmem:[#allocation2 + $0xaa] sm:$0xff]
      %v5195 = vld [vmem:[#allocation2 + $0xb2] sm:$0xff]
      %v5196 = vld [vmem:[#allocation2 + $0xc2] sm:$0xff]
      %v5197 = vld [vmem:[#allocation2 + $0xca] sm:$0xff]
      %v5198 = vld [vmem:[#allocation2 + $0xda] sm:$0xff]
      %v5199 = vld [vmem:[#allocation2 + $0xe2] sm:$0xff]
      %v5200 = vld [vmem:[#allocation2 + $0xf2] sm:$0xff]
      %v5201 = vld [vmem:[#allocation2 + $0xfa] sm:$0xff]
      %v5202 = vld [vmem:[#allocation2 + $0x10a] sm:$0xff]
      %v5203 = vld [vmem:[#allocation2 + $0x112] sm:$0xff]
      %v5204 = vld [vmem:[#allocation2 + $0x122] sm:$0xff]
      %v5205 = vld [vmem:[#allocation2 + $0x12a] sm:$0xff]
      %v5206 = vld [vmem:[#allocation2 + $0x13a] sm:$0xff]
      %v5207 = vld [vmem:[#allocation2 + $0x142] sm:$0xff]
      %v5208 = vld [vmem:[#allocation2 + $0x152] sm:$0xff]
      %v5209 = vld [vmem:[#allocation2 + $0x15a] sm:$0xff]
      %v5210 = vld [vmem:[#allocation2 + $0x16a] sm:$0xff]
      %v5211 = vld [vmem:[#allocation2 + $0x172] sm:$0xff]
      %v5212 = vlaneseq
      %v5213 = vshrl.u32 %v5212, 7
      %v5214 = vsub.s32 2, %v5213
      %v5215 = vrot.slane %v4976, %v5214
      %v5216 = vmul.f32 %v5180, %v5215
      %v5217 = vmul.f32 %v5181, %v5215
      %v5218 = vmul.f32 %v5182, %v5215
      %v5219 = vmul.f32 %v5183, %v5215
      %v5220 = vmul.f32 %v5184, %v5215
      %v5221 = vmul.f32 %v5185, %v5215
      %v5222 = vmul.f32 %v5186, %v5215
      %v5223 = vmul.f32 %v5187, %v5215
      %v5224 = vmul.f32 %v5188, %v5215
      %v5225 = vmul.f32 %v5189, %v5215
      %v5226 = vmul.f32 %v5190, %v5215
      %v5227 = vmul.f32 %v5191, %v5215
      %v5228 = vmul.f32 %v5192, %v5215
      %v5229 = vmul.f32 %v5193, %v5215
      %v5230 = vmul.f32 %v5194, %v5215
      %v5231 = vmul.f32 %v5195, %v5215
      %v5232 = vmul.f32 %v5196, %v5215
      %v5233 = vmul.f32 %v5197, %v5215
      %v5234 = vmul.f32 %v5198, %v5215
      %v5235 = vmul.f32 %v5199, %v5215
      %v5236 = vmul.f32 %v5200, %v5215
      %v5237 = vmul.f32 %v5201, %v5215
      %v5238 = vmul.f32 %v5202, %v5215
      %v5239 = vmul.f32 %v5203, %v5215
      %v5240 = vmul.f32 %v5204, %v5215
      %v5241 = vmul.f32 %v5205, %v5215
      %v5242 = vmul.f32 %v5206, %v5215
      %v5243 = vmul.f32 %v5207, %v5215
      %v5244 = vmul.f32 %v5208, %v5215
      %v5245 = vmul.f32 %v5209, %v5215
      %v5246 = vmul.f32 %v5210, %v5215
      %v5247 = vmul.f32 %v5211, %v5215
      %v5248 = vadd.f32 %v5148, %v5216
      %v5249 = vadd.f32 %v5149, %v5217
      %v5250 = vadd.f32 %v5150, %v5218
      %v5251 = vadd.f32 %v5151, %v5219
      %v5252 = vadd.f32 %v5152, %v5220
      %v5253 = vadd.f32 %v5153, %v5221
      %v5254 = vadd.f32 %v5154, %v5222
      %v5255 = vadd.f32 %v5155, %v5223
      %v5256 = vadd.f32 %v5156, %v5224
      %v5257 = vadd.f32 %v5157, %v5225
      %v5258 = vadd.f32 %v5158, %v5226
      %v5259 = vadd.f32 %v5159, %v5227
      %v5260 = vadd.f32 %v5160, %v5228
      %v5261 = vadd.f32 %v5161, %v5229
      %v5262 = vadd.f32 %v5162, %v5230
      %v5263 = vadd.f32 %v5163, %v5231
      %v5264 = vadd.f32 %v5164, %v5232
      %v5265 = vadd.f32 %v5165, %v5233
      %v5266 = vadd.f32 %v5166, %v5234
      %v5267 = vadd.f32 %v5167, %v5235
      %v5268 = vadd.f32 %v5168, %v5236
      %v5269 = vadd.f32 %v5169, %v5237
      %v5270 = vadd.f32 %v5170, %v5238
      %v5271 = vadd.f32 %v5171, %v5239
      %v5272 = vadd.f32 %v5172, %v5240
      %v5273 = vadd.f32 %v5173, %v5241
      %v5274 = vadd.f32 %v5174, %v5242
      %v5275 = vadd.f32 %v5175, %v5243
      %v5276 = vadd.f32 %v5176, %v5244
      %v5277 = vadd.f32 %v5177, %v5245
      %v5278 = vadd.f32 %v5178, %v5246
      %v5279 = vadd.f32 %v5179, %v5247
      %v5280 = vld [vmem:[%s4927] sm:$0xff]
      %v5281 = vld [vmem:[%s4927 + $0x8] sm:$0xff]
      %v5282 = vld [vmem:[%s4927 + $0x18] sm:$0xff]
      %v5283 = vld [vmem:[%s4927 + $0x20] sm:$0xff]
      %v5284 = vld [vmem:[%s4927 + $0x30] sm:$0xff]
      %v5285 = vld [vmem:[%s4927 + $0x38] sm:$0xff]
      %v5286 = vld [vmem:[%s4927 + $0x48] sm:$0xff]
      %v5287 = vld [vmem:[%s4927 + $0x50] sm:$0xff]
      %v5288 = vld [vmem:[%s4927 + $0x60] sm:$0xff]
      %v5289 = vld [vmem:[%s4927 + $0x68] sm:$0xff]
      %v5290 = vld [vmem:[%s4927 + $0x78] sm:$0xff]
      %v5291 = vld [vmem:[%s4927 + $0x80] sm:$0xff]
      %v5292 = vld [vmem:[%s4927 + $0x90] sm:$0xff]
      %v5293 = vld [vmem:[%s4927 + $0x98] sm:$0xff]
      %v5294 = vld [vmem:[%s4927 + $0xa8] sm:$0xff]
      %v5295 = vld [vmem:[%s4927 + $0xb0] sm:$0xff]
      %v5296 = vld [vmem:[%s4927 + $0xc0] sm:$0xff]
      %v5297 = vld [vmem:[%s4927 + $0xc8] sm:$0xff]
      %v5298 = vld [vmem:[%s4927 + $0xd8] sm:$0xff]
      %v5299 = vld [vmem:[%s4927 + $0xe0] sm:$0xff]
      %v5300 = vld [vmem:[%s4927 + $0xf0] sm:$0xff]
      %v5301 = vld [vmem:[%s4927 + $0xf8] sm:$0xff]
      %v5302 = vld [vmem:[%s4927 + $0x108] sm:$0xff]
      %v5303 = vld [vmem:[%s4927 + $0x110] sm:$0xff]
      %v5304 = vld [vmem:[%s4927 + $0x120] sm:$0xff]
      %v5305 = vld [vmem:[%s4927 + $0x128] sm:$0xff]
      %v5306 = vld [vmem:[%s4927 + $0x138] sm:$0xff]
      %v5307 = vld [vmem:[%s4927 + $0x140] sm:$0xff]
      %v5308 = vld [vmem:[%s4927 + $0x150] sm:$0xff]
      %v5309 = vld [vmem:[%s4927 + $0x158] sm:$0xff]
      %v5310 = vld [vmem:[%s4927 + $0x168] sm:$0xff]
      %v5311 = vld [vmem:[%s4927 + $0x170] sm:$0xff]
      %v5312 = vlaneseq
      %v5313 = vshrl.u32 %v5312, 7
      %v5314 = vsub.s32 3, %v5313
      %v5315 = vrot.slane %v4976, %v5314
      %v5316 = vmul.f32 %v5280, %v5315
      %v5317 = vmul.f32 %v5281, %v5315
      %v5318 = vmul.f32 %v5282, %v5315
      %v5319 = vmul.f32 %v5283, %v5315
      %v5320 = vmul.f32 %v5284, %v5315
      %v5321 = vmul.f32 %v5285, %v5315
      %v5322 = vmul.f32 %v5286, %v5315
      %v5323 = vmul.f32 %v5287, %v5315
      %v5324 = vmul.f32 %v5288, %v5315
      %v5325 = vmul.f32 %v5289, %v5315
      %v5326 = vmul.f32 %v5290, %v5315
      %v5327 = vmul.f32 %v5291, %v5315
      %v5328 = vmul.f32 %v5292, %v5315
      %v5329 = vmul.f32 %v5293, %v5315
      %v5330 = vmul.f32 %v5294, %v5315
      %v5331 = vmul.f32 %v5295, %v5315
      %v5332 = vmul.f32 %v5296, %v5315
      %v5333 = vmul.f32 %v5297, %v5315
      %v5334 = vmul.f32 %v5298, %v5315
      %v5335 = vmul.f32 %v5299, %v5315
      %v5336 = vmul.f32 %v5300, %v5315
      %v5337 = vmul.f32 %v5301, %v5315
      %v5338 = vmul.f32 %v5302, %v5315
      %v5339 = vmul.f32 %v5303, %v5315
      %v5340 = vmul.f32 %v5304, %v5315
      %v5341 = vmul.f32 %v5305, %v5315
      %v5342 = vmul.f32 %v5306, %v5315
      %v5343 = vmul.f32 %v5307, %v5315
      %v5344 = vmul.f32 %v5308, %v5315
      %v5345 = vmul.f32 %v5309, %v5315
      %v5346 = vmul.f32 %v5310, %v5315
      %v5347 = vmul.f32 %v5311, %v5315
      %v5348 = vadd.f32 %v5248, %v5316
      %v5349 = vadd.f32 %v5249, %v5317
      %v5350 = vadd.f32 %v5250, %v5318
      %v5351 = vadd.f32 %v5251, %v5319
      %v5352 = vadd.f32 %v5252, %v5320
      %v5353 = vadd.f32 %v5253, %v5321
      %v5354 = vadd.f32 %v5254, %v5322
      %v5355 = vadd.f32 %v5255, %v5323
      %v5356 = vadd.f32 %v5256, %v5324
      %v5357 = vadd.f32 %v5257, %v5325
      %v5358 = vadd.f32 %v5258, %v5326
      %v5359 = vadd.f32 %v5259, %v5327
      %v5360 = vadd.f32 %v5260, %v5328
      %v5361 = vadd.f32 %v5261, %v5329
      %v5362 = vadd.f32 %v5262, %v5330
      %v5363 = vadd.f32 %v5263, %v5331
      %v5364 = vadd.f32 %v5264, %v5332
      %v5365 = vadd.f32 %v5265, %v5333
      %v5366 = vadd.f32 %v5266, %v5334
      %v5367 = vadd.f32 %v5267, %v5335
      %v5368 = vadd.f32 %v5268, %v5336
      %v5369 = vadd.f32 %v5269, %v5337
      %v5370 = vadd.f32 %v5270, %v5338
      %v5371 = vadd.f32 %v5271, %v5339
      %v5372 = vadd.f32 %v5272, %v5340
      %v5373 = vadd.f32 %v5273, %v5341
      %v5374 = vadd.f32 %v5274, %v5342
      %v5375 = vadd.f32 %v5275, %v5343
      %v5376 = vadd.f32 %v5276, %v5344
      %v5377 = vadd.f32 %v5277, %v5345
      %v5378 = vadd.f32 %v5278, %v5346
      %v5379 = vadd.f32 %v5279, %v5347
      %v5380 = vld [vmem:[%s4927 + $0x1] sm:$0xff]
      %v5381 = vld [vmem:[%s4927 + $0x9] sm:$0xff]
      %v5382 = vld [vmem:[%s4927 + $0x19] sm:$0xff]
      %v5383 = vld [vmem:[%s4927 + $0x21] sm:$0xff]
      %v5384 = vld [vmem:[%s4927 + $0x31] sm:$0xff]
      %v5385 = vld [vmem:[%s4927 + $0x39] sm:$0xff]
      %v5386 = vld [vmem:[%s4927 + $0x49] sm:$0xff]
      %v5387 = vld [vmem:[%s4927 + $0x51] sm:$0xff]
      %v5388 = vld [vmem:[%s4927 + $0x61] sm:$0xff]
      %v5389 = vld [vmem:[%s4927 + $0x69] sm:$0xff]
      %v5390 = vld [vmem:[%s4927 + $0x79] sm:$0xff]
      %v5391 = vld [vmem:[%s4927 + $0x81] sm:$0xff]
      %v5392 = vld [vmem:[%s4927 + $0x91] sm:$0xff]
      %v5393 = vld [vmem:[%s4927 + $0x99] sm:$0xff]
      %v5394 = vld [vmem:[%s4927 + $0xa9] sm:$0xff]
      %v5395 = vld [vmem:[%s4927 + $0xb1] sm:$0xff]
      %v5396 = vld [vmem:[%s4927 + $0xc1] sm:$0xff]
      %v5397 = vld [vmem:[%s4927 + $0xc9] sm:$0xff]
      %v5398 = vld [vmem:[%s4927 + $0xd9] sm:$0xff]
      %v5399 = vld [vmem:[%s4927 + $0xe1] sm:$0xff]
      %v5400 = vld [vmem:[%s4927 + $0xf1] sm:$0xff]
      %v5401 = vld [vmem:[%s4927 + $0xf9] sm:$0xff]
      %v5402 = vld [vmem:[%s4927 + $0x109] sm:$0xff]
      %v5403 = vld [vmem:[%s4927 + $0x111] sm:$0xff]
      %v5404 = vld [vmem:[%s4927 + $0x121] sm:$0xff]
      %v5405 = vld [vmem:[%s4927 + $0x129] sm:$0xff]
      %v5406 = vld [vmem:[%s4927 + $0x139] sm:$0xff]
      %v5407 = vld [vmem:[%s4927 + $0x141] sm:$0xff]
      %v5408 = vld [vmem:[%s4927 + $0x151] sm:$0xff]
      %v5409 = vld [vmem:[%s4927 + $0x159] sm:$0xff]
      %v5410 = vld [vmem:[%s4927 + $0x169] sm:$0xff]
      %v5411 = vld [vmem:[%s4927 + $0x171] sm:$0xff]
      %v5412 = vlaneseq
      %v5413 = vshrl.u32 %v5412, 7
      %v5414 = vsub.s32 4, %v5413
      %v5415 = vrot.slane %v4976, %v5414
      %v5416 = vmul.f32 %v5380, %v5415
      %v5417 = vmul.f32 %v5381, %v5415
      %v5418 = vmul.f32 %v5382, %v5415
      %v5419 = vmul.f32 %v5383, %v5415
      %v5420 = vmul.f32 %v5384, %v5415
      %v5421 = vmul.f32 %v5385, %v5415
      %v5422 = vmul.f32 %v5386, %v5415
      %v5423 = vmul.f32 %v5387, %v5415
      %v5424 = vmul.f32 %v5388, %v5415
      %v5425 = vmul.f32 %v5389, %v5415
      %v5426 = vmul.f32 %v5390, %v5415
      %v5427 = vmul.f32 %v5391, %v5415
      %v5428 = vmul.f32 %v5392, %v5415
      %v5429 = vmul.f32 %v5393, %v5415
      %v5430 = vmul.f32 %v5394, %v5415
      %v5431 = vmul.f32 %v5395, %v5415
      %v5432 = vmul.f32 %v5396, %v5415
      %v5433 = vmul.f32 %v5397, %v5415
      %v5434 = vmul.f32 %v5398, %v5415
      %v5435 = vmul.f32 %v5399, %v5415
      %v5436 = vmul.f32 %v5400, %v5415
      %v5437 = vmul.f32 %v5401, %v5415
      %v5438 = vmul.f32 %v5402, %v5415
      %v5439 = vmul.f32 %v5403, %v5415
      %v5440 = vmul.f32 %v5404, %v5415
      %v5441 = vmul.f32 %v5405, %v5415
      %v5442 = vmul.f32 %v5406, %v5415
      %v5443 = vmul.f32 %v5407, %v5415
      %v5444 = vmul.f32 %v5408, %v5415
      %v5445 = vmul.f32 %v5409, %v5415
      %v5446 = vmul.f32 %v5410, %v5415
      %v5447 = vmul.f32 %v5411, %v5415
      %v5448 = vadd.f32 %v5348, %v5416
      %v5449 = vadd.f32 %v5349, %v5417
      %v5450 = vadd.f32 %v5350, %v5418
      %v5451 = vadd.f32 %v5351, %v5419
      %v5452 = vadd.f32 %v5352, %v5420
      %v5453 = vadd.f32 %v5353, %v5421
      %v5454 = vadd.f32 %v5354, %v5422
      %v5455 = vadd.f32 %v5355, %v5423
      %v5456 = vadd.f32 %v5356, %v5424
      %v5457 = vadd.f32 %v5357, %v5425
      %v5458 = vadd.f32 %v5358, %v5426
      %v5459 = vadd.f32 %v5359, %v5427
      %v5460 = vadd.f32 %v5360, %v5428
      %v5461 = vadd.f32 %v5361, %v5429
      %v5462 = vadd.f32 %v5362, %v5430
      %v5463 = vadd.f32 %v5363, %v5431
      %v5464 = vadd.f32 %v5364, %v5432
      %v5465 = vadd.f32 %v5365, %v5433
      %v5466 = vadd.f32 %v5366, %v5434
      %v5467 = vadd.f32 %v5367, %v5435
      %v5468 = vadd.f32 %v5368, %v5436
      %v5469 = vadd.f32 %v5369, %v5437
      %v5470 = vadd.f32 %v5370, %v5438
      %v5471 = vadd.f32 %v5371, %v5439
      %v5472 = vadd.f32 %v5372, %v5440
      %v5473 = vadd.f32 %v5373, %v5441
      %v5474 = vadd.f32 %v5374, %v5442
      %v5475 = vadd.f32 %v5375, %v5443
      %v5476 = vadd.f32 %v5376, %v5444
      %v5477 = vadd.f32 %v5377, %v5445
      %v5478 = vadd.f32 %v5378, %v5446
      %v5479 = vadd.f32 %v5379, %v5447
      %v5480 = vld [vmem:[%s4927 + $0x2] sm:$0xff]
      %v5481 = vld [vmem:[%s4927 + $0xa] sm:$0xff]
      %v5482 = vld [vmem:[%s4927 + $0x1a] sm:$0xff]
      %v5483 = vld [vmem:[%s4927 + $0x22] sm:$0xff]
      %v5484 = vld [vmem:[%s4927 + $0x32] sm:$0xff]
      %v5485 = vld [vmem:[%s4927 + $0x3a] sm:$0xff]
      %v5486 = vld [vmem:[%s4927 + $0x4a] sm:$0xff]
      %v5487 = vld [vmem:[%s4927 + $0x52] sm:$0xff]
      %v5488 = vld [vmem:[%s4927 + $0x62] sm:$0xff]
      %v5489 = vld [vmem:[%s4927 + $0x6a] sm:$0xff]
      %v5490 = vld [vmem:[%s4927 + $0x7a] sm:$0xff]
      %v5491 = vld [vmem:[%s4927 + $0x82] sm:$0xff]
      %v5492 = vld [vmem:[%s4927 + $0x92] sm:$0xff]
      %v5493 = vld [vmem:[%s4927 + $0x9a] sm:$0xff]
      %v5494 = vld [vmem:[%s4927 + $0xaa] sm:$0xff]
      %v5495 = vld [vmem:[%s4927 + $0xb2] sm:$0xff]
      %v5496 = vld [vmem:[%s4927 + $0xc2] sm:$0xff]
      %v5497 = vld [vmem:[%s4927 + $0xca] sm:$0xff]
      %v5498 = vld [vmem:[%s4927 + $0xda] sm:$0xff]
      %v5499 = vld [vmem:[%s4927 + $0xe2] sm:$0xff]
      %v5500 = vld [vmem:[%s4927 + $0xf2] sm:$0xff]
      %v5501 = vld [vmem:[%s4927 + $0xfa] sm:$0xff]
      %v5502 = vld [vmem:[%s4927 + $0x10a] sm:$0xff]
      %v5503 = vld [vmem:[%s4927 + $0x112] sm:$0xff]
      %v5504 = vld [vmem:[%s4927 + $0x122] sm:$0xff]
      %v5505 = vld [vmem:[%s4927 + $0x12a] sm:$0xff]
      %v5506 = vld [vmem:[%s4927 + $0x13a] sm:$0xff]
      %v5507 = vld [vmem:[%s4927 + $0x142] sm:$0xff]
      %v5508 = vld [vmem:[%s4927 + $0x152] sm:$0xff]
      %v5509 = vld [vmem:[%s4927 + $0x15a] sm:$0xff]
      %v5510 = vld [vmem:[%s4927 + $0x16a] sm:$0xff]
      %v5511 = vld [vmem:[%s4927 + $0x172] sm:$0xff]
      %v5512 = vlaneseq
      %v5513 = vshrl.u32 %v5512, 7
      %v5514 = vsub.s32 5, %v5513
      %v5515 = vrot.slane %v4976, %v5514
      %v5516 = vmul.f32 %v5480, %v5515
      %v5517 = vmul.f32 %v5481, %v5515
      %v5518 = vmul.f32 %v5482, %v5515
      %v5519 = vmul.f32 %v5483, %v5515
      %v5520 = vmul.f32 %v5484, %v5515
      %v5521 = vmul.f32 %v5485, %v5515
      %v5522 = vmul.f32 %v5486, %v5515
      %v5523 = vmul.f32 %v5487, %v5515
      %v5524 = vmul.f32 %v5488, %v5515
      %v5525 = vmul.f32 %v5489, %v5515
      %v5526 = vmul.f32 %v5490, %v5515
      %v5527 = vmul.f32 %v5491, %v5515
      %v5528 = vmul.f32 %v5492, %v5515
      %v5529 = vmul.f32 %v5493, %v5515
      %v5530 = vmul.f32 %v5494, %v5515
      %v5531 = vmul.f32 %v5495, %v5515
      %v5532 = vmul.f32 %v5496, %v5515
      %v5533 = vmul.f32 %v5497, %v5515
      %v5534 = vmul.f32 %v5498, %v5515
      %v5535 = vmul.f32 %v5499, %v5515
      %v5536 = vmul.f32 %v5500, %v5515
      %v5537 = vmul.f32 %v5501, %v5515
      %v5538 = vmul.f32 %v5502, %v5515
      %v5539 = vmul.f32 %v5503, %v5515
      %v5540 = vmul.f32 %v5504, %v5515
      %v5541 = vmul.f32 %v5505, %v5515
      %v5542 = vmul.f32 %v5506, %v5515
      %v5543 = vmul.f32 %v5507, %v5515
      %v5544 = vmul.f32 %v5508, %v5515
      %v5545 = vmul.f32 %v5509, %v5515
      %v5546 = vmul.f32 %v5510, %v5515
      %v5547 = vmul.f32 %v5511, %v5515
      %v5548 = vadd.f32 %v5448, %v5516
      %v5549 = vadd.f32 %v5449, %v5517
      %v5550 = vadd.f32 %v5450, %v5518
      %v5551 = vadd.f32 %v5451, %v5519
      %v5552 = vadd.f32 %v5452, %v5520
      %v5553 = vadd.f32 %v5453, %v5521
      %v5554 = vadd.f32 %v5454, %v5522
      %v5555 = vadd.f32 %v5455, %v5523
      %v5556 = vadd.f32 %v5456, %v5524
      %v5557 = vadd.f32 %v5457, %v5525
      %v5558 = vadd.f32 %v5458, %v5526
      %v5559 = vadd.f32 %v5459, %v5527
      %v5560 = vadd.f32 %v5460, %v5528
      %v5561 = vadd.f32 %v5461, %v5529
      %v5562 = vadd.f32 %v5462, %v5530
      %v5563 = vadd.f32 %v5463, %v5531
      %v5564 = vadd.f32 %v5464, %v5532
      %v5565 = vadd.f32 %v5465, %v5533
      %v5566 = vadd.f32 %v5466, %v5534
      %v5567 = vadd.f32 %v5467, %v5535
      %v5568 = vadd.f32 %v5468, %v5536
      %v5569 = vadd.f32 %v5469, %v5537
      %v5570 = vadd.f32 %v5470, %v5538
      %v5571 = vadd.f32 %v5471, %v5539
      %v5572 = vadd.f32 %v5472, %v5540
      %v5573 = vadd.f32 %v5473, %v5541
      %v5574 = vadd.f32 %v5474, %v5542
      %v5575 = vadd.f32 %v5475, %v5543
      %v5576 = vadd.f32 %v5476, %v5544
      %v5577 = vadd.f32 %v5477, %v5545
      %v5578 = vadd.f32 %v5478, %v5546
      %v5579 = vadd.f32 %v5479, %v5547
      %s5580 = scalar_lea.vmem [#allocation2], 48
      %v5581 = vld [vmem:[%s5580] sm:$0xff]
      %v5582 = vld [vmem:[%s5580 + $0x8] sm:$0xff]
      %v5583 = vld [vmem:[%s5580 + $0x18] sm:$0xff]
      %v5584 = vld [vmem:[%s5580 + $0x20] sm:$0xff]
      %v5585 = vld [vmem:[%s5580 + $0x30] sm:$0xff]
      %v5586 = vld [vmem:[%s5580 + $0x38] sm:$0xff]
      %v5587 = vld [vmem:[%s5580 + $0x48] sm:$0xff]
      %v5588 = vld [vmem:[%s5580 + $0x50] sm:$0xff]
      %v5589 = vld [vmem:[%s5580 + $0x60] sm:$0xff]
      %v5590 = vld [vmem:[%s5580 + $0x68] sm:$0xff]
      %v5591 = vld [vmem:[%s5580 + $0x78] sm:$0xff]
      %v5592 = vld [vmem:[%s5580 + $0x80] sm:$0xff]
      %v5593 = vld [vmem:[%s5580 + $0x90] sm:$0xff]
      %v5594 = vld [vmem:[%s5580 + $0x98] sm:$0xff]
      %v5595 = vld [vmem:[%s5580 + $0xa8] sm:$0xff]
      %v5596 = vld [vmem:[%s5580 + $0xb0] sm:$0xff]
      %v5597 = vld [vmem:[%s5580 + $0xc0] sm:$0xff]
      %v5598 = vld [vmem:[%s5580 + $0xc8] sm:$0xff]
      %v5599 = vld [vmem:[%s5580 + $0xd8] sm:$0xff]
      %v5600 = vld [vmem:[%s5580 + $0xe0] sm:$0xff]
      %v5601 = vld [vmem:[%s5580 + $0xf0] sm:$0xff]
      %v5602 = vld [vmem:[%s5580 + $0xf8] sm:$0xff]
      %v5603 = vld [vmem:[%s5580 + $0x108] sm:$0xff]
      %v5604 = vld [vmem:[%s5580 + $0x110] sm:$0xff]
      %v5605 = vld [vmem:[%s5580 + $0x120] sm:$0xff]
      %v5606 = vld [vmem:[%s5580 + $0x128] sm:$0xff]
      %v5607 = vld [vmem:[%s5580 + $0x138] sm:$0xff]
      %v5608 = vld [vmem:[%s5580 + $0x140] sm:$0xff]
      %v5609 = vld [vmem:[%s5580 + $0x150] sm:$0xff]
      %v5610 = vld [vmem:[%s5580 + $0x158] sm:$0xff]
      %v5611 = vld [vmem:[%s5580 + $0x168] sm:$0xff]
      %v5612 = vld [vmem:[%s5580 + $0x170] sm:$0xff]
      %v5613 = vlaneseq
      %v5614 = vshrl.u32 %v5613, 7
      %v5615 = vsub.s32 6, %v5614
      %v5616 = vrot.slane %v4976, %v5615
      %v5617 = vmul.f32 %v5581, %v5616
      %v5618 = vmul.f32 %v5582, %v5616
      %v5619 = vmul.f32 %v5583, %v5616
      %v5620 = vmul.f32 %v5584, %v5616
      %v5621 = vmul.f32 %v5585, %v5616
      %v5622 = vmul.f32 %v5586, %v5616
      %v5623 = vmul.f32 %v5587, %v5616
      %v5624 = vmul.f32 %v5588, %v5616
      %v5625 = vmul.f32 %v5589, %v5616
      %v5626 = vmul.f32 %v5590, %v5616
      %v5627 = vmul.f32 %v5591, %v5616
      %v5628 = vmul.f32 %v5592, %v5616
      %v5629 = vmul.f32 %v5593, %v5616
      %v5630 = vmul.f32 %v5594, %v5616
      %v5631 = vmul.f32 %v5595, %v5616
      %v5632 = vmul.f32 %v5596, %v5616
      %v5633 = vmul.f32 %v5597, %v5616
      %v5634 = vmul.f32 %v5598, %v5616
      %v5635 = vmul.f32 %v5599, %v5616
      %v5636 = vmul.f32 %v5600, %v5616
      %v5637 = vmul.f32 %v5601, %v5616
      %v5638 = vmul.f32 %v5602, %v5616
      %v5639 = vmul.f32 %v5603, %v5616
      %v5640 = vmul.f32 %v5604, %v5616
      %v5641 = vmul.f32 %v5605, %v5616
      %v5642 = vmul.f32 %v5606, %v5616
      %v5643 = vmul.f32 %v5607, %v5616
      %v5644 = vmul.f32 %v5608, %v5616
      %v5645 = vmul.f32 %v5609, %v5616
      %v5646 = vmul.f32 %v5610, %v5616
      %v5647 = vmul.f32 %v5611, %v5616
      %v5648 = vmul.f32 %v5612, %v5616
      %v5649 = vadd.f32 %v5548, %v5617
      %v5650 = vadd.f32 %v5549, %v5618
      %v5651 = vadd.f32 %v5550, %v5619
      %v5652 = vadd.f32 %v5551, %v5620
      %v5653 = vadd.f32 %v5552, %v5621
      %v5654 = vadd.f32 %v5553, %v5622
      %v5655 = vadd.f32 %v5554, %v5623
      %v5656 = vadd.f32 %v5555, %v5624
      %v5657 = vadd.f32 %v5556, %v5625
      %v5658 = vadd.f32 %v5557, %v5626
      %v5659 = vadd.f32 %v5558, %v5627
      %v5660 = vadd.f32 %v5559, %v5628
      %v5661 = vadd.f32 %v5560, %v5629
      %v5662 = vadd.f32 %v5561, %v5630
      %v5663 = vadd.f32 %v5562, %v5631
      %v5664 = vadd.f32 %v5563, %v5632
      %v5665 = vadd.f32 %v5564, %v5633
      %v5666 = vadd.f32 %v5565, %v5634
      %v5667 = vadd.f32 %v5566, %v5635
      %v5668 = vadd.f32 %v5567, %v5636
      %v5669 = vadd.f32 %v5568, %v5637
      %v5670 = vadd.f32 %v5569, %v5638
      %v5671 = vadd.f32 %v5570, %v5639
      %v5672 = vadd.f32 %v5571, %v5640
      %v5673 = vadd.f32 %v5572, %v5641
      %v5674 = vadd.f32 %v5573, %v5642
      %v5675 = vadd.f32 %v5574, %v5643
      %v5676 = vadd.f32 %v5575, %v5644
      %v5677 = vadd.f32 %v5576, %v5645
      %v5678 = vadd.f32 %v5577, %v5646
      %v5679 = vadd.f32 %v5578, %v5647
      %v5680 = vadd.f32 %v5579, %v5648
      %v5681 = vld [vmem:[%s5580 + $0x1] sm:$0xff]
      %v5682 = vld [vmem:[%s5580 + $0x9] sm:$0xff]
      %v5683 = vld [vmem:[%s5580 + $0x19] sm:$0xff]
      %v5684 = vld [vmem:[%s5580 + $0x21] sm:$0xff]
      %v5685 = vld [vmem:[%s5580 + $0x31] sm:$0xff]
      %v5686 = vld [vmem:[%s5580 + $0x39] sm:$0xff]
      %v5687 = vld [vmem:[%s5580 + $0x49] sm:$0xff]
      %v5688 = vld [vmem:[%s5580 + $0x51] sm:$0xff]
      %v5689 = vld [vmem:[%s5580 + $0x61] sm:$0xff]
      %v5690 = vld [vmem:[%s5580 + $0x69] sm:$0xff]
      %v5691 = vld [vmem:[%s5580 + $0x79] sm:$0xff]
      %v5692 = vld [vmem:[%s5580 + $0x81] sm:$0xff]
      %v5693 = vld [vmem:[%s5580 + $0x91] sm:$0xff]
      %v5694 = vld [vmem:[%s5580 + $0x99] sm:$0xff]
      %v5695 = vld [vmem:[%s5580 + $0xa9] sm:$0xff]
      %v5696 = vld [vmem:[%s5580 + $0xb1] sm:$0xff]
      %v5697 = vld [vmem:[%s5580 + $0xc1] sm:$0xff]
      %v5698 = vld [vmem:[%s5580 + $0xc9] sm:$0xff]
      %v5699 = vld [vmem:[%s5580 + $0xd9] sm:$0xff]
      %v5700 = vld [vmem:[%s5580 + $0xe1] sm:$0xff]
      %v5701 = vld [vmem:[%s5580 + $0xf1] sm:$0xff]
      %v5702 = vld [vmem:[%s5580 + $0xf9] sm:$0xff]
      %v5703 = vld [vmem:[%s5580 + $0x109] sm:$0xff]
      %v5704 = vld [vmem:[%s5580 + $0x111] sm:$0xff]
      %v5705 = vld [vmem:[%s5580 + $0x121] sm:$0xff]
      %v5706 = vld [vmem:[%s5580 + $0x129] sm:$0xff]
      %v5707 = vld [vmem:[%s5580 + $0x139] sm:$0xff]
      %v5708 = vld [vmem:[%s5580 + $0x141] sm:$0xff]
      %v5709 = vld [vmem:[%s5580 + $0x151] sm:$0xff]
      %v5710 = vld [vmem:[%s5580 + $0x159] sm:$0xff]
      %v5711 = vld [vmem:[%s5580 + $0x169] sm:$0xff]
      %v5712 = vld [vmem:[%s5580 + $0x171] sm:$0xff]
      %v5713 = vlaneseq
      %v5714 = vshrl.u32 %v5713, 7
      %v5715 = vsub.s32 7, %v5714
      %v5716 = vrot.slane %v4976, %v5715
      %v5717 = vmul.f32 %v5681, %v5716
      %v5718 = vmul.f32 %v5682, %v5716
      %v5719 = vmul.f32 %v5683, %v5716
      %v5720 = vmul.f32 %v5684, %v5716
      %v5721 = vmul.f32 %v5685, %v5716
      %v5722 = vmul.f32 %v5686, %v5716
      %v5723 = vmul.f32 %v5687, %v5716
      %v5724 = vmul.f32 %v5688, %v5716
      %v5725 = vmul.f32 %v5689, %v5716
      %v5726 = vmul.f32 %v5690, %v5716
      %v5727 = vmul.f32 %v5691, %v5716
      %v5728 = vmul.f32 %v5692, %v5716
      %v5729 = vmul.f32 %v5693, %v5716
      %v5730 = vmul.f32 %v5694, %v5716
      %v5731 = vmul.f32 %v5695, %v5716
      %v5732 = vmul.f32 %v5696, %v5716
      %v5733 = vmul.f32 %v5697, %v5716
      %v5734 = vmul.f32 %v5698, %v5716
      %v5735 = vmul.f32 %v5699, %v5716
      %v5736 = vmul.f32 %v5700, %v5716
      %v5737 = vmul.f32 %v5701, %v5716
      %v5738 = vmul.f32 %v5702, %v5716
      %v5739 = vmul.f32 %v5703, %v5716
      %v5740 = vmul.f32 %v5704, %v5716
      %v5741 = vmul.f32 %v5705, %v5716
      %v5742 = vmul.f32 %v5706, %v5716
      %v5743 = vmul.f32 %v5707, %v5716
      %v5744 = vmul.f32 %v5708, %v5716
      %v5745 = vmul.f32 %v5709, %v5716
      %v5746 = vmul.f32 %v5710, %v5716
      %v5747 = vmul.f32 %v5711, %v5716
      %v5748 = vmul.f32 %v5712, %v5716
      %v5749 = vadd.f32 %v5649, %v5717
      %v5750 = vadd.f32 %v5650, %v5718
      %v5751 = vadd.f32 %v5651, %v5719
      %v5752 = vadd.f32 %v5652, %v5720
      %v5753 = vadd.f32 %v5653, %v5721
      %v5754 = vadd.f32 %v5654, %v5722
      %v5755 = vadd.f32 %v5655, %v5723
      %v5756 = vadd.f32 %v5656, %v5724
      %v5757 = vadd.f32 %v5657, %v5725
      %v5758 = vadd.f32 %v5658, %v5726
      %v5759 = vadd.f32 %v5659, %v5727
      %v5760 = vadd.f32 %v5660, %v5728
      %v5761 = vadd.f32 %v5661, %v5729
      %v5762 = vadd.f32 %v5662, %v5730
      %v5763 = vadd.f32 %v5663, %v5731
      %v5764 = vadd.f32 %v5664, %v5732
      %v5765 = vadd.f32 %v5665, %v5733
      %v5766 = vadd.f32 %v5666, %v5734
      %v5767 = vadd.f32 %v5667, %v5735
      %v5768 = vadd.f32 %v5668, %v5736
      %v5769 = vadd.f32 %v5669, %v5737
      %v5770 = vadd.f32 %v5670, %v5738
      %v5771 = vadd.f32 %v5671, %v5739
      %v5772 = vadd.f32 %v5672, %v5740
      %v5773 = vadd.f32 %v5673, %v5741
      %v5774 = vadd.f32 %v5674, %v5742
      %v5775 = vadd.f32 %v5675, %v5743
      %v5776 = vadd.f32 %v5676, %v5744
      %v5777 = vadd.f32 %v5677, %v5745
      %v5778 = vadd.f32 %v5678, %v5746
      %v5779 = vadd.f32 %v5679, %v5747
      %v5780 = vadd.f32 %v5680, %v5748
      %v5781 = vld [vmem:[%s5580 + $0x2] sm:$0xff]
      %v5782 = vld [vmem:[%s5580 + $0xa] sm:$0xff]
      %v5783 = vld [vmem:[%s5580 + $0x1a] sm:$0xff]
      %v5784 = vld [vmem:[%s5580 + $0x22] sm:$0xff]
      %v5785 = vld [vmem:[%s5580 + $0x32] sm:$0xff]
      %v5786 = vld [vmem:[%s5580 + $0x3a] sm:$0xff]
      %v5787 = vld [vmem:[%s5580 + $0x4a] sm:$0xff]
      %v5788 = vld [vmem:[%s5580 + $0x52] sm:$0xff]
      %v5789 = vld [vmem:[%s5580 + $0x62] sm:$0xff]
      %v5790 = vld [vmem:[%s5580 + $0x6a] sm:$0xff]
      %v5791 = vld [vmem:[%s5580 + $0x7a] sm:$0xff]
      %v5792 = vld [vmem:[%s5580 + $0x82] sm:$0xff]
      %v5793 = vld [vmem:[%s5580 + $0x92] sm:$0xff]
      %v5794 = vld [vmem:[%s5580 + $0x9a] sm:$0xff]
      %v5795 = vld [vmem:[%s5580 + $0xaa] sm:$0xff]
      %v5796 = vld [vmem:[%s5580 + $0xb2] sm:$0xff]
      %v5797 = vld [vmem:[%s5580 + $0xc2] sm:$0xff]
      %v5798 = vld [vmem:[%s5580 + $0xca] sm:$0xff]
      %v5799 = vld [vmem:[%s5580 + $0xda] sm:$0xff]
      %v5800 = vld [vmem:[%s5580 + $0xe2] sm:$0xff]
      %v5801 = vld [vmem:[%s5580 + $0xf2] sm:$0xff]
      %v5802 = vld [vmem:[%s5580 + $0xfa] sm:$0xff]
      %v5803 = vld [vmem:[%s5580 + $0x10a] sm:$0xff]
      %v5804 = vld [vmem:[%s5580 + $0x112] sm:$0xff]
      %v5805 = vld [vmem:[%s5580 + $0x122] sm:$0xff]
      %v5806 = vld [vmem:[%s5580 + $0x12a] sm:$0xff]
      %v5807 = vld [vmem:[%s5580 + $0x13a] sm:$0xff]
      %v5808 = vld [vmem:[%s5580 + $0x142] sm:$0xff]
      %v5809 = vld [vmem:[%s5580 + $0x152] sm:$0xff]
      %v5810 = vld [vmem:[%s5580 + $0x15a] sm:$0xff]
      %v5811 = vld [vmem:[%s5580 + $0x16a] sm:$0xff]
      %v5812 = vld [vmem:[%s5580 + $0x172] sm:$0xff]
      %v5813 = vlaneseq
      %v5814 = vshrl.u32 %v5813, 7
      %v5815 = vsub.s32 0, %v5814
      %v5816 = vrot.slane %v4977, %v5815
      %v5817 = vmul.f32 %v5781, %v5816
      %v5818 = vmul.f32 %v5782, %v5816
      %v5819 = vmul.f32 %v5783, %v5816
      %v5820 = vmul.f32 %v5784, %v5816
      %v5821 = vmul.f32 %v5785, %v5816
      %v5822 = vmul.f32 %v5786, %v5816
      %v5823 = vmul.f32 %v5787, %v5816
      %v5824 = vmul.f32 %v5788, %v5816
      %v5825 = vmul.f32 %v5789, %v5816
      %v5826 = vmul.f32 %v5790, %v5816
      %v5827 = vmul.f32 %v5791, %v5816
      %v5828 = vmul.f32 %v5792, %v5816
      %v5829 = vmul.f32 %v5793, %v5816
      %v5830 = vmul.f32 %v5794, %v5816
      %v5831 = vmul.f32 %v5795, %v5816
      %v5832 = vmul.f32 %v5796, %v5816
      %v5833 = vmul.f32 %v5797, %v5816
      %v5834 = vmul.f32 %v5798, %v5816
      %v5835 = vmul.f32 %v5799, %v5816
      %v5836 = vmul.f32 %v5800, %v5816
      %v5837 = vmul.f32 %v5801, %v5816
      %v5838 = vmul.f32 %v5802, %v5816
      %v5839 = vmul.f32 %v5803, %v5816
      %v5840 = vmul.f32 %v5804, %v5816
      %v5841 = vmul.f32 %v5805, %v5816
      %v5842 = vmul.f32 %v5806, %v5816
      %v5843 = vmul.f32 %v5807, %v5816
      %v5844 = vmul.f32 %v5808, %v5816
      %v5845 = vmul.f32 %v5809, %v5816
      %v5846 = vmul.f32 %v5810, %v5816
      %v5847 = vmul.f32 %v5811, %v5816
      %v5848 = vmul.f32 %v5812, %v5816
      %v5849 = vadd.f32 %v5749, %v5817
      %v5850 = vadd.f32 %v5750, %v5818
      %v5851 = vadd.f32 %v5751, %v5819
      %v5852 = vadd.f32 %v5752, %v5820
      %v5853 = vadd.f32 %v5753, %v5821
      %v5854 = vadd.f32 %v5754, %v5822
      %v5855 = vadd.f32 %v5755, %v5823
      %v5856 = vadd.f32 %v5756, %v5824
      %v5857 = vadd.f32 %v5757, %v5825
      %v5858 = vadd.f32 %v5758, %v5826
      %v5859 = vadd.f32 %v5759, %v5827
      %v5860 = vadd.f32 %v5760, %v5828
      %v5861 = vadd.f32 %v5761, %v5829
      %v5862 = vadd.f32 %v5762, %v5830
      %v5863 = vadd.f32 %v5763, %v5831
      %v5864 = vadd.f32 %v5764, %v5832
      %v5865 = vadd.f32 %v5765, %v5833
      %v5866 = vadd.f32 %v5766, %v5834
      %v5867 = vadd.f32 %v5767, %v5835
      %v5868 = vadd.f32 %v5768, %v5836
      %v5869 = vadd.f32 %v5769, %v5837
      %v5870 = vadd.f32 %v5770, %v5838
      %v5871 = vadd.f32 %v5771, %v5839
      %v5872 = vadd.f32 %v5772, %v5840
      %v5873 = vadd.f32 %v5773, %v5841
      %v5874 = vadd.f32 %v5774, %v5842
      %v5875 = vadd.f32 %v5775, %v5843
      %v5876 = vadd.f32 %v5776, %v5844
      %v5877 = vadd.f32 %v5777, %v5845
      %v5878 = vadd.f32 %v5778, %v5846
      %v5879 = vadd.f32 %v5779, %v5847
      %v5880 = vadd.f32 %v5780, %v5848
      %v5882 = vlaneseq
      %v5883 = vshrl.u32 %v5882, 7
      %v5884 = vsub.s32 0, %v5883
      %v5885 = vrot.slane %v4978, %v5884
      %v5887 = vadd.f32 %v5849, %v5885
      %v5888 = vadd.f32 %v5850, %v5885
      %v5889 = vadd.f32 %v5851, %v5885
      %v5890 = vadd.f32 %v5852, %v5885
      %v5891 = vadd.f32 %v5853, %v5885
      %v5892 = vadd.f32 %v5854, %v5885
      %v5893 = vadd.f32 %v5855, %v5885
      %v5894 = vadd.f32 %v5856, %v5885
      %v5895 = vadd.f32 %v5857, %v5885
      %v5896 = vadd.f32 %v5858, %v5885
      %v5897 = vadd.f32 %v5859, %v5885
      %v5898 = vadd.f32 %v5860, %v5885
      %v5899 = vadd.f32 %v5861, %v5885
      %v5900 = vadd.f32 %v5862, %v5885
      %v5901 = vadd.f32 %v5863, %v5885
      %v5902 = vadd.f32 %v5864, %v5885
      %v5903 = vadd.f32 %v5865, %v5885
      %v5904 = vadd.f32 %v5866, %v5885
      %v5905 = vadd.f32 %v5867, %v5885
      %v5906 = vadd.f32 %v5868, %v5885
      %v5907 = vadd.f32 %v5869, %v5885
      %v5908 = vadd.f32 %v5870, %v5885
      %v5909 = vadd.f32 %v5871, %v5885
      %v5910 = vadd.f32 %v5872, %v5885
      %v5911 = vadd.f32 %v5873, %v5885
      %v5912 = vadd.f32 %v5874, %v5885
      %v5913 = vadd.f32 %v5875, %v5885
      %v5914 = vadd.f32 %v5876, %v5885
      %v5915 = vadd.f32 %v5877, %v5885
      %v5916 = vadd.f32 %v5878, %v5885
      %v5917 = vadd.f32 %v5879, %v5885
      %v5918 = vadd.f32 %v5880, %v5885
      %v5919 = vxor.u32 %v5887, 2147483648
      %v5920 = vxor.u32 %v5888, 2147483648
      %v5921 = vxor.u32 %v5889, 2147483648
      %v5922 = vxor.u32 %v5890, 2147483648
      %v5923 = vxor.u32 %v5891, 2147483648
      %v5924 = vxor.u32 %v5892, 2147483648
      %v5925 = vxor.u32 %v5893, 2147483648
      %v5926 = vxor.u32 %v5894, 2147483648
      %v5927 = vxor.u32 %v5895, 2147483648
      %v5928 = vxor.u32 %v5896, 2147483648
      %v5929 = vxor.u32 %v5897, 2147483648
      %v5930 = vxor.u32 %v5898, 2147483648
      %v5931 = vxor.u32 %v5899, 2147483648
      %v5932 = vxor.u32 %v5900, 2147483648
      %v5933 = vxor.u32 %v5901, 2147483648
      %v5934 = vxor.u32 %v5902, 2147483648
      %v5935 = vxor.u32 %v5903, 2147483648
      %v5936 = vxor.u32 %v5904, 2147483648
      %v5937 = vxor.u32 %v5905, 2147483648
      %v5938 = vxor.u32 %v5906, 2147483648
      %v5939 = vxor.u32 %v5907, 2147483648
      %v5940 = vxor.u32 %v5908, 2147483648
      %v5941 = vxor.u32 %v5909, 2147483648
      %v5942 = vxor.u32 %v5910, 2147483648
      %v5943 = vxor.u32 %v5911, 2147483648
      %v5944 = vxor.u32 %v5912, 2147483648
      %v5945 = vxor.u32 %v5913, 2147483648
      %v5946 = vxor.u32 %v5914, 2147483648
      %v5947 = vxor.u32 %v5915, 2147483648
      %v5948 = vxor.u32 %v5916, 2147483648
      %v5949 = vxor.u32 %v5917, 2147483648
      %v5950 = vxor.u32 %v5918, 2147483648
      %v5951 = vmul.f32 %v5919, 1.442695
      %v5952 = vpow.pop %v5951
      %v5953 = vmul.f32 %v5920, 1.442695
      %v5954 = vpow.pop %v5953
      %v5955 = vmul.f32 %v5921, 1.442695
      %v5956 = vpow.pop %v5955
      %v5957 = vmul.f32 %v5922, 1.442695
      %v5958 = vpow.pop %v5957
      %v5959 = vmul.f32 %v5923, 1.442695
      %v5960 = vpow.pop %v5959
      %v5961 = vmul.f32 %v5924, 1.442695
      %v5962 = vpow.pop %v5961
      %v5963 = vmul.f32 %v5925, 1.442695
      %v5964 = vpow.pop %v5963
      %v5965 = vmul.f32 %v5926, 1.442695
      %v5966 = vpow.pop %v5965
      %v5967 = vmul.f32 %v5927, 1.442695
      %v5968 = vpow.pop %v5967
      %v5969 = vmul.f32 %v5928, 1.442695
      %v5970 = vpow.pop %v5969
      %v5971 = vmul.f32 %v5929, 1.442695
      %v5972 = vpow.pop %v5971
      %v5973 = vmul.f32 %v5930, 1.442695
      %v5974 = vpow.pop %v5973
      %v5975 = vmul.f32 %v5931, 1.442695
      %v5976 = vpow.pop %v5975
      %v5977 = vmul.f32 %v5932, 1.442695
      %v5978 = vpow.pop %v5977
      %v5979 = vmul.f32 %v5933, 1.442695
      %v5980 = vpow.pop %v5979
      %v5981 = vmul.f32 %v5934, 1.442695
      %v5982 = vpow.pop %v5981
      %v5983 = vmul.f32 %v5935, 1.442695
      %v5984 = vpow.pop %v5983
      %v5985 = vmul.f32 %v5936, 1.442695
      %v5986 = vpow.pop %v5985
      %v5987 = vmul.f32 %v5937, 1.442695
      %v5988 = vpow.pop %v5987
      %v5989 = vmul.f32 %v5938, 1.442695
      %v5990 = vpow.pop %v5989
      %v5991 = vmul.f32 %v5939, 1.442695
      %v5992 = vpow.pop %v5991
      %v5993 = vmul.f32 %v5940, 1.442695
      %v5994 = vpow.pop %v5993
      %v5995 = vmul.f32 %v5941, 1.442695
      %v5996 = vpow.pop %v5995
      %v5997 = vmul.f32 %v5942, 1.442695
      %v5998 = vpow.pop %v5997
      %v5999 = vmul.f32 %v5943, 1.442695
      %v6000 = vpow.pop %v5999
      %v6001 = vmul.f32 %v5944, 1.442695
      %v6002 = vpow.pop %v6001
      %v6003 = vmul.f32 %v5945, 1.442695
      %v6004 = vpow.pop %v6003
      %v6005 = vmul.f32 %v5946, 1.442695
      %v6006 = vpow.pop %v6005
      %v6007 = vmul.f32 %v5947, 1.442695
      %v6008 = vpow.pop %v6007
      %v6009 = vmul.f32 %v5948, 1.442695
      %v6010 = vpow.pop %v6009
      %v6011 = vmul.f32 %v5949, 1.442695
      %v6012 = vpow.pop %v6011
      %v6013 = vmul.f32 %v5950, 1.442695
      %v6014 = vpow.pop %v6013
      %v6015 = vadd.f32 %v5952, 1.0
      %v6016 = vadd.f32 %v5954, 1.0
      %v6017 = vadd.f32 %v5956, 1.0
      %v6018 = vadd.f32 %v5958, 1.0
      %v6019 = vadd.f32 %v5960, 1.0
      %v6020 = vadd.f32 %v5962, 1.0
      %v6021 = vadd.f32 %v5964, 1.0
      %v6022 = vadd.f32 %v5966, 1.0
      %v6023 = vadd.f32 %v5968, 1.0
      %v6024 = vadd.f32 %v5970, 1.0
      %v6025 = vadd.f32 %v5972, 1.0
      %v6026 = vadd.f32 %v5974, 1.0
      %v6027 = vadd.f32 %v5976, 1.0
      %v6028 = vadd.f32 %v5978, 1.0
      %v6029 = vadd.f32 %v5980, 1.0
      %v6030 = vadd.f32 %v5982, 1.0
      %v6031 = vadd.f32 %v5984, 1.0
      %v6032 = vadd.f32 %v5986, 1.0
      %v6033 = vadd.f32 %v5988, 1.0
      %v6034 = vadd.f32 %v5990, 1.0
      %v6035 = vadd.f32 %v5992, 1.0
      %v6036 = vadd.f32 %v5994, 1.0
      %v6037 = vadd.f32 %v5996, 1.0
      %v6038 = vadd.f32 %v5998, 1.0
      %v6039 = vadd.f32 %v6000, 1.0
      %v6040 = vadd.f32 %v6002, 1.0
      %v6041 = vadd.f32 %v6004, 1.0
      %v6042 = vadd.f32 %v6006, 1.0
      %v6043 = vadd.f32 %v6008, 1.0
      %v6044 = vadd.f32 %v6010, 1.0
      %v6045 = vadd.f32 %v6012, 1.0
      %v6046 = vadd.f32 %v6014, 1.0
      %v6047 = vrcp.pop %v6015
      %v6048 = vmul.f32 1.0, %v6047
      %v6049 = vrcp.pop %v6016
      %v6050 = vmul.f32 1.0, %v6049
      %v6051 = vrcp.pop %v6017
      %v6052 = vmul.f32 1.0, %v6051
      %v6053 = vrcp.pop %v6018
      %v6054 = vmul.f32 1.0, %v6053
      %v6055 = vrcp.pop %v6019
      %v6056 = vmul.f32 1.0, %v6055
      %v6057 = vrcp.pop %v6020
      %v6058 = vmul.f32 1.0, %v6057
      %v6059 = vrcp.pop %v6021
      %v6060 = vmul.f32 1.0, %v6059
      %v6061 = vrcp.pop %v6022
      %v6062 = vmul.f32 1.0, %v6061
      %v6063 = vrcp.pop %v6023
      %v6064 = vmul.f32 1.0, %v6063
      %v6065 = vrcp.pop %v6024
      %v6066 = vmul.f32 1.0, %v6065
      %v6067 = vrcp.pop %v6025
      %v6068 = vmul.f32 1.0, %v6067
      %v6069 = vrcp.pop %v6026
      %v6070 = vmul.f32 1.0, %v6069
      %v6071 = vrcp.pop %v6027
      %v6072 = vmul.f32 1.0, %v6071
      %v6073 = vrcp.pop %v6028
      %v6074 = vmul.f32 1.0, %v6073
      %v6075 = vrcp.pop %v6029
      %v6076 = vmul.f32 1.0, %v6075
      %v6077 = vrcp.pop %v6030
      %v6078 = vmul.f32 1.0, %v6077
      %v6079 = vrcp.pop %v6031
      %v6080 = vmul.f32 1.0, %v6079
      %v6081 = vrcp.pop %v6032
      %v6082 = vmul.f32 1.0, %v6081
      %v6083 = vrcp.pop %v6033
      %v6084 = vmul.f32 1.0, %v6083
      %v6085 = vrcp.pop %v6034
      %v6086 = vmul.f32 1.0, %v6085
      %v6087 = vrcp.pop %v6035
      %v6088 = vmul.f32 1.0, %v6087
      %v6089 = vrcp.pop %v6036
      %v6090 = vmul.f32 1.0, %v6089
      %v6091 = vrcp.pop %v6037
      %v6092 = vmul.f32 1.0, %v6091
      %v6093 = vrcp.pop %v6038
      %v6094 = vmul.f32 1.0, %v6093
      %v6095 = vrcp.pop %v6039
      %v6096 = vmul.f32 1.0, %v6095
      %v6097 = vrcp.pop %v6040
      %v6098 = vmul.f32 1.0, %v6097
      %v6099 = vrcp.pop %v6041
      %v6100 = vmul.f32 1.0, %v6099
      %v6101 = vrcp.pop %v6042
      %v6102 = vmul.f32 1.0, %v6101
      %v6103 = vrcp.pop %v6043
      %v6104 = vmul.f32 1.0, %v6103
      %v6105 = vrcp.pop %v6044
      %v6106 = vmul.f32 1.0, %v6105
      %v6107 = vrcp.pop %v6045
      %v6108 = vmul.f32 1.0, %v6107
      %v6109 = vrcp.pop %v6046
      %v6110 = vmul.f32 1.0, %v6109
      %v6111 = vmul.f32 %v5887, %v6048
      %v6112 = vmul.f32 %v5888, %v6050
      %v6113 = vmul.f32 %v5889, %v6052
      %v6114 = vmul.f32 %v5890, %v6054
      %v6115 = vmul.f32 %v5891, %v6056
      %v6116 = vmul.f32 %v5892, %v6058
      %v6117 = vmul.f32 %v5893, %v6060
      %v6118 = vmul.f32 %v5894, %v6062
      %v6119 = vmul.f32 %v5895, %v6064
      %v6120 = vmul.f32 %v5896, %v6066
      %v6121 = vmul.f32 %v5897, %v6068
      %v6122 = vmul.f32 %v5898, %v6070
      %v6123 = vmul.f32 %v5899, %v6072
      %v6124 = vmul.f32 %v5900, %v6074
      %v6125 = vmul.f32 %v5901, %v6076
      %v6126 = vmul.f32 %v5902, %v6078
      %v6127 = vmul.f32 %v5903, %v6080
      %v6128 = vmul.f32 %v5904, %v6082
      %v6129 = vmul.f32 %v5905, %v6084
      %v6130 = vmul.f32 %v5906, %v6086
      %v6131 = vmul.f32 %v5907, %v6088
      %v6132 = vmul.f32 %v5908, %v6090
      %v6133 = vmul.f32 %v5909, %v6092
      %v6134 = vmul.f32 %v5910, %v6094
      %v6135 = vmul.f32 %v5911, %v6096
      %v6136 = vmul.f32 %v5912, %v6098
      %v6137 = vmul.f32 %v5913, %v6100
      %v6138 = vmul.f32 %v5914, %v6102
      %v6139 = vmul.f32 %v5915, %v6104
      %v6140 = vmul.f32 %v5916, %v6106
      %v6141 = vmul.f32 %v5917, %v6108
      %v6142 = vmul.f32 %v5918, %v6110
      %6143 = vst.msk [vmem:[#allocation3] sm:$0xff] %vm388, %v6111
      %6144 = vst.msk [vmem:[#allocation3 + $0x8] sm:$0xff] %vm388, %v6112
      %6145 = vst.msk [vmem:[#allocation3 + $0x10] sm:$0xff] %vm388, %v6113
      %6146 = vst.msk [vmem:[#allocation3 + $0x18] sm:$0xff] %vm388, %v6114
      %6147 = vst.msk [vmem:[#allocation3 + $0x20] sm:$0xff] %vm388, %v6115
      %6148 = vst.msk [vmem:[#allocation3 + $0x28] sm:$0xff] %vm388, %v6116
      %6149 = vst.msk [vmem:[#allocation3 + $0x30] sm:$0xff] %vm388, %v6117
      %6150 = vst.msk [vmem:[#allocation3 + $0x38] sm:$0xff] %vm388, %v6118
      %6151 = vst.msk [vmem:[#allocation3 + $0x40] sm:$0xff] %vm388, %v6119
      %6152 = vst.msk [vmem:[#allocation3 + $0x48] sm:$0xff] %vm388, %v6120
      %6153 = vst.msk [vmem:[#allocation3 + $0x50] sm:$0xff] %vm388, %v6121
      %6154 = vst.msk [vmem:[#allocation3 + $0x58] sm:$0xff] %vm388, %v6122
      %6155 = vst.msk [vmem:[#allocation3 + $0x60] sm:$0xff] %vm388, %v6123
      %6156 = vst.msk [vmem:[#allocation3 + $0x68] sm:$0xff] %vm388, %v6124
      %6157 = vst.msk [vmem:[#allocation3 + $0x70] sm:$0xff] %vm388, %v6125
      %6158 = vst.msk [vmem:[#allocation3 + $0x78] sm:$0xff] %vm388, %v6126
      %6159 = vst.msk [vmem:[#allocation3 + $0x80] sm:$0xff] %vm388, %v6127
      %6160 = vst.msk [vmem:[#allocation3 + $0x88] sm:$0xff] %vm388, %v6128
      %6161 = vst.msk [vmem:[#allocation3 + $0x90] sm:$0xff] %vm388, %v6129
      %6162 = vst.msk [vmem:[#allocation3 + $0x98] sm:$0xff] %vm388, %v6130
      %6163 = vst.msk [vmem:[#allocation3 + $0xa0] sm:$0xff] %vm388, %v6131
      %6164 = vst.msk [vmem:[#allocation3 + $0xa8] sm:$0xff] %vm388, %v6132
      %6165 = vst.msk [vmem:[#allocation3 + $0xb0] sm:$0xff] %vm388, %v6133
      %6166 = vst.msk [vmem:[#allocation3 + $0xb8] sm:$0xff] %vm388, %v6134
      %6167 = vst.msk [vmem:[#allocation3 + $0xc0] sm:$0xff] %vm388, %v6135
      %6168 = vst.msk [vmem:[#allocation3 + $0xc8] sm:$0xff] %vm388, %v6136
      %6169 = vst.msk [vmem:[#allocation3 + $0xd0] sm:$0xff] %vm388, %v6137
      %6170 = vst.msk [vmem:[#allocation3 + $0xd8] sm:$0xff] %vm388, %v6138
      %6171 = vst.msk [vmem:[#allocation3 + $0xe0] sm:$0xff] %vm388, %v6139
      %6172 = vst.msk [vmem:[#allocation3 + $0xe8] sm:$0xff] %vm388, %v6140
      %6173 = vst.msk [vmem:[#allocation3 + $0xf0] sm:$0xff] %vm388, %v6141
      %6174 = vst.msk [vmem:[#allocation3 + $0xf8] sm:$0xff] %vm388, %v6142
      %v6175 = vsel %vm388, %v6111, 0.0
      %v6176 = vsel %vm388, %v6112, 0.0
      %v6177 = vadd.f32 %v6175, %v6176
      %v6178 = vsel %vm388, %v6113, 0.0
      %v6179 = vadd.f32 %v6177, %v6178
      %v6180 = vsel %vm388, %v6114, 0.0
      %v6181 = vadd.f32 %v6179, %v6180
      %v6182 = vsel %vm388, %v6115, 0.0
      %v6183 = vadd.f32 %v6181, %v6182
      %v6184 = vsel %vm388, %v6116, 0.0
      %v6185 = vadd.f32 %v6183, %v6184
      %v6186 = vsel %vm388, %v6117, 0.0
      %v6187 = vadd.f32 %v6185, %v6186
      %v6188 = vsel %vm388, %v6118, 0.0
      %v6189 = vadd.f32 %v6187, %v6188
      %v6190 = vsel %vm388, %v6119, 0.0
      %v6191 = vadd.f32 %v6189, %v6190
      %v6192 = vsel %vm388, %v6120, 0.0
      %v6193 = vadd.f32 %v6191, %v6192
      %v6194 = vsel %vm388, %v6121, 0.0
      %v6195 = vadd.f32 %v6193, %v6194
      %v6196 = vsel %vm388, %v6122, 0.0
      %v6197 = vadd.f32 %v6195, %v6196
      %v6198 = vsel %vm388, %v6123, 0.0
      %v6199 = vadd.f32 %v6197, %v6198
      %v6200 = vsel %vm388, %v6124, 0.0
      %v6201 = vadd.f32 %v6199, %v6200
      %v6202 = vsel %vm388, %v6125, 0.0
      %v6203 = vadd.f32 %v6201, %v6202
      %v6204 = vsel %vm388, %v6126, 0.0
      %v6205 = vadd.f32 %v6203, %v6204
      %v6206 = vsel %vm388, %v6127, 0.0
      %v6207 = vadd.f32 %v6205, %v6206
      %v6208 = vsel %vm388, %v6128, 0.0
      %v6209 = vadd.f32 %v6207, %v6208
      %v6210 = vsel %vm388, %v6129, 0.0
      %v6211 = vadd.f32 %v6209, %v6210
      %v6212 = vsel %vm388, %v6130, 0.0
      %v6213 = vadd.f32 %v6211, %v6212
      %v6214 = vsel %vm388, %v6131, 0.0
      %v6215 = vadd.f32 %v6213, %v6214
      %v6216 = vsel %vm388, %v6132, 0.0
      %v6217 = vadd.f32 %v6215, %v6216
      %v6218 = vsel %vm388, %v6133, 0.0
      %v6219 = vadd.f32 %v6217, %v6218
      %v6220 = vsel %vm388, %v6134, 0.0
      %v6221 = vadd.f32 %v6219, %v6220
      %v6222 = vsel %vm388, %v6135, 0.0
      %v6223 = vadd.f32 %v6221, %v6222
      %v6224 = vsel %vm388, %v6136, 0.0
      %v6225 = vadd.f32 %v6223, %v6224
      %v6226 = vsel %vm388, %v6137, 0.0
      %v6227 = vadd.f32 %v6225, %v6226
      %v6228 = vsel %vm388, %v6138, 0.0
      %v6229 = vadd.f32 %v6227, %v6228
      %v6230 = vsel %vm388, %v6139, 0.0
      %v6231 = vadd.f32 %v6229, %v6230
      %v6232 = vsel %vm388, %v6140, 0.0
      %v6233 = vadd.f32 %v6231, %v6232
      %v6234 = vsel %vm388, %v6141, 0.0
      %v6235 = vadd.f32 %v6233, %v6234
      %v6236 = vsel %vm388, %v6142, 0.0
      %v6237 = vadd.f32 %v6235, %v6236
      %v6238 = vrot.slane %v6237, 4
      %v6239 = vadd.f32 %v6237, %v6238
      %v6240 = vrot.slane %v6239, 2
      %v6241 = vadd.f32 %v6239, %v6240
      %v6242 = vrot.slane %v6241, 1
      %v6243 = vadd.f32 %v6241, %v6242
      %v6244 = vadd.f32 %v6243, 0.0
      %v6245 = vmul.f32 %v6244, 0.00390625
      %v6246 = vld [vmem:[%s5] sm:$0xff]
      %v6247 = vld [vmem:[%s5 + $0x8] sm:$0xff]
      %v6248 = vld [vmem:[%s5 + $0x10] sm:$0xff]
      %v6249 = vld [vmem:[%s5 + $0x18] sm:$0xff]
      %v6250 = vld [vmem:[%s6] sm:$0x1]
      %v6252 = vsel %vm388, %v6245, 0
      %6254 = vmatprep.subr.mxu0 0.0
      %6255 = vmatpush1.msra.mxu0 0.0
      %6256 = vmatprep.subr.mxu0 0.0
      %6257 = vmatpush1.msra.mxu0 0.0
      %6258 = vmatprep.subr.mxu0 0.0
      %6259 = vmatpush1.msra.mxu0 0.0
      %6260 = vmatprep.subr.mxu0 0.0
      %6261 = vmatpush1.msra.mxu0 0.0
      %6262 = vmatprep.subr.mxu0 0.0
      %6263 = vmatpush1.msra.mxu0 0.0
      %6264 = vmatprep.subr.mxu0 0.0
      %6265 = vmatpush1.msra.mxu0 0.0
      %6266 = vmatprep.subr.mxu0 0.0
      %6267 = vmatpush1.msra.mxu0 0.0
      %6268 = vmatprep.subr.mxu0 0.0
      %6269 = vmatpush1.msra.mxu0 0.0
      %6270 = vmatprep.subr.mxu0 0.0
      %6271 = vmatpush1.msra.mxu0 0.0
      %6272 = vmatprep.subr.mxu0 0.0
      %6273 = vmatpush1.msra.mxu0 0.0
      %6274 = vmatprep.subr.mxu0 0.0
      %6275 = vmatpush1.msra.mxu0 0.0
      %6276 = vmatprep.subr.mxu0 0.0
      %6277 = vmatpush1.msra.mxu0 0.0
      %6278 = vmatprep.subr.mxu0 0.0
      %6279 = vmatpush1.msra.mxu0 %v6249
      %6280 = vmatprep.subr.mxu0 0.0
      %6281 = vmatpush1.msra.mxu0 %v6248
      %6282 = vmatprep.subr.mxu0 0.0
      %6283 = vmatpush1.msra.mxu0 %v6247
      %6284 = vmatprep.subr.mxu0 0.0
      %6285 = vmatpush1.msra.mxu0 %v6246
      %6286 = vmatprep.subr.mxu0 0.0
      %6287 = vmatpush2.msra.mxu0 0.0
      %6288 = vmatprep.subr.mxu0 0.0
      %6289 = vmatpush2.msra.mxu0 0.0
      %6290 = vmatprep.subr.mxu0 0.0
      %6291 = vmatpush2.msra.mxu0 0.0
      %6292 = vmatprep.subr.mxu0 0.0
      %6293 = vmatpush2.msra.mxu0 0.0
      %6294 = vmatprep.subr.mxu0 0.0
      %6295 = vmatpush2.msra.mxu0 0.0
      %6296 = vmatprep.subr.mxu0 0.0
      %6297 = vmatpush2.msra.mxu0 0.0
      %6298 = vmatprep.subr.mxu0 0.0
      %6299 = vmatpush2.msra.mxu0 0.0
      %6300 = vmatprep.subr.mxu0 0.0
      %6301 = vmatpush2.msra.mxu0 0.0
      %6302 = vmatprep.subr.mxu0 0.0
      %6303 = vmatpush2.msra.mxu0 0.0
      %6304 = vmatprep.subr.mxu0 0.0
      %6305 = vmatpush2.msra.mxu0 0.0
      %6306 = vmatprep.subr.mxu0 0.0
      %6307 = vmatpush2.msra.mxu0 0.0
      %6308 = vmatprep.subr.mxu0 0.0
      %6309 = vmatpush2.msra.mxu0 0.0
      %6310 = vmatprep.subr.mxu0 0.0
      %6311 = vmatpush2.msra.mxu0 0.0
      %6312 = vmatprep.subr.mxu0 0.0
      %6313 = vmatpush2.msra.mxu0 0.0
      %6314 = vmatprep.subr.mxu0 0.0
      %6315 = vmatpush2.msra.mxu0 0.0
      %6316 = vmatprep.subr.mxu0 0.0
      %6317 = vmatpush2.msra.mxu0 0.0
      %6318 = vmatprep.mubr.f32.mxu0 0.0
      %6319 = vmatmul.mubr.f32.gmra.mxu0 %v6252
      %v6320 = vpop.f32.mrf.mxu0
      %v6321 = vadd.f32 %v6250, %v6320
      %v6322 = vpop.f32.mrf.mxu0
      %6323 = vdwg.mxu0
      %v6324 = vxor.u32 %v6321, 2147483648
      %v6325 = vmul.f32 %v6324, 1.442695
      %v6326 = vpow.pop %v6325
      %v6327 = vadd.f32 %v6326, 1.0
      %v6328 = vrcp.pop %v6327
      %v6329 = vmul.f32 1.0, %v6328
      %v6330 = vmul.f32 %v6321, %v6329
      %v6331 = vld [vmem:[%s7] sm:$0x3]
      %v6332 = vld [vmem:[%s8] sm:$0x1]
      %vm6333 = vcmask 15360
      %v6335 = vsel %vm6333, %v6330, 0
      %vm6337 = vcmask 1041408
      %v6339 = vsel %vm6337, %v6331, 0
      %6341 = vmatprep.subr.mxu0 0.0
      %6342 = vmatpush1.msra.mxu0 0.0
      %6343 = vmatprep.subr.mxu0 0.0
      %6344 = vmatpush1.msra.mxu0 0.0
      %6345 = vmatprep.subr.mxu0 0.0
      %6346 = vmatpush1.msra.mxu0 0.0
      %6347 = vmatprep.subr.mxu0 0.0
      %6348 = vmatpush1.msra.mxu0 0.0
      %6349 = vmatprep.subr.mxu0 0.0
      %6350 = vmatpush1.msra.mxu0 0.0
      %6351 = vmatprep.subr.mxu0 0.0
      %6352 = vmatpush1.msra.mxu0 0.0
      %6353 = vmatprep.subr.mxu0 0.0
      %6354 = vmatpush1.msra.mxu0 0.0
      %6355 = vmatprep.subr.mxu0 0.0
      %6356 = vmatpush1.msra.mxu0 0.0
      %6357 = vmatprep.subr.mxu0 0.0
      %6358 = vmatpush1.msra.mxu0 0.0
      %6359 = vmatprep.subr.mxu0 0.0
      %6360 = vmatpush1.msra.mxu0 0.0
      %6361 = vmatprep.subr.mxu0 0.0
      %6362 = vmatpush1.msra.mxu0 0.0
      %6363 = vmatprep.subr.mxu0 0.0
      %6364 = vmatpush1.msra.mxu0 0.0
      %6365 = vmatprep.subr.mxu0 0.0
      %6366 = vmatpush1.msra.mxu0 0.0
      %6367 = vmatprep.subr.mxu0 0.0
      %6368 = vmatpush1.msra.mxu0 0.0
      %6369 = vmatprep.subr.mxu0 0.0
      %6370 = vmatpush1.msra.mxu0 0.0
      %6371 = vmatprep.subr.mxu0 0.0
      %6372 = vmatpush1.msra.mxu0 %v6339
      %6373 = vmatprep.subr.mxu0 0.0
      %6374 = vmatpush2.msra.mxu0 0.0
      %6375 = vmatprep.subr.mxu0 0.0
      %6376 = vmatpush2.msra.mxu0 0.0
      %6377 = vmatprep.subr.mxu0 0.0
      %6378 = vmatpush2.msra.mxu0 0.0
      %6379 = vmatprep.subr.mxu0 0.0
      %6380 = vmatpush2.msra.mxu0 0.0
      %6381 = vmatprep.subr.mxu0 0.0
      %6382 = vmatpush2.msra.mxu0 0.0
      %6383 = vmatprep.subr.mxu0 0.0
      %6384 = vmatpush2.msra.mxu0 0.0
      %6385 = vmatprep.subr.mxu0 0.0
      %6386 = vmatpush2.msra.mxu0 0.0
      %6387 = vmatprep.subr.mxu0 0.0
      %6388 = vmatpush2.msra.mxu0 0.0
      %6389 = vmatprep.subr.mxu0 0.0
      %6390 = vmatpush2.msra.mxu0 0.0
      %6391 = vmatprep.subr.mxu0 0.0
      %6392 = vmatpush2.msra.mxu0 0.0
      %6393 = vmatprep.subr.mxu0 0.0
      %6394 = vmatpush2.msra.mxu0 0.0
      %6395 = vmatprep.subr.mxu0 0.0
      %6396 = vmatpush2.msra.mxu0 0.0
      %6397 = vmatprep.subr.mxu0 0.0
      %6398 = vmatpush2.msra.mxu0 0.0
      %6399 = vmatprep.subr.mxu0 0.0
      %6400 = vmatpush2.msra.mxu0 0.0
      %6401 = vmatprep.subr.mxu0 0.0
      %6402 = vmatpush2.msra.mxu0 0.0
      %6403 = vmatprep.subr.mxu0 0.0
      %6404 = vmatpush2.msra.mxu0 0.0
      %6405 = vmatprep.mubr.f32.mxu0 0.0
      %6406 = vmatmul.mubr.f32.gmra.mxu0 %v6335
      %v6407 = vpop.f32.mrf.mxu0
      %v6408 = vadd.f32 %v6332, %v6407
      %v6409 = vpop.f32.mrf.mxu0
      %6410 = vdwg.mxu0
      %v6411 = vxor.u32 %v6408, 2147483648
      %v6412 = vmul.f32 %v6411, 1.442695
      %v6413 = vpow.pop %v6412
      %v6414 = vadd.f32 %v6413, 1.0
      %v6415 = vrcp.pop %v6414
      %v6416 = vmul.f32 1.0, %v6415
      %v6417 = vld [vmem:[%s9] sm:$0xff]
      %v6418 = vld [vmem:[%s9 + $0x8] sm:$0xff]
      %v6419 = vld [vmem:[%s9 + $0x10] sm:$0xff]
      %v6420 = vld [vmem:[%s9 + $0x18] sm:$0xff]
      %v6421 = vpack.c.bf16 %v6418, %v6417
      %v6422 = vpack.c.bf16 %v6420, %v6419
      %v6423 = vld [vmem:[#allocation3] sm:$0xff]
      %v6424 = vld [vmem:[#allocation3 + $0x8] sm:$0xff]
      %v6425 = vld [vmem:[#allocation3 + $0x10] sm:$0xff]
      %v6426 = vld [vmem:[#allocation3 + $0x18] sm:$0xff]
      %v6427 = vld [vmem:[#allocation3 + $0x20] sm:$0xff]
      %v6428 = vld [vmem:[#allocation3 + $0x28] sm:$0xff]
      %v6429 = vld [vmem:[#allocation3 + $0x30] sm:$0xff]
      %v6430 = vld [vmem:[#allocation3 + $0x38] sm:$0xff]
      %v6431 = vld [vmem:[#allocation3 + $0x40] sm:$0xff]
      %v6432 = vld [vmem:[#allocation3 + $0x48] sm:$0xff]
      %v6433 = vld [vmem:[#allocation3 + $0x50] sm:$0xff]
      %v6434 = vld [vmem:[#allocation3 + $0x58] sm:$0xff]
      %v6435 = vld [vmem:[#allocation3 + $0x60] sm:$0xff]
      %v6436 = vld [vmem:[#allocation3 + $0x68] sm:$0xff]
      %v6437 = vld [vmem:[#allocation3 + $0x70] sm:$0xff]
      %v6438 = vld [vmem:[#allocation3 + $0x78] sm:$0xff]
      %v6439 = vld [vmem:[#allocation3 + $0x80] sm:$0xff]
      %v6440 = vld [vmem:[#allocation3 + $0x88] sm:$0xff]
      %v6441 = vld [vmem:[#allocation3 + $0x90] sm:$0xff]
      %v6442 = vld [vmem:[#allocation3 + $0x98] sm:$0xff]
      %v6443 = vld [vmem:[#allocation3 + $0xa0] sm:$0xff]
      %v6444 = vld [vmem:[#allocation3 + $0xa8] sm:$0xff]
      %v6445 = vld [vmem:[#allocation3 + $0xb0] sm:$0xff]
      %v6446 = vld [vmem:[#allocation3 + $0xb8] sm:$0xff]
      %v6447 = vld [vmem:[#allocation3 + $0xc0] sm:$0xff]
      %v6448 = vld [vmem:[#allocation3 + $0xc8] sm:$0xff]
      %v6449 = vld [vmem:[#allocation3 + $0xd0] sm:$0xff]
      %v6450 = vld [vmem:[#allocation3 + $0xd8] sm:$0xff]
      %v6451 = vld [vmem:[#allocation3 + $0xe0] sm:$0xff]
      %v6452 = vld [vmem:[#allocation3 + $0xe8] sm:$0xff]
      %v6453 = vld [vmem:[#allocation3 + $0xf0] sm:$0xff]
      %v6454 = vld [vmem:[#allocation3 + $0xf8] sm:$0xff]
      %v6455 = vlaneseq
      %v6456 = vshrl.u32 %v6455, 7
      %v6457 = vsub.s32 0, %v6456
      %v6458 = vrot.slane %v6416, %v6457
      %v6459 = vmul.f32 %v6423, %v6458
      %v6460 = vmul.f32 %v6424, %v6458
      %v6461 = vmul.f32 %v6425, %v6458
      %v6462 = vmul.f32 %v6426, %v6458
      %v6463 = vmul.f32 %v6427, %v6458
      %v6464 = vmul.f32 %v6428, %v6458
      %v6465 = vmul.f32 %v6429, %v6458
      %v6466 = vmul.f32 %v6430, %v6458
      %v6467 = vmul.f32 %v6431, %v6458
      %v6468 = vmul.f32 %v6432, %v6458
      %v6469 = vmul.f32 %v6433, %v6458
      %v6470 = vmul.f32 %v6434, %v6458
      %v6471 = vmul.f32 %v6435, %v6458
      %v6472 = vmul.f32 %v6436, %v6458
      %v6473 = vmul.f32 %v6437, %v6458
      %v6474 = vmul.f32 %v6438, %v6458
      %v6475 = vmul.f32 %v6439, %v6458
      %v6476 = vmul.f32 %v6440, %v6458
      %v6477 = vmul.f32 %v6441, %v6458
      %v6478 = vmul.f32 %v6442, %v6458
      %v6479 = vmul.f32 %v6443, %v6458
      %v6480 = vmul.f32 %v6444, %v6458
      %v6481 = vmul.f32 %v6445, %v6458
      %v6482 = vmul.f32 %v6446, %v6458
      %v6483 = vmul.f32 %v6447, %v6458
      %v6484 = vmul.f32 %v6448, %v6458
      %v6485 = vmul.f32 %v6449, %v6458
      %v6486 = vmul.f32 %v6450, %v6458
      %v6487 = vmul.f32 %v6451, %v6458
      %v6488 = vmul.f32 %v6452, %v6458
      %v6489 = vmul.f32 %v6453, %v6458
      %v6490 = vmul.f32 %v6454, %v6458
      %v6491 = vpack.c.bf16 %v6460, %v6459
      %v6492 = vpack.c.bf16 %v6462, %v6461
      %v6493 = vpack.c.bf16 %v6464, %v6463
      %v6494 = vpack.c.bf16 %v6466, %v6465
      %v6495 = vpack.c.bf16 %v6468, %v6467
      %v6496 = vpack.c.bf16 %v6470, %v6469
      %v6497 = vpack.c.bf16 %v6472, %v6471
      %v6498 = vpack.c.bf16 %v6474, %v6473
      %v6499 = vpack.c.bf16 %v6476, %v6475
      %v6500 = vpack.c.bf16 %v6478, %v6477
      %v6501 = vpack.c.bf16 %v6480, %v6479
      %v6502 = vpack.c.bf16 %v6482, %v6481
      %v6503 = vpack.c.bf16 %v6484, %v6483
      %v6504 = vpack.c.bf16 %v6486, %v6485
      %v6505 = vpack.c.bf16 %v6488, %v6487
      %v6506 = vpack.c.bf16 %v6490, %v6489
      %v6508 = vlaneseq
      %v6509 = vshrl.u32 %v6508, 7
      %v6510 = vsub.s32 0, %v6509
      %v6511 = vrot.slane %v4979, %v6510
      %v6514 = vsel %vm388, %v6491, 0
      %v6517 = vsel %vm388, %v6492, 0
      %v6520 = vsel %vm388, %v6493, 0
      %v6523 = vsel %vm388, %v6494, 0
      %v6526 = vsel %vm388, %v6495, 0
      %v6529 = vsel %vm388, %v6496, 0
      %v6532 = vsel %vm388, %v6497, 0
      %v6535 = vsel %vm388, %v6498, 0
      %v6538 = vsel %vm388, %v6499, 0
      %v6541 = vsel %vm388, %v6500, 0
      %v6544 = vsel %vm388, %v6501, 0
      %v6547 = vsel %vm388, %v6502, 0
      %v6550 = vsel %vm388, %v6503, 0
      %v6553 = vsel %vm388, %v6504, 0
      %v6556 = vsel %vm388, %v6505, 0
      %v6559 = vsel %vm388, %v6506, 0
      %6561 = vmatprep.subr.bf16.mxu0 0
      %6562 = vmatpush1.bf16.msra.mxu0 0
      %6563 = vmatprep.subr.bf16.mxu0 0
      %6564 = vmatpush1.bf16.msra.mxu0 0
      %6565 = vmatprep.subr.bf16.mxu0 0
      %6566 = vmatpush1.bf16.msra.mxu0 0
      %6567 = vmatprep.subr.bf16.mxu0 0
      %6568 = vmatpush1.bf16.msra.mxu0 0
      %6569 = vmatprep.subr.bf16.mxu0 0
      %6570 = vmatpush1.bf16.msra.mxu0 0
      %6571 = vmatprep.subr.bf16.mxu0 0
      %6572 = vmatpush1.bf16.msra.mxu0 0
      %6573 = vmatprep.subr.bf16.mxu0 0
      %6574 = vmatpush1.bf16.msra.mxu0 %v6422
      %6575 = vmatprep.subr.bf16.mxu0 0
      %6576 = vmatpush1.bf16.msra.mxu0 %v6421
      %6577 = vmatprep.subr.bf16.mxu0 0
      %6578 = vmatpush2.bf16.msra.mxu0 0
      %6579 = vmatprep.subr.bf16.mxu0 0
      %6580 = vmatpush2.bf16.msra.mxu0 0
      %6581 = vmatprep.subr.bf16.mxu0 0
      %6582 = vmatpush2.bf16.msra.mxu0 0
      %6583 = vmatprep.subr.bf16.mxu0 0
      %6584 = vmatpush2.bf16.msra.mxu0 0
      %6585 = vmatprep.subr.bf16.mxu0 0
      %6586 = vmatpush2.bf16.msra.mxu0 0
      %6587 = vmatprep.subr.bf16.mxu0 0
      %6588 = vmatpush2.bf16.msra.mxu0 0
      %6589 = vmatprep.subr.bf16.mxu0 0
      %6590 = vmatpush2.bf16.msra.mxu0 0
      %6591 = vmatprep.subr.bf16.mxu0 0
      %6592 = vmatpush2.bf16.msra.mxu0 0
      %6593 = vmatprep.mubr.bf16.mxu0 0
      %6594 = vmatmul.mubr.bf16.gmra.mxu0 %v6514
      %v6595 = vpop.f32.mrf.mxu0
      %v6596 = vadd.f32 %v6511, %v6595
      %v6597 = vpop.f32.mrf.mxu0
      %v6598 = vpop.f32.mrf.mxu0
      %v6599 = vadd.f32 %v6511, %v6598
      %v6600 = vpop.f32.mrf.mxu0
      %6601 = vmatprep.mubr.bf16.mxu0 0
      %6602 = vmatmul.mubr.bf16.gmra.mxu0 %v6517
      %v6603 = vpop.f32.mrf.mxu0
      %v6604 = vadd.f32 %v6511, %v6603
      %v6605 = vpop.f32.mrf.mxu0
      %v6606 = vpop.f32.mrf.mxu0
      %v6607 = vadd.f32 %v6511, %v6606
      %v6608 = vpop.f32.mrf.mxu0
      %6609 = vmatprep.mubr.bf16.mxu0 0
      %6610 = vmatmul.mubr.bf16.gmra.mxu0 %v6520
      %v6611 = vpop.f32.mrf.mxu0
      %v6612 = vadd.f32 %v6511, %v6611
      %v6613 = vpop.f32.mrf.mxu0
      %v6614 = vpop.f32.mrf.mxu0
      %v6615 = vadd.f32 %v6511, %v6614
      %v6616 = vpop.f32.mrf.mxu0
      %6617 = vmatprep.mubr.bf16.mxu0 0
      %6618 = vmatmul.mubr.bf16.gmra.mxu0 %v6523
      %v6619 = vpop.f32.mrf.mxu0
      %v6620 = vadd.f32 %v6511, %v6619
      %v6621 = vpop.f32.mrf.mxu0
      %v6622 = vpop.f32.mrf.mxu0
      %v6623 = vadd.f32 %v6511, %v6622
      %v6624 = vpop.f32.mrf.mxu0
      %6625 = vmatprep.mubr.bf16.mxu0 0
      %6626 = vmatmul.mubr.bf16.gmra.mxu0 %v6526
      %v6627 = vpop.f32.mrf.mxu0
      %v6628 = vadd.f32 %v6511, %v6627
      %v6629 = vpop.f32.mrf.mxu0
      %v6630 = vpop.f32.mrf.mxu0
      %v6631 = vadd.f32 %v6511, %v6630
      %v6632 = vpop.f32.mrf.mxu0
      %6633 = vmatprep.mubr.bf16.mxu0 0
      %6634 = vmatmul.mubr.bf16.gmra.mxu0 %v6529
      %v6635 = vpop.f32.mrf.mxu0
      %v6636 = vadd.f32 %v6511, %v6635
      %v6637 = vpop.f32.mrf.mxu0
      %v6638 = vpop.f32.mrf.mxu0
      %v6639 = vadd.f32 %v6511, %v6638
      %v6640 = vpop.f32.mrf.mxu0
      %6641 = vmatprep.mubr.bf16.mxu0 0
      %6642 = vmatmul.mubr.bf16.gmra.mxu0 %v6532
      %v6643 = vpop.f32.mrf.mxu0
      %v6644 = vadd.f32 %v6511, %v6643
      %v6645 = vpop.f32.mrf.mxu0
      %v6646 = vpop.f32.mrf.mxu0
      %v6647 = vadd.f32 %v6511, %v6646
      %v6648 = vpop.f32.mrf.mxu0
      %6649 = vmatprep.mubr.bf16.mxu0 0
      %6650 = vmatmul.mubr.bf16.gmra.mxu0 %v6535
      %v6651 = vpop.f32.mrf.mxu0
      %v6652 = vadd.f32 %v6511, %v6651
      %v6653 = vpop.f32.mrf.mxu0
      %v6654 = vpop.f32.mrf.mxu0
      %v6655 = vadd.f32 %v6511, %v6654
      %v6656 = vpop.f32.mrf.mxu0
      %6657 = vmatprep.mubr.bf16.mxu0 0
      %6658 = vmatmul.mubr.bf16.gmra.mxu0 %v6538
      %v6659 = vpop.f32.mrf.mxu0
      %v6660 = vadd.f32 %v6511, %v6659
      %v6661 = vpop.f32.mrf.mxu0
      %v6662 = vpop.f32.mrf.mxu0
      %v6663 = vadd.f32 %v6511, %v6662
      %v6664 = vpop.f32.mrf.mxu0
      %6665 = vmatprep.mubr.bf16.mxu0 0
      %6666 = vmatmul.mubr.bf16.gmra.mxu0 %v6541
      %v6667 = vpop.f32.mrf.mxu0
      %v6668 = vadd.f32 %v6511, %v6667
      %v6669 = vpop.f32.mrf.mxu0
      %v6670 = vpop.f32.mrf.mxu0
      %v6671 = vadd.f32 %v6511, %v6670
      %v6672 = vpop.f32.mrf.mxu0
      %6673 = vmatprep.mubr.bf16.mxu0 0
      %6674 = vmatmul.mubr.bf16.gmra.mxu0 %v6544
      %v6675 = vpop.f32.mrf.mxu0
      %v6676 = vadd.f32 %v6511, %v6675
      %v6677 = vpop.f32.mrf.mxu0
      %v6678 = vpop.f32.mrf.mxu0
      %v6679 = vadd.f32 %v6511, %v6678
      %v6680 = vpop.f32.mrf.mxu0
      %6681 = vmatprep.mubr.bf16.mxu0 0
      %6682 = vmatmul.mubr.bf16.gmra.mxu0 %v6547
      %v6683 = vpop.f32.mrf.mxu0
      %v6684 = vadd.f32 %v6511, %v6683
      %v6685 = vpop.f32.mrf.mxu0
      %v6686 = vpop.f32.mrf.mxu0
      %v6687 = vadd.f32 %v6511, %v6686
      %v6688 = vpop.f32.mrf.mxu0
      %6689 = vmatprep.mubr.bf16.mxu0 0
      %6690 = vmatmul.mubr.bf16.gmra.mxu0 %v6550
      %v6691 = vpop.f32.mrf.mxu0
      %v6692 = vadd.f32 %v6511, %v6691
      %v6693 = vpop.f32.mrf.mxu0
      %v6694 = vpop.f32.mrf.mxu0
      %v6695 = vadd.f32 %v6511, %v6694
      %v6696 = vpop.f32.mrf.mxu0
      %6697 = vmatprep.mubr.bf16.mxu0 0
      %6698 = vmatmul.mubr.bf16.gmra.mxu0 %v6553
      %v6699 = vpop.f32.mrf.mxu0
      %v6700 = vadd.f32 %v6511, %v6699
      %v6701 = vpop.f32.mrf.mxu0
      %v6702 = vpop.f32.mrf.mxu0
      %v6703 = vadd.f32 %v6511, %v6702
      %v6704 = vpop.f32.mrf.mxu0
      %6705 = vmatprep.mubr.bf16.mxu0 0
      %6706 = vmatmul.mubr.bf16.gmra.mxu0 %v6556
      %v6707 = vpop.f32.mrf.mxu0
      %v6708 = vadd.f32 %v6511, %v6707
      %v6709 = vpop.f32.mrf.mxu0
      %v6710 = vpop.f32.mrf.mxu0
      %v6711 = vadd.f32 %v6511, %v6710
      %v6712 = vpop.f32.mrf.mxu0
      %6713 = vmatprep.mubr.bf16.mxu0 0
      %6714 = vmatmul.mubr.bf16.gmra.mxu0 %v6559
      %v6715 = vpop.f32.mrf.mxu0
      %v6716 = vadd.f32 %v6511, %v6715
      %v6717 = vpop.f32.mrf.mxu0
      %v6718 = vpop.f32.mrf.mxu0
      %v6719 = vadd.f32 %v6511, %v6718
      %v6720 = vpop.f32.mrf.mxu0
      %6721 = vdwg.mxu0
      %v6722 = vld [vmem:[%s427] sm:$0xff]
      %v6723 = vld [vmem:[%s427 + $0x8] sm:$0xff]
      %v6724 = vld [vmem:[%s427 + $0x10] sm:$0x3]
      %v6725 = vld [vmem:[%s427 + $0x18] sm:$0xff]
      %v6726 = vld [vmem:[%s427 + $0x20] sm:$0xff]
      %v6727 = vld [vmem:[%s427 + $0x28] sm:$0x3]
      %v6728 = vld [vmem:[%s427 + $0x30] sm:$0xff]
      %v6729 = vld [vmem:[%s427 + $0x38] sm:$0xff]
      %v6730 = vld [vmem:[%s427 + $0x40] sm:$0x3]
      %v6731 = vld [vmem:[%s427 + $0x48] sm:$0xff]
      %v6732 = vld [vmem:[%s427 + $0x50] sm:$0xff]
      %v6733 = vld [vmem:[%s427 + $0x58] sm:$0x3]
      %v6734 = vld [vmem:[%s427 + $0x60] sm:$0xff]
      %v6735 = vld [vmem:[%s427 + $0x68] sm:$0xff]
      %v6736 = vld [vmem:[%s427 + $0x70] sm:$0x3]
      %v6737 = vld [vmem:[%s427 + $0x78] sm:$0xff]
      %v6738 = vld [vmem:[%s427 + $0x80] sm:$0xff]
      %v6739 = vld [vmem:[%s427 + $0x88] sm:$0x3]
      %v6740 = vld [vmem:[%s427 + $0x90] sm:$0xff]
      %v6741 = vld [vmem:[%s427 + $0x98] sm:$0xff]
      %v6742 = vld [vmem:[%s427 + $0xa0] sm:$0x3]
      %v6743 = vld [vmem:[%s427 + $0xa8] sm:$0xff]
      %v6744 = vld [vmem:[%s427 + $0xb0] sm:$0xff]
      %v6745 = vld [vmem:[%s427 + $0xb8] sm:$0x3]
      %v6746 = vld [vmem:[%s427 + $0xc0] sm:$0xff]
      %v6747 = vld [vmem:[%s427 + $0xc8] sm:$0xff]
      %v6748 = vld [vmem:[%s427 + $0xd0] sm:$0x3]
      %v6749 = vld [vmem:[%s427 + $0xd8] sm:$0xff]
      %v6750 = vld [vmem:[%s427 + $0xe0] sm:$0xff]
      %v6751 = vld [vmem:[%s427 + $0xe8] sm:$0x3]
      %v6752 = vld [vmem:[%s427 + $0xf0] sm:$0xff]
      %v6753 = vld [vmem:[%s427 + $0xf8] sm:$0xff]
      %v6754 = vld [vmem:[%s427 + $0x100] sm:$0x3]
      %v6755 = vld [vmem:[%s427 + $0x108] sm:$0xff]
      %v6756 = vld [vmem:[%s427 + $0x110] sm:$0xff]
      %v6757 = vld [vmem:[%s427 + $0x118] sm:$0x3]
      %v6758 = vld [vmem:[%s427 + $0x120] sm:$0xff]
      %v6759 = vld [vmem:[%s427 + $0x128] sm:$0xff]
      %v6760 = vld [vmem:[%s427 + $0x130] sm:$0x3]
      %v6761 = vld [vmem:[%s427 + $0x138] sm:$0xff]
      %v6762 = vld [vmem:[%s427 + $0x140] sm:$0xff]
      %v6763 = vld [vmem:[%s427 + $0x148] sm:$0x3]
      %v6764 = vld [vmem:[%s427 + $0x150] sm:$0xff]
      %v6765 = vld [vmem:[%s427 + $0x158] sm:$0xff]
      %v6766 = vld [vmem:[%s427 + $0x160] sm:$0x3]
      %v6767 = vld [vmem:[%s427 + $0x168] sm:$0xff]
      %v6768 = vld [vmem:[%s427 + $0x170] sm:$0xff]
      %v6769 = vld [vmem:[%s427 + $0x178] sm:$0x3]
      %vm6818 = vcmask 1046528
      %v6819 = vrot.slane %v6722, 1
      %v6820 = vrot.slane %v6723, 1
      %v6821 = vsel %vm6818, %v6819, %v6820
      %v6822 = vrot.slane %v6724, 1
      %v6823 = vsel %vm6818, %v6820, %v6822
      %v6824 = vrot.slane %v6725, 1
      %v6825 = vrot.slane %v6726, 1
      %v6826 = vsel %vm6818, %v6824, %v6825
      %v6827 = vrot.slane %v6727, 1
      %v6828 = vsel %vm6818, %v6825, %v6827
      %v6829 = vrot.slane %v6728, 1
      %v6830 = vrot.slane %v6729, 1
      %v6831 = vsel %vm6818, %v6829, %v6830
      %v6832 = vrot.slane %v6730, 1
      %v6833 = vsel %vm6818, %v6830, %v6832
      %v6834 = vrot.slane %v6731, 1
      %v6835 = vrot.slane %v6732, 1
      %v6836 = vsel %vm6818, %v6834, %v6835
      %v6837 = vrot.slane %v6733, 1
      %v6838 = vsel %vm6818, %v6835, %v6837
      %v6839 = vrot.slane %v6734, 1
      %v6840 = vrot.slane %v6735, 1
      %v6841 = vsel %vm6818, %v6839, %v6840
      %v6842 = vrot.slane %v6736, 1
      %v6843 = vsel %vm6818, %v6840, %v6842
      %v6844 = vrot.slane %v6737, 1
      %v6845 = vrot.slane %v6738, 1
      %v6846 = vsel %vm6818, %v6844, %v6845
      %v6847 = vrot.slane %v6739, 1
      %v6848 = vsel %vm6818, %v6845, %v6847
      %v6849 = vrot.slane %v6740, 1
      %v6850 = vrot.slane %v6741, 1
      %v6851 = vsel %vm6818, %v6849, %v6850
      %v6852 = vrot.slane %v6742, 1
      %v6853 = vsel %vm6818, %v6850, %v6852
      %v6854 = vrot.slane %v6743, 1
      %v6855 = vrot.slane %v6744, 1
      %v6856 = vsel %vm6818, %v6854, %v6855
      %v6857 = vrot.slane %v6745, 1
      %v6858 = vsel %vm6818, %v6855, %v6857
      %v6859 = vrot.slane %v6746, 1
      %v6860 = vrot.slane %v6747, 1
      %v6861 = vsel %vm6818, %v6859, %v6860
      %v6862 = vrot.slane %v6748, 1
      %v6863 = vsel %vm6818, %v6860, %v6862
      %v6864 = vrot.slane %v6749, 1
      %v6865 = vrot.slane %v6750, 1
      %v6866 = vsel %vm6818, %v6864, %v6865
      %v6867 = vrot.slane %v6751, 1
      %v6868 = vsel %vm6818, %v6865, %v6867
      %v6869 = vrot.slane %v6752, 1
      %v6870 = vrot.slane %v6753, 1
      %v6871 = vsel %vm6818, %v6869, %v6870
      %v6872 = vrot.slane %v6754, 1
      %v6873 = vsel %vm6818, %v6870, %v6872
      %v6874 = vrot.slane %v6755, 1
      %v6875 = vrot.slane %v6756, 1
      %v6876 = vsel %vm6818, %v6874, %v6875
      %v6877 = vrot.slane %v6757, 1
      %v6878 = vsel %vm6818, %v6875, %v6877
      %v6879 = vrot.slane %v6758, 1
      %v6880 = vrot.slane %v6759, 1
      %v6881 = vsel %vm6818, %v6879, %v6880
      %v6882 = vrot.slane %v6760, 1
      %v6883 = vsel %vm6818, %v6880, %v6882
      %v6884 = vrot.slane %v6761, 1
      %v6885 = vrot.slane %v6762, 1
      %v6886 = vsel %vm6818, %v6884, %v6885
      %v6887 = vrot.slane %v6763, 1
      %v6888 = vsel %vm6818, %v6885, %v6887
      %v6889 = vrot.slane %v6764, 1
      %v6890 = vrot.slane %v6765, 1
      %v6891 = vsel %vm6818, %v6889, %v6890
      %v6892 = vrot.slane %v6766, 1
      %v6893 = vsel %vm6818, %v6890, %v6892
      %v6894 = vrot.slane %v6767, 1
      %v6895 = vrot.slane %v6768, 1
      %v6896 = vsel %vm6818, %v6894, %v6895
      %v6897 = vrot.slane %v6769, 1
      %v6898 = vsel %vm6818, %v6895, %v6897
      %v6931 = vadd.f32 %v6596, %v6821
      %v6932 = vadd.f32 %v6599, %v6823
      %v6933 = vadd.f32 %v6604, %v6826
      %v6934 = vadd.f32 %v6607, %v6828
      %v6935 = vadd.f32 %v6612, %v6831
      %v6936 = vadd.f32 %v6615, %v6833
      %v6937 = vadd.f32 %v6620, %v6836
      %v6938 = vadd.f32 %v6623, %v6838
      %v6939 = vadd.f32 %v6628, %v6841
      %v6940 = vadd.f32 %v6631, %v6843
      %v6941 = vadd.f32 %v6636, %v6846
      %v6942 = vadd.f32 %v6639, %v6848
      %v6943 = vadd.f32 %v6644, %v6851
      %v6944 = vadd.f32 %v6647, %v6853
      %v6945 = vadd.f32 %v6652, %v6856
      %v6946 = vadd.f32 %v6655, %v6858
      %v6947 = vadd.f32 %v6660, %v6861
      %v6948 = vadd.f32 %v6663, %v6863
      %v6949 = vadd.f32 %v6668, %v6866
      %v6950 = vadd.f32 %v6671, %v6868
      %v6951 = vadd.f32 %v6676, %v6871
      %v6952 = vadd.f32 %v6679, %v6873
      %v6953 = vadd.f32 %v6684, %v6876
      %v6954 = vadd.f32 %v6687, %v6878
      %v6955 = vadd.f32 %v6692, %v6881
      %v6956 = vadd.f32 %v6695, %v6883
      %v6957 = vadd.f32 %v6700, %v6886
      %v6958 = vadd.f32 %v6703, %v6888
      %v6959 = vadd.f32 %v6708, %v6891
      %v6960 = vadd.f32 %v6711, %v6893
      %v6961 = vadd.f32 %v6716, %v6896
      %v6962 = vadd.f32 %v6719, %v6898
      %6963 = vst.msk [vmem:[%s386] sm:$0xff] %vm1846, %v6931
      %6964 = vst.msk [vmem:[%s386 + $0x8] sm:$0xff] %vm1846, %v6932
      %6965 = vst.msk [vmem:[%s386 + $0x10] sm:$0xff] %vm1846, %v6933
      %6966 = vst.msk [vmem:[%s386 + $0x18] sm:$0xff] %vm1846, %v6934
      %6967 = vst.msk [vmem:[%s386 + $0x20] sm:$0xff] %vm1846, %v6935
      %6968 = vst.msk [vmem:[%s386 + $0x28] sm:$0xff] %vm1846, %v6936
      %6969 = vst.msk [vmem:[%s386 + $0x30] sm:$0xff] %vm1846, %v6937
      %6970 = vst.msk [vmem:[%s386 + $0x38] sm:$0xff] %vm1846, %v6938
      %6971 = vst.msk [vmem:[%s386 + $0x40] sm:$0xff] %vm1846, %v6939
      %6972 = vst.msk [vmem:[%s386 + $0x48] sm:$0xff] %vm1846, %v6940
      %6973 = vst.msk [vmem:[%s386 + $0x50] sm:$0xff] %vm1846, %v6941
      %6974 = vst.msk [vmem:[%s386 + $0x58] sm:$0xff] %vm1846, %v6942
      %6975 = vst.msk [vmem:[%s386 + $0x60] sm:$0xff] %vm1846, %v6943
      %6976 = vst.msk [vmem:[%s386 + $0x68] sm:$0xff] %vm1846, %v6944
      %6977 = vst.msk [vmem:[%s386 + $0x70] sm:$0xff] %vm1846, %v6945
      %6978 = vst.msk [vmem:[%s386 + $0x78] sm:$0xff] %vm1846, %v6946
      %6979 = vst.msk [vmem:[%s386 + $0x80] sm:$0xff] %vm1846, %v6947
      %6980 = vst.msk [vmem:[%s386 + $0x88] sm:$0xff] %vm1846, %v6948
      %6981 = vst.msk [vmem:[%s386 + $0x90] sm:$0xff] %vm1846, %v6949
      %6982 = vst.msk [vmem:[%s386 + $0x98] sm:$0xff] %vm1846, %v6950
      %6983 = vst.msk [vmem:[%s386 + $0xa0] sm:$0xff] %vm1846, %v6951
      %6984 = vst.msk [vmem:[%s386 + $0xa8] sm:$0xff] %vm1846, %v6952
      %6985 = vst.msk [vmem:[%s386 + $0xb0] sm:$0xff] %vm1846, %v6953
      %6986 = vst.msk [vmem:[%s386 + $0xb8] sm:$0xff] %vm1846, %v6954
      %6987 = vst.msk [vmem:[%s386 + $0xc0] sm:$0xff] %vm1846, %v6955
      %6988 = vst.msk [vmem:[%s386 + $0xc8] sm:$0xff] %vm1846, %v6956
      %6989 = vst.msk [vmem:[%s386 + $0xd0] sm:$0xff] %vm1846, %v6957
      %6990 = vst.msk [vmem:[%s386 + $0xd8] sm:$0xff] %vm1846, %v6958
      %6991 = vst.msk [vmem:[%s386 + $0xe0] sm:$0xff] %vm1846, %v6959
      %6992 = vst.msk [vmem:[%s386 + $0xe8] sm:$0xff] %vm1846, %v6960
      %6993 = vst.msk [vmem:[%s386 + $0xf0] sm:$0xff] %vm1846, %v6961
      %6994 = vst.msk [vmem:[%s386 + $0xf8] sm:$0xff] %vm1846, %v6962
      %p6995 = scmp.lt.s32.totalorder %s22, 1
      %s6996 = scalar_select %p6995, %s22, 1
      %s6997 = smul.addr %s6996, 32
      %s6998 = smul.addr %s6997, 8
      %s6999 = scalar_lea.vmem %s11, %s6998
      // Predicated region
      $region65: #{tpu_custom_call.1} parent=63 // pred_check
        %p7000 = pneg %p276
      $region66: #{tpu_custom_call.1} parent=63 // pred_check_branch
        %7002 = sbr.rel (%p7000) target = $region68
      $region67: #{tpu_custom_call.1} parent=63 // pred_region
        _
      $region68: #{tpu_custom_call.1} parent=63 // pred_fallthru
        _
    $region64: #{tpu_custom_call.1} parent=5 // pred_fallthru
      _
    %p7003 = scmp.le.s32.totalorder 2, %s17
    // Predicated region
    $region69: #{tpu_custom_call.1} parent=5 // pred_check
      %p7004 = pneg %p7003
    $region70: #{tpu_custom_call.1} parent=5 // pred_check_branch
      %7006 = sbr.rel (%p7004) target = $region72
    $region71: #{tpu_custom_call.1} parent=5 // pred_region
      %s7007 = ssub.s32 %s17, 2
      // Predicated region
      $region73: #{tpu_custom_call.1} parent=71 // pred_check
        %p7008 = pneg %p282
      $region74: #{tpu_custom_call.1} parent=71 // pred_check_branch
        %7010 = sbr.rel (%p7008) target = $region76
      $region75: #{tpu_custom_call.1} parent=71 // pred_region
        %p7011 = scmp.lt.s32.totalorder %s23, 1
        %s7012 = scalar_select %p7011, %s23, 1
        %s7013 = smul.addr %s7012, 32
        %s7014 = smul.addr %s7013, 8
        %s7015 = scalar_lea.vmem %s11, %s7014
      $region76: #{tpu_custom_call.1} parent=71 // pred_fallthru
        _
    $region72: #{tpu_custom_call.1} parent=5 // pred_fallthru
      _
  $region6: #{tpu_custom_call.1} parent=0 // loop_footer
    %s21 = sadd.s32 1, %s17
  $region7: #{tpu_custom_call.1} parent=0 // loop_footer_branch
    %16 = sbr.rel target = $region3
  $region8: #{tpu_custom_call.1} parent=0 // loop_exit
    _

</llo_original>
